<compile_context>
chip_gen: v7x
topology: tpu7x:2x2x1
jax: 0.10.0
libtpu: 0.0.40
codegen_flags: <defaults>
</compile_context>

<pallas_src>
import functools

import jax
import jax.numpy as jnp
from jax.experimental import pallas as pl
from jax.experimental.pallas import tpu as pltpu

VMEM_SPEC = pl.BlockSpec(memory_space=pltpu.MemorySpace.VMEM)

# bf16 MXU operands (f32 accumulate) -- the fast path on v6e/v7x, fine on v5e.
MXU_DTYPE = jnp.bfloat16


# ----------------------------------------------------------------------------
# Fused forward kernel: refs = (x_all, adj, *params, out)
# ----------------------------------------------------------------------------
def _fused_forward_kernel(input_length, *refs):
    x_ref, adj_ref = refs[0], refs[1]
    o_ref = refs[-1]
    params = iter(refs[2:-1])

    def nxt():
        return next(params)[...]

    def mxu(a, b):
        return jnp.dot(a.astype(MXU_DTYPE), b.astype(MXU_DTYPE),
                       preferred_element_type=jnp.float32)

    def leaky(y, slope=0.01):                    # nn.LeakyReLU default 0.01
        return jnp.where(y > 0, y, slope * y)

    def sigmoid(y):                              # exp + rcp live on the EUP slot
        return pl.reciprocal(1.0 + jnp.exp(-y), approx=True)

    xa = x_ref[...]
    adj = adj_ref[...]

    # static feature slices (x_phy / x_poi are unused in the torch forward)
    x_sec = xa[:, 16:56]
    x_svi = xa[:, 56:421]
    t_in = xa[:, 421:421 + input_length]

    # --- section / SVI feature branches --------------------------------------
    s = sigmoid(mxu(x_sec, nxt()) + nxt())       # sec1 + Sigmoid
    s = sigmoid(mxu(s, nxt()) + nxt())           # sec2 + Sigmoid
    v = leaky(mxu(x_svi, nxt()) + nxt())         # svi1 + LeakyReLU
    v = leaky(mxu(v, nxt()) + nxt())             # svi2 + LeakyReLU

    # concat-free all1: cat(s, v) @ W == s @ W_top + v @ W_bot
    x = leaky(mxu(s, nxt()) + mxu(v, nxt()) + nxt())
    x = leaky(mxu(x, nxt()) + nxt())             # all2 + LeakyReLU

    # --- GAT stack (dense adjacency softmax, heads = 1) -----------------------
    # selector [[0., 1.]]: picks the "src" score column and transposes the
    # (N,1) column into a (1,N) row with a tiny K=2 MXU op (no XLU transpose,
    # no transposed-RHS (N,F) matmul).
    src_sel = jax.lax.broadcasted_iota(jnp.int32, (1, 2), 1).astype(jnp.float32)

    def gat_layer(x, w, att, b):
        h = mxu(x, w)                            # (N, F)
        scores = mxu(h, att)                     # (N, 2): [a_dst | a_src]
        a_dst = scores[:, 0:1]                   # (N, 1)
        a_src = jax.lax.dot_general(             # (1, N)
            src_sel, scores, (((1,), (1,)), ((), ())),
            preferred_element_type=jnp.float32)
        e = a_dst + a_src                        # e[i, j] = a_dst[i] + a_src[j]
        e = jnp.where(e > 0, e, 0.2 * e)         # GATConv internal leaky (0.2)
        e = jnp.where(adj > 0, e, jnp.float32(-1e30))   # mask once (exp -> 0)
        e = e - jnp.max(e, axis=-1, keepdims=True)
        p = jnp.exp(e)
        alpha = p * pl.reciprocal(jnp.sum(p, axis=-1, keepdims=True), approx=True)
        y = mxu(alpha, h) + b
        return leaky(y)                          # act3 after every GAT layer

    x = gat_layer(x, nxt(), nxt(), nxt())        # gat1
    x = gat_layer(x, nxt(), nxt(), nxt())        # gat2
    x = gat_layer(x, nxt(), nxt(), nxt())        # gat3

    # --- 3-layer LSTM, single step, h0 = c0 = 0 -------------------------------
    # per-gate weights (i, g, o); the forget gate is dropped since f * c0 == 0.
    def lstm_cell(xin, wi, wg, wo, bi, bg, bo):
        i = sigmoid(mxu(xin, wi) + bi)
        g = jnp.tanh(mxu(xin, wg) + bg)
        o = sigmoid(mxu(xin, wo) + bo)
        return o * jnp.tanh(i * g)               # c1 = i * g

    h = t_in
    for _ in range(3):
        h = lstm_cell(h, nxt(), nxt(), nxt(), nxt(), nxt(), nxt())

    t = leaky(mxu(h, nxt()) + nxt())             # time1 + LeakyReLU
    t = leaky(mxu(t, nxt()) + nxt())             # time2 + LeakyReLU

    # concat-free linear1: cat(x, t) @ W == x @ W_x + t @ W_t
    z = jnp.maximum(mxu(x, nxt()) + mxu(t, nxt()) + nxt(), 0.0)   # linear1 + ReLU
    z = jnp.maximum(mxu(z, nxt()) + nxt(), 0.0)                   # linear2 + ReLU
    o_ref[...] = mxu(z, nxt()) + nxt()                            # linear3


def forward(params, x_all, adj, input_length):
    n = x_all.shape[0]
    kernel = functools.partial(_fused_forward_kernel, input_length)
    return pl.pallas_call(
        kernel,
        out_shape=jax.ShapeDtypeStruct((n, 1), jnp.float32),
        in_specs=[VMEM_SPEC] * (2 + len(params)),
        out_specs=VMEM_SPEC,
    )(x_all, adj, *params)


# ----------------------------------------------------------------------------
# Parameters (deterministic synthetic init; shapes from SFGAT_SCE_SE.__init__),
# flattened in the exact order the kernel consumes them.
# ----------------------------------------------------------------------------
def init_params(key, input_length):
    keys = iter(jax.random.split(key, 64))

    def u(shape, bound):
        return jax.random.uniform(next(keys), shape, jnp.float32, -bound, bound)

    def lin(fin, fout):
        bound = float(fin) ** -0.5
        return u((fin, fout), bound), u((1, fout), bound)

    def gat(fin, fout):
        bound = float(fin) ** -0.5
        w = u((fin, fout), bound)
        att = u((fout, 2), bound)                 # column 0: a_dst, column 1: a_src
        b = jnp.zeros((1, fout), jnp.float32)     # GATConv bias starts at zero
        return w, att, b

    def lstm(fin, hid):
        bound = float(hid) ** -0.5
        ws = [u((fin, hid), bound) for _ in range(3)]               # W_i, W_g, W_o
        bs = [u((1, hid), bound) + u((1, hid), bound) for _ in range(3)]  # b_ih + b_hh
        return (*ws, *bs)

    flat = []
    flat += lin(40, 128)                          # sec1
    flat += lin(128, 128)                         # sec2
    flat += lin(365, 128)                         # svi1
    flat += lin(128, 128)                         # svi2
    bound = float(256) ** -0.5                    # all1 (256,128) split in two halves
    flat += [u((128, 128), bound), u((128, 128), bound), u((1, 128), bound)]
    flat += lin(128, 128)                         # all2
    flat += gat(128, 128)                         # gat1
    flat += gat(128, 128)                         # gat2
    flat += gat(128, 64)                          # gat3
    flat += lstm(input_length, 64)                # lstm layer 0
    flat += lstm(64, 64)                          # lstm layer 1
    flat += lstm(64, 64)                          # lstm layer 2
    flat += lin(64, 64)                           # time1
    flat += lin(64, 64)                           # time2
    bound = float(128) ** -0.5                    # linear1 (128,64) split in two halves
    flat += [u((64, 64), bound), u((64, 64), bound), u((1, 64), bound)]
    flat += lin(64, 64)                           # linear2
    flat += lin(64, 1)                            # linear3
    return tuple(flat)


if __name__ == "__main__":
    input_length = 8
    num_nodes = 16

    key = jax.random.PRNGKey(0)
    k_feat, k_param = jax.random.split(key)

    # node features: (N, 421 + input_length)
    x_all = jax.random.normal(k_feat, (num_nodes, 421 + input_length), jnp.float32)

    # deterministic ring graph, both directions: edge_index (2, 2N)
    idx = jnp.arange(num_nodes)
    src = jnp.concatenate([idx, (idx + 1) % num_nodes])
    dst = jnp.concatenate([(idx + 1) % num_nodes, idx])
    edge_index = jnp.stack([src, dst])

    # dense adjacency mask: adj[i, j] = 1 iff edge j -> i, plus self loops
    adj = jnp.zeros((num_nodes, num_nodes), jnp.float32)
    adj = adj.at[edge_index[1], edge_index[0]].set(1.0)
    adj = jnp.maximum(adj, jnp.eye(num_nodes, dtype=jnp.float32))

    params = init_params(k_param, input_length)

    fwd = jax.jit(functools.partial(forward, input_length=input_length))
    out = fwd(params, x_all, adj)
    jax.block_until_ready(out)
    assert out.shape == (num_nodes, 1) and out.dtype == jnp.float32
    print("KERNEL_OK")
</pallas_src>

<mosaic_0001>
module attributes {stable_mosaic.version = 11 : i64} {
  func.func @_fused_forward_kernel(%arg0: memref<16x429xf32, #tpu.memory_space<vmem>>, %arg1: memref<16x16xf32, #tpu.memory_space<vmem>>, %arg2: memref<40x128xf32, #tpu.memory_space<vmem>>, %arg3: memref<1x128xf32, #tpu.memory_space<vmem>>, %arg4: memref<128x128xf32, #tpu.memory_space<vmem>>, %arg5: memref<1x128xf32, #tpu.memory_space<vmem>>, %arg6: memref<365x128xf32, #tpu.memory_space<vmem>>, %arg7: memref<1x128xf32, #tpu.memory_space<vmem>>, %arg8: memref<128x128xf32, #tpu.memory_space<vmem>>, %arg9: memref<1x128xf32, #tpu.memory_space<vmem>>, %arg10: memref<128x128xf32, #tpu.memory_space<vmem>>, %arg11: memref<128x128xf32, #tpu.memory_space<vmem>>, %arg12: memref<1x128xf32, #tpu.memory_space<vmem>>, %arg13: memref<128x128xf32, #tpu.memory_space<vmem>>, %arg14: memref<1x128xf32, #tpu.memory_space<vmem>>, %arg15: memref<128x128xf32, #tpu.memory_space<vmem>>, %arg16: memref<128x2xf32, #tpu.memory_space<vmem>>, %arg17: memref<1x128xf32, #tpu.memory_space<vmem>>, %arg18: memref<128x128xf32, #tpu.memory_space<vmem>>, %arg19: memref<128x2xf32, #tpu.memory_space<vmem>>, %arg20: memref<1x128xf32, #tpu.memory_space<vmem>>, %arg21: memref<128x64xf32, #tpu.memory_space<vmem>>, %arg22: memref<64x2xf32, #tpu.memory_space<vmem>>, %arg23: memref<1x64xf32, #tpu.memory_space<vmem>>, %arg24: memref<8x64xf32, #tpu.memory_space<vmem>>, %arg25: memref<8x64xf32, #tpu.memory_space<vmem>>, %arg26: memref<8x64xf32, #tpu.memory_space<vmem>>, %arg27: memref<1x64xf32, #tpu.memory_space<vmem>>, %arg28: memref<1x64xf32, #tpu.memory_space<vmem>>, %arg29: memref<1x64xf32, #tpu.memory_space<vmem>>, %arg30: memref<64x64xf32, #tpu.memory_space<vmem>>, %arg31: memref<64x64xf32, #tpu.memory_space<vmem>>, %arg32: memref<64x64xf32, #tpu.memory_space<vmem>>, %arg33: memref<1x64xf32, #tpu.memory_space<vmem>>, %arg34: memref<1x64xf32, #tpu.memory_space<vmem>>, %arg35: memref<1x64xf32, #tpu.memory_space<vmem>>, %arg36: memref<64x64xf32, #tpu.memory_space<vmem>>, %arg37: memref<64x64xf32, #tpu.memory_space<vmem>>, %arg38: memref<64x64xf32, #tpu.memory_space<vmem>>, %arg39: memref<1x64xf32, #tpu.memory_space<vmem>>, %arg40: memref<1x64xf32, #tpu.memory_space<vmem>>, %arg41: memref<1x64xf32, #tpu.memory_space<vmem>>, %arg42: memref<64x64xf32, #tpu.memory_space<vmem>>, %arg43: memref<1x64xf32, #tpu.memory_space<vmem>>, %arg44: memref<64x64xf32, #tpu.memory_space<vmem>>, %arg45: memref<1x64xf32, #tpu.memory_space<vmem>>, %arg46: memref<64x64xf32, #tpu.memory_space<vmem>>, %arg47: memref<64x64xf32, #tpu.memory_space<vmem>>, %arg48: memref<1x64xf32, #tpu.memory_space<vmem>>, %arg49: memref<64x64xf32, #tpu.memory_space<vmem>>, %arg50: memref<1x64xf32, #tpu.memory_space<vmem>>, %arg51: memref<64x1xf32, #tpu.memory_space<vmem>>, %arg52: memref<1x1xf32, #tpu.memory_space<vmem>>, %arg53: memref<16x1xf32, #tpu.memory_space<vmem>>) attributes {dimension_semantics = [], scalar_prefetch = 0 : i64, scratch_operands = 0 : i64, tpu.core_type = #tpu.core_type<tc>} {
    %c0 = arith.constant 0 : index
    %c0_0 = arith.constant 0 : index
    %0 = vector.load %arg0[%c0, %c0_0] : memref<16x429xf32, #tpu.memory_space<vmem>>, vector<16x429xf32>
    %c0_1 = arith.constant 0 : index
    %c0_2 = arith.constant 0 : index
    %1 = vector.load %arg1[%c0_1, %c0_2] : memref<16x16xf32, #tpu.memory_space<vmem>>, vector<16x16xf32>
    %2 = vector.extract_strided_slice %0 {offsets = [0, 16], sizes = [16, 40], strides = [1, 1]} : vector<16x429xf32> to vector<16x40xf32>
    %3 = vector.extract_strided_slice %0 {offsets = [0, 56], sizes = [16, 365], strides = [1, 1]} : vector<16x429xf32> to vector<16x365xf32>
    %4 = vector.extract_strided_slice %0 {offsets = [0, 421], sizes = [16, 8], strides = [1, 1]} : vector<16x429xf32> to vector<16x8xf32>
    %c0_3 = arith.constant 0 : index
    %c0_4 = arith.constant 0 : index
    %5 = vector.load %arg2[%c0_3, %c0_4] : memref<40x128xf32, #tpu.memory_space<vmem>>, vector<40x128xf32>
    %6 = arith.truncf %2 : vector<16x40xf32> to vector<16x40xbf16>
    %7 = arith.truncf %5 : vector<40x128xf32> to vector<40x128xbf16>
    %cst = arith.constant dense<0.000000e+00> : vector<16x128xf32>
    %8 = tpu.matmul %6, %7, %cst {dimension_numbers = #tpu.dot_dimension_numbers<[1], [0], [0], [1], [0, 0, 1, 1], [], []>} : vector<16x40xbf16>, vector<40x128xbf16>, vector<16x128xf32> -> vector<16x128xf32>
    %c0_5 = arith.constant 0 : index
    %c0_6 = arith.constant 0 : index
    %9 = vector.load %arg3[%c0_5, %c0_6] : memref<1x128xf32, #tpu.memory_space<vmem>>, vector<1x128xf32>
    %10 = vector.broadcast %9 : vector<1x128xf32> to vector<16x128xf32>
    %11 = arith.addf %8, %10 : vector<16x128xf32>
    %cst_7 = arith.constant 0.000000e+00 : f32
    %12 = vector.broadcast %cst_7 : f32 to vector<16x128xf32>
    %13 = arith.subf %12, %11 : vector<16x128xf32>
    %14 = math.exp %13 : vector<16x128xf32>
    %cst_8 = arith.constant 1.000000e+00 : f32
    %15 = vector.broadcast %cst_8 : f32 to vector<16x128xf32>
    %16 = arith.addf %15, %14 : vector<16x128xf32>
    %17 = tpu.reciprocal %16 {approx = true} : vector<16x128xf32> -> vector<16x128xf32>
    %c0_9 = arith.constant 0 : index
    %c0_10 = arith.constant 0 : index
    %18 = vector.load %arg4[%c0_9, %c0_10] : memref<128x128xf32, #tpu.memory_space<vmem>>, vector<128x128xf32>
    %19 = arith.truncf %17 : vector<16x128xf32> to vector<16x128xbf16>
    %20 = arith.truncf %18 : vector<128x128xf32> to vector<128x128xbf16>
    %cst_11 = arith.constant dense<0.000000e+00> : vector<16x128xf32>
    %21 = tpu.matmul %19, %20, %cst_11 {dimension_numbers = #tpu.dot_dimension_numbers<[1], [0], [0], [1], [0, 0, 1, 1], [], []>} : vector<16x128xbf16>, vector<128x128xbf16>, vector<16x128xf32> -> vector<16x128xf32>
    %c0_12 = arith.constant 0 : index
    %c0_13 = arith.constant 0 : index
    %22 = vector.load %arg5[%c0_12, %c0_13] : memref<1x128xf32, #tpu.memory_space<vmem>>, vector<1x128xf32>
    %23 = vector.broadcast %22 : vector<1x128xf32> to vector<16x128xf32>
    %24 = arith.addf %21, %23 : vector<16x128xf32>
    %cst_14 = arith.constant 0.000000e+00 : f32
    %25 = vector.broadcast %cst_14 : f32 to vector<16x128xf32>
    %26 = arith.subf %25, %24 : vector<16x128xf32>
    %27 = math.exp %26 : vector<16x128xf32>
    %cst_15 = arith.constant 1.000000e+00 : f32
    %28 = vector.broadcast %cst_15 : f32 to vector<16x128xf32>
    %29 = arith.addf %28, %27 : vector<16x128xf32>
    %30 = tpu.reciprocal %29 {approx = true} : vector<16x128xf32> -> vector<16x128xf32>
    %c0_16 = arith.constant 0 : index
    %c0_17 = arith.constant 0 : index
    %31 = vector.load %arg6[%c0_16, %c0_17] : memref<365x128xf32, #tpu.memory_space<vmem>>, vector<365x128xf32>
    %32 = arith.truncf %3 : vector<16x365xf32> to vector<16x365xbf16>
    %33 = arith.truncf %31 : vector<365x128xf32> to vector<365x128xbf16>
    %cst_18 = arith.constant dense<0.000000e+00> : vector<16x128xf32>
    %34 = tpu.matmul %32, %33, %cst_18 {dimension_numbers = #tpu.dot_dimension_numbers<[1], [0], [0], [1], [0, 0, 1, 1], [], []>} : vector<16x365xbf16>, vector<365x128xbf16>, vector<16x128xf32> -> vector<16x128xf32>
    %c0_19 = arith.constant 0 : index
    %c0_20 = arith.constant 0 : index
    %35 = vector.load %arg7[%c0_19, %c0_20] : memref<1x128xf32, #tpu.memory_space<vmem>>, vector<1x128xf32>
    %36 = vector.broadcast %35 : vector<1x128xf32> to vector<16x128xf32>
    %37 = arith.addf %34, %36 : vector<16x128xf32>
    %cst_21 = arith.constant 0.000000e+00 : f32
    %38 = vector.broadcast %cst_21 : f32 to vector<16x128xf32>
    %39 = arith.cmpf ogt, %37, %38 : vector<16x128xf32>
    %cst_22 = arith.constant 0.00999999977 : f32
    %40 = vector.broadcast %cst_22 : f32 to vector<16x128xf32>
    %41 = arith.mulf %40, %37 : vector<16x128xf32>
    %42 = arith.select %39, %37, %41 : vector<16x128xi1>, vector<16x128xf32>
    %c0_23 = arith.constant 0 : index
    %c0_24 = arith.constant 0 : index
    %43 = vector.load %arg8[%c0_23, %c0_24] : memref<128x128xf32, #tpu.memory_space<vmem>>, vector<128x128xf32>
    %44 = arith.truncf %42 : vector<16x128xf32> to vector<16x128xbf16>
    %45 = arith.truncf %43 : vector<128x128xf32> to vector<128x128xbf16>
    %cst_25 = arith.constant dense<0.000000e+00> : vector<16x128xf32>
    %46 = tpu.matmul %44, %45, %cst_25 {dimension_numbers = #tpu.dot_dimension_numbers<[1], [0], [0], [1], [0, 0, 1, 1], [], []>} : vector<16x128xbf16>, vector<128x128xbf16>, vector<16x128xf32> -> vector<16x128xf32>
    %c0_26 = arith.constant 0 : index
    %c0_27 = arith.constant 0 : index
    %47 = vector.load %arg9[%c0_26, %c0_27] : memref<1x128xf32, #tpu.memory_space<vmem>>, vector<1x128xf32>
    %48 = vector.broadcast %47 : vector<1x128xf32> to vector<16x128xf32>
    %49 = arith.addf %46, %48 : vector<16x128xf32>
    %cst_28 = arith.constant 0.000000e+00 : f32
    %50 = vector.broadcast %cst_28 : f32 to vector<16x128xf32>
    %51 = arith.cmpf ogt, %49, %50 : vector<16x128xf32>
    %cst_29 = arith.constant 0.00999999977 : f32
    %52 = vector.broadcast %cst_29 : f32 to vector<16x128xf32>
    %53 = arith.mulf %52, %49 : vector<16x128xf32>
    %54 = arith.select %51, %49, %53 : vector<16x128xi1>, vector<16x128xf32>
    %c0_30 = arith.constant 0 : index
    %c0_31 = arith.constant 0 : index
    %55 = vector.load %arg10[%c0_30, %c0_31] : memref<128x128xf32, #tpu.memory_space<vmem>>, vector<128x128xf32>
    %56 = arith.truncf %30 : vector<16x128xf32> to vector<16x128xbf16>
    %57 = arith.truncf %55 : vector<128x128xf32> to vector<128x128xbf16>
    %cst_32 = arith.constant dense<0.000000e+00> : vector<16x128xf32>
    %58 = tpu.matmul %56, %57, %cst_32 {dimension_numbers = #tpu.dot_dimension_numbers<[1], [0], [0], [1], [0, 0, 1, 1], [], []>} : vector<16x128xbf16>, vector<128x128xbf16>, vector<16x128xf32> -> vector<16x128xf32>
    %c0_33 = arith.constant 0 : index
    %c0_34 = arith.constant 0 : index
    %59 = vector.load %arg11[%c0_33, %c0_34] : memref<128x128xf32, #tpu.memory_space<vmem>>, vector<128x128xf32>
    %60 = arith.truncf %54 : vector<16x128xf32> to vector<16x128xbf16>
    %61 = arith.truncf %59 : vector<128x128xf32> to vector<128x128xbf16>
    %cst_35 = arith.constant dense<0.000000e+00> : vector<16x128xf32>
    %62 = tpu.matmul %60, %61, %cst_35 {dimension_numbers = #tpu.dot_dimension_numbers<[1], [0], [0], [1], [0, 0, 1, 1], [], []>} : vector<16x128xbf16>, vector<128x128xbf16>, vector<16x128xf32> -> vector<16x128xf32>
    %63 = arith.addf %58, %62 : vector<16x128xf32>
    %c0_36 = arith.constant 0 : index
    %c0_37 = arith.constant 0 : index
    %64 = vector.load %arg12[%c0_36, %c0_37] : memref<1x128xf32, #tpu.memory_space<vmem>>, vector<1x128xf32>
    %65 = vector.broadcast %64 : vector<1x128xf32> to vector<16x128xf32>
    %66 = arith.addf %63, %65 : vector<16x128xf32>
    %cst_38 = arith.constant 0.000000e+00 : f32
    %67 = vector.broadcast %cst_38 : f32 to vector<16x128xf32>
    %68 = arith.cmpf ogt, %66, %67 : vector<16x128xf32>
    %cst_39 = arith.constant 0.00999999977 : f32
    %69 = vector.broadcast %cst_39 : f32 to vector<16x128xf32>
    %70 = arith.mulf %69, %66 : vector<16x128xf32>
    %71 = arith.select %68, %66, %70 : vector<16x128xi1>, vector<16x128xf32>
    %c0_40 = arith.constant 0 : index
    %c0_41 = arith.constant 0 : index
    %72 = vector.load %arg13[%c0_40, %c0_41] : memref<128x128xf32, #tpu.memory_space<vmem>>, vector<128x128xf32>
    %73 = arith.truncf %71 : vector<16x128xf32> to vector<16x128xbf16>
    %74 = arith.truncf %72 : vector<128x128xf32> to vector<128x128xbf16>
    %cst_42 = arith.constant dense<0.000000e+00> : vector<16x128xf32>
    %75 = tpu.matmul %73, %74, %cst_42 {dimension_numbers = #tpu.dot_dimension_numbers<[1], [0], [0], [1], [0, 0, 1, 1], [], []>} : vector<16x128xbf16>, vector<128x128xbf16>, vector<16x128xf32> -> vector<16x128xf32>
    %c0_43 = arith.constant 0 : index
    %c0_44 = arith.constant 0 : index
    %76 = vector.load %arg14[%c0_43, %c0_44] : memref<1x128xf32, #tpu.memory_space<vmem>>, vector<1x128xf32>
    %77 = vector.broadcast %76 : vector<1x128xf32> to vector<16x128xf32>
    %78 = arith.addf %75, %77 : vector<16x128xf32>
    %cst_45 = arith.constant 0.000000e+00 : f32
    %79 = vector.broadcast %cst_45 : f32 to vector<16x128xf32>
    %80 = arith.cmpf ogt, %78, %79 : vector<16x128xf32>
    %cst_46 = arith.constant 0.00999999977 : f32
    %81 = vector.broadcast %cst_46 : f32 to vector<16x128xf32>
    %82 = arith.mulf %81, %78 : vector<16x128xf32>
    %83 = arith.select %80, %78, %82 : vector<16x128xi1>, vector<16x128xf32>
    %84 = tpu.iota {dimensions = array<i32: 1>} : vector<1x2xi32>
    %85 = arith.sitofp %84 : vector<1x2xi32> to vector<1x2xf32>
    %c0_47 = arith.constant 0 : index
    %c0_48 = arith.constant 0 : index
    %86 = vector.load %arg15[%c0_47, %c0_48] : memref<128x128xf32, #tpu.memory_space<vmem>>, vector<128x128xf32>
    %c0_49 = arith.constant 0 : index
    %c0_50 = arith.constant 0 : index
    %87 = vector.load %arg16[%c0_49, %c0_50] : memref<128x2xf32, #tpu.memory_space<vmem>>, vector<128x2xf32>
    %c0_51 = arith.constant 0 : index
    %c0_52 = arith.constant 0 : index
    %88 = vector.load %arg17[%c0_51, %c0_52] : memref<1x128xf32, #tpu.memory_space<vmem>>, vector<1x128xf32>
    %89 = arith.truncf %83 : vector<16x128xf32> to vector<16x128xbf16>
    %90 = arith.truncf %86 : vector<128x128xf32> to vector<128x128xbf16>
    %cst_53 = arith.constant dense<0.000000e+00> : vector<16x128xf32>
    %91 = tpu.matmul %89, %90, %cst_53 {dimension_numbers = #tpu.dot_dimension_numbers<[1], [0], [0], [1], [0, 0, 1, 1], [], []>} : vector<16x128xbf16>, vector<128x128xbf16>, vector<16x128xf32> -> vector<16x128xf32>
    %92 = arith.truncf %91 : vector<16x128xf32> to vector<16x128xbf16>
    %93 = arith.truncf %87 : vector<128x2xf32> to vector<128x2xbf16>
    %cst_54 = arith.constant dense<0.000000e+00> : vector<16x2xf32>
    %94 = tpu.matmul %92, %93, %cst_54 {dimension_numbers = #tpu.dot_dimension_numbers<[1], [0], [0], [1], [0, 0, 1, 1], [], []>} : vector<16x128xbf16>, vector<128x2xbf16>, vector<16x2xf32> -> vector<16x2xf32>
    %95 = vector.extract_strided_slice %94 {offsets = [0, 0], sizes = [16, 1], strides = [1, 1]} : vector<16x2xf32> to vector<16x1xf32>
    %cst_55 = arith.constant dense<0.000000e+00> : vector<1x16xf32>
    %96 = tpu.matmul %85, %94, %cst_55 {dimension_numbers = #tpu.dot_dimension_numbers<[1], [1], [0], [0], [0, 0, 1, 0], [], []>} : vector<1x2xf32>, vector<16x2xf32>, vector<1x16xf32> -> vector<1x16xf32>
    %97 = vector.broadcast %95 : vector<16x1xf32> to vector<16x16xf32>
    %98 = vector.broadcast %96 : vector<1x16xf32> to vector<16x16xf32>
    %99 = arith.addf %97, %98 : vector<16x16xf32>
    %cst_56 = arith.constant 0.000000e+00 : f32
    %100 = vector.broadcast %cst_56 : f32 to vector<16x16xf32>
    %101 = arith.cmpf ogt, %99, %100 : vector<16x16xf32>
    %cst_57 = arith.constant 2.000000e-01 : f32
    %102 = vector.broadcast %cst_57 : f32 to vector<16x16xf32>
    %103 = arith.mulf %102, %99 : vector<16x16xf32>
    %104 = arith.select %101, %99, %103 : vector<16x16xi1>, vector<16x16xf32>
    %cst_58 = arith.constant 0.000000e+00 : f32
    %105 = vector.broadcast %cst_58 : f32 to vector<16x16xf32>
    %106 = arith.cmpf ogt, %1, %105 : vector<16x16xf32>
    %cst_59 = arith.constant -1.000000e+30 : f32
    %107 = vector.broadcast %cst_59 : f32 to vector<16x16xf32>
    %108 = arith.select %106, %104, %107 : vector<16x16xi1>, vector<16x16xf32>
    %cst_60 = arith.constant dense<0xFF800000> : vector<16xf32>
    %109 = vector.multi_reduction <maximumf>, %108, %cst_60 [1] : vector<16x16xf32> to vector<16xf32>
    %110 = vector.shape_cast %109 : vector<16xf32> to vector<16x1xf32>
    %111 = vector.broadcast %110 : vector<16x1xf32> to vector<16x16xf32>
    %112 = arith.subf %108, %111 : vector<16x16xf32>
    %113 = math.exp %112 : vector<16x16xf32>
    %cst_61 = arith.constant dense<0.000000e+00> : vector<16xf32>
    %114 = vector.multi_reduction <add>, %113, %cst_61 [1] : vector<16x16xf32> to vector<16xf32>
    %115 = vector.shape_cast %114 : vector<16xf32> to vector<16x1xf32>
    %116 = tpu.reciprocal %115 {approx = true} : vector<16x1xf32> -> vector<16x1xf32>
    %117 = vector.broadcast %116 : vector<16x1xf32> to vector<16x16xf32>
    %118 = arith.mulf %113, %117 : vector<16x16xf32>
    %119 = arith.truncf %118 : vector<16x16xf32> to vector<16x16xbf16>
    %120 = arith.truncf %91 : vector<16x128xf32> to vector<16x128xbf16>
    %cst_62 = arith.constant dense<0.000000e+00> : vector<16x128xf32>
    %121 = tpu.matmul %119, %120, %cst_62 {dimension_numbers = #tpu.dot_dimension_numbers<[1], [0], [0], [1], [0, 0, 1, 1], [], []>} : vector<16x16xbf16>, vector<16x128xbf16>, vector<16x128xf32> -> vector<16x128xf32>
    %122 = vector.broadcast %88 : vector<1x128xf32> to vector<16x128xf32>
    %123 = arith.addf %121, %122 : vector<16x128xf32>
    %cst_63 = arith.constant 0.000000e+00 : f32
    %124 = vector.broadcast %cst_63 : f32 to vector<16x128xf32>
    %125 = arith.cmpf ogt, %123, %124 : vector<16x128xf32>
    %cst_64 = arith.constant 0.00999999977 : f32
    %126 = vector.broadcast %cst_64 : f32 to vector<16x128xf32>
    %127 = arith.mulf %126, %123 : vector<16x128xf32>
    %128 = arith.select %125, %123, %127 : vector<16x128xi1>, vector<16x128xf32>
    %c0_65 = arith.constant 0 : index
    %c0_66 = arith.constant 0 : index
    %129 = vector.load %arg18[%c0_65, %c0_66] : memref<128x128xf32, #tpu.memory_space<vmem>>, vector<128x128xf32>
    %c0_67 = arith.constant 0 : index
    %c0_68 = arith.constant 0 : index
    %130 = vector.load %arg19[%c0_67, %c0_68] : memref<128x2xf32, #tpu.memory_space<vmem>>, vector<128x2xf32>
    %c0_69 = arith.constant 0 : index
    %c0_70 = arith.constant 0 : index
    %131 = vector.load %arg20[%c0_69, %c0_70] : memref<1x128xf32, #tpu.memory_space<vmem>>, vector<1x128xf32>
    %132 = arith.truncf %128 : vector<16x128xf32> to vector<16x128xbf16>
    %133 = arith.truncf %129 : vector<128x128xf32> to vector<128x128xbf16>
    %cst_71 = arith.constant dense<0.000000e+00> : vector<16x128xf32>
    %134 = tpu.matmul %132, %133, %cst_71 {dimension_numbers = #tpu.dot_dimension_numbers<[1], [0], [0], [1], [0, 0, 1, 1], [], []>} : vector<16x128xbf16>, vector<128x128xbf16>, vector<16x128xf32> -> vector<16x128xf32>
    %135 = arith.truncf %134 : vector<16x128xf32> to vector<16x128xbf16>
    %136 = arith.truncf %130 : vector<128x2xf32> to vector<128x2xbf16>
    %cst_72 = arith.constant dense<0.000000e+00> : vector<16x2xf32>
    %137 = tpu.matmul %135, %136, %cst_72 {dimension_numbers = #tpu.dot_dimension_numbers<[1], [0], [0], [1], [0, 0, 1, 1], [], []>} : vector<16x128xbf16>, vector<128x2xbf16>, vector<16x2xf32> -> vector<16x2xf32>
    %138 = vector.extract_strided_slice %137 {offsets = [0, 0], sizes = [16, 1], strides = [1, 1]} : vector<16x2xf32> to vector<16x1xf32>
    %cst_73 = arith.constant dense<0.000000e+00> : vector<1x16xf32>
    %139 = tpu.matmul %85, %137, %cst_73 {dimension_numbers = #tpu.dot_dimension_numbers<[1], [1], [0], [0], [0, 0, 1, 0], [], []>} : vector<1x2xf32>, vector<16x2xf32>, vector<1x16xf32> -> vector<1x16xf32>
    %140 = vector.broadcast %138 : vector<16x1xf32> to vector<16x16xf32>
    %141 = vector.broadcast %139 : vector<1x16xf32> to vector<16x16xf32>
    %142 = arith.addf %140, %141 : vector<16x16xf32>
    %cst_74 = arith.constant 0.000000e+00 : f32
    %143 = vector.broadcast %cst_74 : f32 to vector<16x16xf32>
    %144 = arith.cmpf ogt, %142, %143 : vector<16x16xf32>
    %cst_75 = arith.constant 2.000000e-01 : f32
    %145 = vector.broadcast %cst_75 : f32 to vector<16x16xf32>
    %146 = arith.mulf %145, %142 : vector<16x16xf32>
    %147 = arith.select %144, %142, %146 : vector<16x16xi1>, vector<16x16xf32>
    %cst_76 = arith.constant 0.000000e+00 : f32
    %148 = vector.broadcast %cst_76 : f32 to vector<16x16xf32>
    %149 = arith.cmpf ogt, %1, %148 : vector<16x16xf32>
    %cst_77 = arith.constant -1.000000e+30 : f32
    %150 = vector.broadcast %cst_77 : f32 to vector<16x16xf32>
    %151 = arith.select %149, %147, %150 : vector<16x16xi1>, vector<16x16xf32>
    %cst_78 = arith.constant dense<0xFF800000> : vector<16xf32>
    %152 = vector.multi_reduction <maximumf>, %151, %cst_78 [1] : vector<16x16xf32> to vector<16xf32>
    %153 = vector.shape_cast %152 : vector<16xf32> to vector<16x1xf32>
    %154 = vector.broadcast %153 : vector<16x1xf32> to vector<16x16xf32>
    %155 = arith.subf %151, %154 : vector<16x16xf32>
    %156 = math.exp %155 : vector<16x16xf32>
    %cst_79 = arith.constant dense<0.000000e+00> : vector<16xf32>
    %157 = vector.multi_reduction <add>, %156, %cst_79 [1] : vector<16x16xf32> to vector<16xf32>
    %158 = vector.shape_cast %157 : vector<16xf32> to vector<16x1xf32>
    %159 = tpu.reciprocal %158 {approx = true} : vector<16x1xf32> -> vector<16x1xf32>
    %160 = vector.broadcast %159 : vector<16x1xf32> to vector<16x16xf32>
    %161 = arith.mulf %156, %160 : vector<16x16xf32>
    %162 = arith.truncf %161 : vector<16x16xf32> to vector<16x16xbf16>
    %163 = arith.truncf %134 : vector<16x128xf32> to vector<16x128xbf16>
    %cst_80 = arith.constant dense<0.000000e+00> : vector<16x128xf32>
    %164 = tpu.matmul %162, %163, %cst_80 {dimension_numbers = #tpu.dot_dimension_numbers<[1], [0], [0], [1], [0, 0, 1, 1], [], []>} : vector<16x16xbf16>, vector<16x128xbf16>, vector<16x128xf32> -> vector<16x128xf32>
    %165 = vector.broadcast %131 : vector<1x128xf32> to vector<16x128xf32>
    %166 = arith.addf %164, %165 : vector<16x128xf32>
    %cst_81 = arith.constant 0.000000e+00 : f32
    %167 = vector.broadcast %cst_81 : f32 to vector<16x128xf32>
    %168 = arith.cmpf ogt, %166, %167 : vector<16x128xf32>
    %cst_82 = arith.constant 0.00999999977 : f32
    %169 = vector.broadcast %cst_82 : f32 to vector<16x128xf32>
    %170 = arith.mulf %169, %166 : vector<16x128xf32>
    %171 = arith.select %168, %166, %170 : vector<16x128xi1>, vector<16x128xf32>
    %c0_83 = arith.constant 0 : index
    %c0_84 = arith.constant 0 : index
    %172 = vector.load %arg21[%c0_83, %c0_84] : memref<128x64xf32, #tpu.memory_space<vmem>>, vector<128x64xf32>
    %c0_85 = arith.constant 0 : index
    %c0_86 = arith.constant 0 : index
    %173 = vector.load %arg22[%c0_85, %c0_86] : memref<64x2xf32, #tpu.memory_space<vmem>>, vector<64x2xf32>
    %c0_87 = arith.constant 0 : index
    %c0_88 = arith.constant 0 : index
    %174 = vector.load %arg23[%c0_87, %c0_88] : memref<1x64xf32, #tpu.memory_space<vmem>>, vector<1x64xf32>
    %175 = arith.truncf %171 : vector<16x128xf32> to vector<16x128xbf16>
    %176 = arith.truncf %172 : vector<128x64xf32> to vector<128x64xbf16>
    %cst_89 = arith.constant dense<0.000000e+00> : vector<16x64xf32>
    %177 = tpu.matmul %175, %176, %cst_89 {dimension_numbers = #tpu.dot_dimension_numbers<[1], [0], [0], [1], [0, 0, 1, 1], [], []>} : vector<16x128xbf16>, vector<128x64xbf16>, vector<16x64xf32> -> vector<16x64xf32>
    %178 = arith.truncf %177 : vector<16x64xf32> to vector<16x64xbf16>
    %179 = arith.truncf %173 : vector<64x2xf32> to vector<64x2xbf16>
    %cst_90 = arith.constant dense<0.000000e+00> : vector<16x2xf32>
    %180 = tpu.matmul %178, %179, %cst_90 {dimension_numbers = #tpu.dot_dimension_numbers<[1], [0], [0], [1], [0, 0, 1, 1], [], []>} : vector<16x64xbf16>, vector<64x2xbf16>, vector<16x2xf32> -> vector<16x2xf32>
    %181 = vector.extract_strided_slice %180 {offsets = [0, 0], sizes = [16, 1], strides = [1, 1]} : vector<16x2xf32> to vector<16x1xf32>
    %cst_91 = arith.constant dense<0.000000e+00> : vector<1x16xf32>
    %182 = tpu.matmul %85, %180, %cst_91 {dimension_numbers = #tpu.dot_dimension_numbers<[1], [1], [0], [0], [0, 0, 1, 0], [], []>} : vector<1x2xf32>, vector<16x2xf32>, vector<1x16xf32> -> vector<1x16xf32>
    %183 = vector.broadcast %181 : vector<16x1xf32> to vector<16x16xf32>
    %184 = vector.broadcast %182 : vector<1x16xf32> to vector<16x16xf32>
    %185 = arith.addf %183, %184 : vector<16x16xf32>
    %cst_92 = arith.constant 0.000000e+00 : f32
    %186 = vector.broadcast %cst_92 : f32 to vector<16x16xf32>
    %187 = arith.cmpf ogt, %185, %186 : vector<16x16xf32>
    %cst_93 = arith.constant 2.000000e-01 : f32
    %188 = vector.broadcast %cst_93 : f32 to vector<16x16xf32>
    %189 = arith.mulf %188, %185 : vector<16x16xf32>
    %190 = arith.select %187, %185, %189 : vector<16x16xi1>, vector<16x16xf32>
    %cst_94 = arith.constant 0.000000e+00 : f32
    %191 = vector.broadcast %cst_94 : f32 to vector<16x16xf32>
    %192 = arith.cmpf ogt, %1, %191 : vector<16x16xf32>
    %cst_95 = arith.constant -1.000000e+30 : f32
    %193 = vector.broadcast %cst_95 : f32 to vector<16x16xf32>
    %194 = arith.select %192, %190, %193 : vector<16x16xi1>, vector<16x16xf32>
    %cst_96 = arith.constant dense<0xFF800000> : vector<16xf32>
    %195 = vector.multi_reduction <maximumf>, %194, %cst_96 [1] : vector<16x16xf32> to vector<16xf32>
    %196 = vector.shape_cast %195 : vector<16xf32> to vector<16x1xf32>
    %197 = vector.broadcast %196 : vector<16x1xf32> to vector<16x16xf32>
    %198 = arith.subf %194, %197 : vector<16x16xf32>
    %199 = math.exp %198 : vector<16x16xf32>
    %cst_97 = arith.constant dense<0.000000e+00> : vector<16xf32>
    %200 = vector.multi_reduction <add>, %199, %cst_97 [1] : vector<16x16xf32> to vector<16xf32>
    %201 = vector.shape_cast %200 : vector<16xf32> to vector<16x1xf32>
    %202 = tpu.reciprocal %201 {approx = true} : vector<16x1xf32> -> vector<16x1xf32>
    %203 = vector.broadcast %202 : vector<16x1xf32> to vector<16x16xf32>
    %204 = arith.mulf %199, %203 : vector<16x16xf32>
    %205 = arith.truncf %204 : vector<16x16xf32> to vector<16x16xbf16>
    %206 = arith.truncf %177 : vector<16x64xf32> to vector<16x64xbf16>
    %cst_98 = arith.constant dense<0.000000e+00> : vector<16x64xf32>
    %207 = tpu.matmul %205, %206, %cst_98 {dimension_numbers = #tpu.dot_dimension_numbers<[1], [0], [0], [1], [0, 0, 1, 1], [], []>} : vector<16x16xbf16>, vector<16x64xbf16>, vector<16x64xf32> -> vector<16x64xf32>
    %208 = vector.broadcast %174 : vector<1x64xf32> to vector<16x64xf32>
    %209 = arith.addf %207, %208 : vector<16x64xf32>
    %cst_99 = arith.constant 0.000000e+00 : f32
    %210 = vector.broadcast %cst_99 : f32 to vector<16x64xf32>
    %211 = arith.cmpf ogt, %209, %210 : vector<16x64xf32>
    %cst_100 = arith.constant 0.00999999977 : f32
    %212 = vector.broadcast %cst_100 : f32 to vector<16x64xf32>
    %213 = arith.mulf %212, %209 : vector<16x64xf32>
    %214 = arith.select %211, %209, %213 : vector<16x64xi1>, vector<16x64xf32>
    %c0_101 = arith.constant 0 : index
    %c0_102 = arith.constant 0 : index
    %215 = vector.load %arg24[%c0_101, %c0_102] : memref<8x64xf32, #tpu.memory_space<vmem>>, vector<8x64xf32>
    %c0_103 = arith.constant 0 : index
    %c0_104 = arith.constant 0 : index
    %216 = vector.load %arg25[%c0_103, %c0_104] : memref<8x64xf32, #tpu.memory_space<vmem>>, vector<8x64xf32>
    %c0_105 = arith.constant 0 : index
    %c0_106 = arith.constant 0 : index
    %217 = vector.load %arg26[%c0_105, %c0_106] : memref<8x64xf32, #tpu.memory_space<vmem>>, vector<8x64xf32>
    %c0_107 = arith.constant 0 : index
    %c0_108 = arith.constant 0 : index
    %218 = vector.load %arg27[%c0_107, %c0_108] : memref<1x64xf32, #tpu.memory_space<vmem>>, vector<1x64xf32>
    %c0_109 = arith.constant 0 : index
    %c0_110 = arith.constant 0 : index
    %219 = vector.load %arg28[%c0_109, %c0_110] : memref<1x64xf32, #tpu.memory_space<vmem>>, vector<1x64xf32>
    %c0_111 = arith.constant 0 : index
    %c0_112 = arith.constant 0 : index
    %220 = vector.load %arg29[%c0_111, %c0_112] : memref<1x64xf32, #tpu.memory_space<vmem>>, vector<1x64xf32>
    %221 = arith.truncf %4 : vector<16x8xf32> to vector<16x8xbf16>
    %222 = arith.truncf %215 : vector<8x64xf32> to vector<8x64xbf16>
    %cst_113 = arith.constant dense<0.000000e+00> : vector<16x64xf32>
    %223 = tpu.matmul %221, %222, %cst_113 {dimension_numbers = #tpu.dot_dimension_numbers<[1], [0], [0], [1], [0, 0, 1, 1], [], []>} : vector<16x8xbf16>, vector<8x64xbf16>, vector<16x64xf32> -> vector<16x64xf32>
    %224 = vector.broadcast %218 : vector<1x64xf32> to vector<16x64xf32>
    %225 = arith.addf %223, %224 : vector<16x64xf32>
    %cst_114 = arith.constant 0.000000e+00 : f32
    %226 = vector.broadcast %cst_114 : f32 to vector<16x64xf32>
    %227 = arith.subf %226, %225 : vector<16x64xf32>
    %228 = math.exp %227 : vector<16x64xf32>
    %cst_115 = arith.constant 1.000000e+00 : f32
    %229 = vector.broadcast %cst_115 : f32 to vector<16x64xf32>
    %230 = arith.addf %229, %228 : vector<16x64xf32>
    %231 = tpu.reciprocal %230 {approx = true} : vector<16x64xf32> -> vector<16x64xf32>
    %232 = arith.truncf %4 : vector<16x8xf32> to vector<16x8xbf16>
    %233 = arith.truncf %216 : vector<8x64xf32> to vector<8x64xbf16>
    %cst_116 = arith.constant dense<0.000000e+00> : vector<16x64xf32>
    %234 = tpu.matmul %232, %233, %cst_116 {dimension_numbers = #tpu.dot_dimension_numbers<[1], [0], [0], [1], [0, 0, 1, 1], [], []>} : vector<16x8xbf16>, vector<8x64xbf16>, vector<16x64xf32> -> vector<16x64xf32>
    %235 = vector.broadcast %219 : vector<1x64xf32> to vector<16x64xf32>
    %236 = arith.addf %234, %235 : vector<16x64xf32>
    %237 = math.tanh %236 : vector<16x64xf32>
    %238 = arith.truncf %4 : vector<16x8xf32> to vector<16x8xbf16>
    %239 = arith.truncf %217 : vector<8x64xf32> to vector<8x64xbf16>
    %cst_117 = arith.constant dense<0.000000e+00> : vector<16x64xf32>
    %240 = tpu.matmul %238, %239, %cst_117 {dimension_numbers = #tpu.dot_dimension_numbers<[1], [0], [0], [1], [0, 0, 1, 1], [], []>} : vector<16x8xbf16>, vector<8x64xbf16>, vector<16x64xf32> -> vector<16x64xf32>
    %241 = vector.broadcast %220 : vector<1x64xf32> to vector<16x64xf32>
    %242 = arith.addf %240, %241 : vector<16x64xf32>
    %cst_118 = arith.constant 0.000000e+00 : f32
    %243 = vector.broadcast %cst_118 : f32 to vector<16x64xf32>
    %244 = arith.subf %243, %242 : vector<16x64xf32>
    %245 = math.exp %244 : vector<16x64xf32>
    %cst_119 = arith.constant 1.000000e+00 : f32
    %246 = vector.broadcast %cst_119 : f32 to vector<16x64xf32>
    %247 = arith.addf %246, %245 : vector<16x64xf32>
    %248 = tpu.reciprocal %247 {approx = true} : vector<16x64xf32> -> vector<16x64xf32>
    %249 = arith.mulf %231, %237 : vector<16x64xf32>
    %250 = math.tanh %249 : vector<16x64xf32>
    %251 = arith.mulf %248, %250 : vector<16x64xf32>
    %c0_120 = arith.constant 0 : index
    %c0_121 = arith.constant 0 : index
    %252 = vector.load %arg30[%c0_120, %c0_121] : memref<64x64xf32, #tpu.memory_space<vmem>>, vector<64x64xf32>
    %c0_122 = arith.constant 0 : index
    %c0_123 = arith.constant 0 : index
    %253 = vector.load %arg31[%c0_122, %c0_123] : memref<64x64xf32, #tpu.memory_space<vmem>>, vector<64x64xf32>
    %c0_124 = arith.constant 0 : index
    %c0_125 = arith.constant 0 : index
    %254 = vector.load %arg32[%c0_124, %c0_125] : memref<64x64xf32, #tpu.memory_space<vmem>>, vector<64x64xf32>
    %c0_126 = arith.constant 0 : index
    %c0_127 = arith.constant 0 : index
    %255 = vector.load %arg33[%c0_126, %c0_127] : memref<1x64xf32, #tpu.memory_space<vmem>>, vector<1x64xf32>
    %c0_128 = arith.constant 0 : index
    %c0_129 = arith.constant 0 : index
    %256 = vector.load %arg34[%c0_128, %c0_129] : memref<1x64xf32, #tpu.memory_space<vmem>>, vector<1x64xf32>
    %c0_130 = arith.constant 0 : index
    %c0_131 = arith.constant 0 : index
    %257 = vector.load %arg35[%c0_130, %c0_131] : memref<1x64xf32, #tpu.memory_space<vmem>>, vector<1x64xf32>
    %258 = arith.truncf %251 : vector<16x64xf32> to vector<16x64xbf16>
    %259 = arith.truncf %252 : vector<64x64xf32> to vector<64x64xbf16>
    %cst_132 = arith.constant dense<0.000000e+00> : vector<16x64xf32>
    %260 = tpu.matmul %258, %259, %cst_132 {dimension_numbers = #tpu.dot_dimension_numbers<[1], [0], [0], [1], [0, 0, 1, 1], [], []>} : vector<16x64xbf16>, vector<64x64xbf16>, vector<16x64xf32> -> vector<16x64xf32>
    %261 = vector.broadcast %255 : vector<1x64xf32> to vector<16x64xf32>
    %262 = arith.addf %260, %261 : vector<16x64xf32>
    %cst_133 = arith.constant 0.000000e+00 : f32
    %263 = vector.broadcast %cst_133 : f32 to vector<16x64xf32>
    %264 = arith.subf %263, %262 : vector<16x64xf32>
    %265 = math.exp %264 : vector<16x64xf32>
    %cst_134 = arith.constant 1.000000e+00 : f32
    %266 = vector.broadcast %cst_134 : f32 to vector<16x64xf32>
    %267 = arith.addf %266, %265 : vector<16x64xf32>
    %268 = tpu.reciprocal %267 {approx = true} : vector<16x64xf32> -> vector<16x64xf32>
    %269 = arith.truncf %251 : vector<16x64xf32> to vector<16x64xbf16>
    %270 = arith.truncf %253 : vector<64x64xf32> to vector<64x64xbf16>
    %cst_135 = arith.constant dense<0.000000e+00> : vector<16x64xf32>
    %271 = tpu.matmul %269, %270, %cst_135 {dimension_numbers = #tpu.dot_dimension_numbers<[1], [0], [0], [1], [0, 0, 1, 1], [], []>} : vector<16x64xbf16>, vector<64x64xbf16>, vector<16x64xf32> -> vector<16x64xf32>
    %272 = vector.broadcast %256 : vector<1x64xf32> to vector<16x64xf32>
    %273 = arith.addf %271, %272 : vector<16x64xf32>
    %274 = math.tanh %273 : vector<16x64xf32>
    %275 = arith.truncf %251 : vector<16x64xf32> to vector<16x64xbf16>
    %276 = arith.truncf %254 : vector<64x64xf32> to vector<64x64xbf16>
    %cst_136 = arith.constant dense<0.000000e+00> : vector<16x64xf32>
    %277 = tpu.matmul %275, %276, %cst_136 {dimension_numbers = #tpu.dot_dimension_numbers<[1], [0], [0], [1], [0, 0, 1, 1], [], []>} : vector<16x64xbf16>, vector<64x64xbf16>, vector<16x64xf32> -> vector<16x64xf32>
    %278 = vector.broadcast %257 : vector<1x64xf32> to vector<16x64xf32>
    %279 = arith.addf %277, %278 : vector<16x64xf32>
    %cst_137 = arith.constant 0.000000e+00 : f32
    %280 = vector.broadcast %cst_137 : f32 to vector<16x64xf32>
    %281 = arith.subf %280, %279 : vector<16x64xf32>
    %282 = math.exp %281 : vector<16x64xf32>
    %cst_138 = arith.constant 1.000000e+00 : f32
    %283 = vector.broadcast %cst_138 : f32 to vector<16x64xf32>
    %284 = arith.addf %283, %282 : vector<16x64xf32>
    %285 = tpu.reciprocal %284 {approx = true} : vector<16x64xf32> -> vector<16x64xf32>
    %286 = arith.mulf %268, %274 : vector<16x64xf32>
    %287 = math.tanh %286 : vector<16x64xf32>
    %288 = arith.mulf %285, %287 : vector<16x64xf32>
    %c0_139 = arith.constant 0 : index
    %c0_140 = arith.constant 0 : index
    %289 = vector.load %arg36[%c0_139, %c0_140] : memref<64x64xf32, #tpu.memory_space<vmem>>, vector<64x64xf32>
    %c0_141 = arith.constant 0 : index
    %c0_142 = arith.constant 0 : index
    %290 = vector.load %arg37[%c0_141, %c0_142] : memref<64x64xf32, #tpu.memory_space<vmem>>, vector<64x64xf32>
    %c0_143 = arith.constant 0 : index
    %c0_144 = arith.constant 0 : index
    %291 = vector.load %arg38[%c0_143, %c0_144] : memref<64x64xf32, #tpu.memory_space<vmem>>, vector<64x64xf32>
    %c0_145 = arith.constant 0 : index
    %c0_146 = arith.constant 0 : index
    %292 = vector.load %arg39[%c0_145, %c0_146] : memref<1x64xf32, #tpu.memory_space<vmem>>, vector<1x64xf32>
    %c0_147 = arith.constant 0 : index
    %c0_148 = arith.constant 0 : index
    %293 = vector.load %arg40[%c0_147, %c0_148] : memref<1x64xf32, #tpu.memory_space<vmem>>, vector<1x64xf32>
    %c0_149 = arith.constant 0 : index
    %c0_150 = arith.constant 0 : index
    %294 = vector.load %arg41[%c0_149, %c0_150] : memref<1x64xf32, #tpu.memory_space<vmem>>, vector<1x64xf32>
    %295 = arith.truncf %288 : vector<16x64xf32> to vector<16x64xbf16>
    %296 = arith.truncf %289 : vector<64x64xf32> to vector<64x64xbf16>
    %cst_151 = arith.constant dense<0.000000e+00> : vector<16x64xf32>
    %297 = tpu.matmul %295, %296, %cst_151 {dimension_numbers = #tpu.dot_dimension_numbers<[1], [0], [0], [1], [0, 0, 1, 1], [], []>} : vector<16x64xbf16>, vector<64x64xbf16>, vector<16x64xf32> -> vector<16x64xf32>
    %298 = vector.broadcast %292 : vector<1x64xf32> to vector<16x64xf32>
    %299 = arith.addf %297, %298 : vector<16x64xf32>
    %cst_152 = arith.constant 0.000000e+00 : f32
    %300 = vector.broadcast %cst_152 : f32 to vector<16x64xf32>
    %301 = arith.subf %300, %299 : vector<16x64xf32>
    %302 = math.exp %301 : vector<16x64xf32>
    %cst_153 = arith.constant 1.000000e+00 : f32
    %303 = vector.broadcast %cst_153 : f32 to vector<16x64xf32>
    %304 = arith.addf %303, %302 : vector<16x64xf32>
    %305 = tpu.reciprocal %304 {approx = true} : vector<16x64xf32> -> vector<16x64xf32>
    %306 = arith.truncf %288 : vector<16x64xf32> to vector<16x64xbf16>
    %307 = arith.truncf %290 : vector<64x64xf32> to vector<64x64xbf16>
    %cst_154 = arith.constant dense<0.000000e+00> : vector<16x64xf32>
    %308 = tpu.matmul %306, %307, %cst_154 {dimension_numbers = #tpu.dot_dimension_numbers<[1], [0], [0], [1], [0, 0, 1, 1], [], []>} : vector<16x64xbf16>, vector<64x64xbf16>, vector<16x64xf32> -> vector<16x64xf32>
    %309 = vector.broadcast %293 : vector<1x64xf32> to vector<16x64xf32>
    %310 = arith.addf %308, %309 : vector<16x64xf32>
    %311 = math.tanh %310 : vector<16x64xf32>
    %312 = arith.truncf %288 : vector<16x64xf32> to vector<16x64xbf16>
    %313 = arith.truncf %291 : vector<64x64xf32> to vector<64x64xbf16>
    %cst_155 = arith.constant dense<0.000000e+00> : vector<16x64xf32>
    %314 = tpu.matmul %312, %313, %cst_155 {dimension_numbers = #tpu.dot_dimension_numbers<[1], [0], [0], [1], [0, 0, 1, 1], [], []>} : vector<16x64xbf16>, vector<64x64xbf16>, vector<16x64xf32> -> vector<16x64xf32>
    %315 = vector.broadcast %294 : vector<1x64xf32> to vector<16x64xf32>
    %316 = arith.addf %314, %315 : vector<16x64xf32>
    %cst_156 = arith.constant 0.000000e+00 : f32
    %317 = vector.broadcast %cst_156 : f32 to vector<16x64xf32>
    %318 = arith.subf %317, %316 : vector<16x64xf32>
    %319 = math.exp %318 : vector<16x64xf32>
    %cst_157 = arith.constant 1.000000e+00 : f32
    %320 = vector.broadcast %cst_157 : f32 to vector<16x64xf32>
    %321 = arith.addf %320, %319 : vector<16x64xf32>
    %322 = tpu.reciprocal %321 {approx = true} : vector<16x64xf32> -> vector<16x64xf32>
    %323 = arith.mulf %305, %311 : vector<16x64xf32>
    %324 = math.tanh %323 : vector<16x64xf32>
    %325 = arith.mulf %322, %324 : vector<16x64xf32>
    %c0_158 = arith.constant 0 : index
    %c0_159 = arith.constant 0 : index
    %326 = vector.load %arg42[%c0_158, %c0_159] : memref<64x64xf32, #tpu.memory_space<vmem>>, vector<64x64xf32>
    %327 = arith.truncf %325 : vector<16x64xf32> to vector<16x64xbf16>
    %328 = arith.truncf %326 : vector<64x64xf32> to vector<64x64xbf16>
    %cst_160 = arith.constant dense<0.000000e+00> : vector<16x64xf32>
    %329 = tpu.matmul %327, %328, %cst_160 {dimension_numbers = #tpu.dot_dimension_numbers<[1], [0], [0], [1], [0, 0, 1, 1], [], []>} : vector<16x64xbf16>, vector<64x64xbf16>, vector<16x64xf32> -> vector<16x64xf32>
    %c0_161 = arith.constant 0 : index
    %c0_162 = arith.constant 0 : index
    %330 = vector.load %arg43[%c0_161, %c0_162] : memref<1x64xf32, #tpu.memory_space<vmem>>, vector<1x64xf32>
    %331 = vector.broadcast %330 : vector<1x64xf32> to vector<16x64xf32>
    %332 = arith.addf %329, %331 : vector<16x64xf32>
    %cst_163 = arith.constant 0.000000e+00 : f32
    %333 = vector.broadcast %cst_163 : f32 to vector<16x64xf32>
    %334 = arith.cmpf ogt, %332, %333 : vector<16x64xf32>
    %cst_164 = arith.constant 0.00999999977 : f32
    %335 = vector.broadcast %cst_164 : f32 to vector<16x64xf32>
    %336 = arith.mulf %335, %332 : vector<16x64xf32>
    %337 = arith.select %334, %332, %336 : vector<16x64xi1>, vector<16x64xf32>
    %c0_165 = arith.constant 0 : index
    %c0_166 = arith.constant 0 : index
    %338 = vector.load %arg44[%c0_165, %c0_166] : memref<64x64xf32, #tpu.memory_space<vmem>>, vector<64x64xf32>
    %339 = arith.truncf %337 : vector<16x64xf32> to vector<16x64xbf16>
    %340 = arith.truncf %338 : vector<64x64xf32> to vector<64x64xbf16>
    %cst_167 = arith.constant dense<0.000000e+00> : vector<16x64xf32>
    %341 = tpu.matmul %339, %340, %cst_167 {dimension_numbers = #tpu.dot_dimension_numbers<[1], [0], [0], [1], [0, 0, 1, 1], [], []>} : vector<16x64xbf16>, vector<64x64xbf16>, vector<16x64xf32> -> vector<16x64xf32>
    %c0_168 = arith.constant 0 : index
    %c0_169 = arith.constant 0 : index
    %342 = vector.load %arg45[%c0_168, %c0_169] : memref<1x64xf32, #tpu.memory_space<vmem>>, vector<1x64xf32>
    %343 = vector.broadcast %342 : vector<1x64xf32> to vector<16x64xf32>
    %344 = arith.addf %341, %343 : vector<16x64xf32>
    %cst_170 = arith.constant 0.000000e+00 : f32
    %345 = vector.broadcast %cst_170 : f32 to vector<16x64xf32>
    %346 = arith.cmpf ogt, %344, %345 : vector<16x64xf32>
    %cst_171 = arith.constant 0.00999999977 : f32
    %347 = vector.broadcast %cst_171 : f32 to vector<16x64xf32>
    %348 = arith.mulf %347, %344 : vector<16x64xf32>
    %349 = arith.select %346, %344, %348 : vector<16x64xi1>, vector<16x64xf32>
    %c0_172 = arith.constant 0 : index
    %c0_173 = arith.constant 0 : index
    %350 = vector.load %arg46[%c0_172, %c0_173] : memref<64x64xf32, #tpu.memory_space<vmem>>, vector<64x64xf32>
    %351 = arith.truncf %214 : vector<16x64xf32> to vector<16x64xbf16>
    %352 = arith.truncf %350 : vector<64x64xf32> to vector<64x64xbf16>
    %cst_174 = arith.constant dense<0.000000e+00> : vector<16x64xf32>
    %353 = tpu.matmul %351, %352, %cst_174 {dimension_numbers = #tpu.dot_dimension_numbers<[1], [0], [0], [1], [0, 0, 1, 1], [], []>} : vector<16x64xbf16>, vector<64x64xbf16>, vector<16x64xf32> -> vector<16x64xf32>
    %c0_175 = arith.constant 0 : index
    %c0_176 = arith.constant 0 : index
    %354 = vector.load %arg47[%c0_175, %c0_176] : memref<64x64xf32, #tpu.memory_space<vmem>>, vector<64x64xf32>
    %355 = arith.truncf %349 : vector<16x64xf32> to vector<16x64xbf16>
    %356 = arith.truncf %354 : vector<64x64xf32> to vector<64x64xbf16>
    %cst_177 = arith.constant dense<0.000000e+00> : vector<16x64xf32>
    %357 = tpu.matmul %355, %356, %cst_177 {dimension_numbers = #tpu.dot_dimension_numbers<[1], [0], [0], [1], [0, 0, 1, 1], [], []>} : vector<16x64xbf16>, vector<64x64xbf16>, vector<16x64xf32> -> vector<16x64xf32>
    %358 = arith.addf %353, %357 : vector<16x64xf32>
    %c0_178 = arith.constant 0 : index
    %c0_179 = arith.constant 0 : index
    %359 = vector.load %arg48[%c0_178, %c0_179] : memref<1x64xf32, #tpu.memory_space<vmem>>, vector<1x64xf32>
    %360 = vector.broadcast %359 : vector<1x64xf32> to vector<16x64xf32>
    %361 = arith.addf %358, %360 : vector<16x64xf32>
    %cst_180 = arith.constant 0.000000e+00 : f32
    %362 = vector.broadcast %cst_180 : f32 to vector<16x64xf32>
    %363 = arith.maximumf %361, %362 : vector<16x64xf32>
    %c0_181 = arith.constant 0 : index
    %c0_182 = arith.constant 0 : index
    %364 = vector.load %arg49[%c0_181, %c0_182] : memref<64x64xf32, #tpu.memory_space<vmem>>, vector<64x64xf32>
    %365 = arith.truncf %363 : vector<16x64xf32> to vector<16x64xbf16>
    %366 = arith.truncf %364 : vector<64x64xf32> to vector<64x64xbf16>
    %cst_183 = arith.constant dense<0.000000e+00> : vector<16x64xf32>
    %367 = tpu.matmul %365, %366, %cst_183 {dimension_numbers = #tpu.dot_dimension_numbers<[1], [0], [0], [1], [0, 0, 1, 1], [], []>} : vector<16x64xbf16>, vector<64x64xbf16>, vector<16x64xf32> -> vector<16x64xf32>
    %c0_184 = arith.constant 0 : index
    %c0_185 = arith.constant 0 : index
    %368 = vector.load %arg50[%c0_184, %c0_185] : memref<1x64xf32, #tpu.memory_space<vmem>>, vector<1x64xf32>
    %369 = vector.broadcast %368 : vector<1x64xf32> to vector<16x64xf32>
    %370 = arith.addf %367, %369 : vector<16x64xf32>
    %cst_186 = arith.constant 0.000000e+00 : f32
    %371 = vector.broadcast %cst_186 : f32 to vector<16x64xf32>
    %372 = arith.maximumf %370, %371 : vector<16x64xf32>
    %c0_187 = arith.constant 0 : index
    %c0_188 = arith.constant 0 : index
    %373 = vector.load %arg51[%c0_187, %c0_188] : memref<64x1xf32, #tpu.memory_space<vmem>>, vector<64x1xf32>
    %374 = arith.truncf %372 : vector<16x64xf32> to vector<16x64xbf16>
    %375 = arith.truncf %373 : vector<64x1xf32> to vector<64x1xbf16>
    %cst_189 = arith.constant dense<0.000000e+00> : vector<16x1xf32>
    %376 = tpu.matmul %374, %375, %cst_189 {dimension_numbers = #tpu.dot_dimension_numbers<[1], [0], [0], [1], [0, 0, 1, 1], [], []>} : vector<16x64xbf16>, vector<64x1xbf16>, vector<16x1xf32> -> vector<16x1xf32>
    %c0_190 = arith.constant 0 : index
    %c0_191 = arith.constant 0 : index
    %377 = vector.load %arg52[%c0_190, %c0_191] : memref<1x1xf32, #tpu.memory_space<vmem>>, vector<1x1xf32>
    %378 = vector.broadcast %377 : vector<1x1xf32> to vector<16x1xf32>
    %379 = arith.addf %376, %378 : vector<16x1xf32>
    %c0_192 = arith.constant 0 : index
    %c0_193 = arith.constant 0 : index
    %380 = vector.load %arg53[%c0_192, %c0_193] : memref<16x1xf32, #tpu.memory_space<vmem>>, vector<16x1xf32>
    tpu.vector_store %arg53[%c0_192, %c0_193], %379 {strides = array<i32>} : memref<16x1xf32, #tpu.memory_space<vmem>>, vector<16x1xf32>,
    return
  }
}

</mosaic_0001>

<llo_original>
// kernel: forward.1
$region0: #{forward.1}
  #allocation0 [shape = 'u32[]', space=smem, size = 0x4, offset = 0x4, fixed_abs, tag = 'smem constant byte address 0x4 - core index']
  #allocation1 [shape = 'u32[144,128]{1,0:T(1,128)}', space=vmem, size = 0x12000, scoped, tag = 'internal scratch']
  #allocation2 [shape = 'f32[1,1]{1,0:T(1,128)S(1)}', space=vmem, size = 0x200, scoped, tag = 'scoped memory for forward.1']
  %s0 = inlined_call_operand.smem [shape: u32[54], index: -1, kind: input, shape index: {}]
  %s1 = sld [smem:[%s0]]
  %s2 = scalar_lea.smem %s0, 1
  %s3 = sld [smem:[%s2]]
  %s4 = scalar_lea.smem %s0, 2
  %s5 = sld [smem:[%s4]]
  %s6 = scalar_lea.smem %s0, 3
  %s7 = sld [smem:[%s6]]
  %s8 = scalar_lea.smem %s0, 4
  %s9 = sld [smem:[%s8]]
  %s10 = scalar_lea.smem %s0, 5
  %s11 = sld [smem:[%s10]]
  %s12 = scalar_lea.smem %s0, 6
  %s13 = sld [smem:[%s12]]
  %s14 = scalar_lea.smem %s0, 7
  %s15 = sld [smem:[%s14]]
  %s16 = scalar_lea.smem %s0, 8
  %s17 = sld [smem:[%s16]]
  %s18 = scalar_lea.smem %s0, 9
  %s19 = sld [smem:[%s18]]
  %s20 = scalar_lea.smem %s0, 10
  %s21 = sld [smem:[%s20]]
  %s22 = scalar_lea.smem %s0, 11
  %s23 = sld [smem:[%s22]]
  %s24 = scalar_lea.smem %s0, 12
  %s25 = sld [smem:[%s24]]
  %s26 = scalar_lea.smem %s0, 13
  %s27 = sld [smem:[%s26]]
  %s28 = scalar_lea.smem %s0, 14
  %s29 = sld [smem:[%s28]]
  %s30 = scalar_lea.smem %s0, 15
  %s31 = sld [smem:[%s30]]
  %s32 = scalar_lea.smem %s0, 16
  %s33 = sld [smem:[%s32]]
  %s34 = scalar_lea.smem %s0, 17
  %s35 = sld [smem:[%s34]]
  %s36 = scalar_lea.smem %s0, 18
  %s37 = sld [smem:[%s36]]
  %s38 = scalar_lea.smem %s0, 19
  %s39 = sld [smem:[%s38]]
  %s40 = scalar_lea.smem %s0, 20
  %s41 = sld [smem:[%s40]]
  %s42 = scalar_lea.smem %s0, 21
  %s43 = sld [smem:[%s42]]
  %s44 = scalar_lea.smem %s0, 22
  %s45 = sld [smem:[%s44]]
  %s46 = scalar_lea.smem %s0, 23
  %s47 = sld [smem:[%s46]]
  %s48 = scalar_lea.smem %s0, 24
  %s49 = sld [smem:[%s48]]
  %s50 = scalar_lea.smem %s0, 25
  %s51 = sld [smem:[%s50]]
  %s52 = scalar_lea.smem %s0, 26
  %s53 = sld [smem:[%s52]]
  %s54 = scalar_lea.smem %s0, 27
  %s55 = sld [smem:[%s54]]
  %s56 = scalar_lea.smem %s0, 28
  %s57 = sld [smem:[%s56]]
  %s58 = scalar_lea.smem %s0, 29
  %s59 = sld [smem:[%s58]]
  %s60 = scalar_lea.smem %s0, 30
  %s61 = sld [smem:[%s60]]
  %s62 = scalar_lea.smem %s0, 31
  %s63 = sld [smem:[%s62]]
  %s64 = scalar_lea.smem %s0, 32
  %s65 = sld [smem:[%s64]]
  %s66 = scalar_lea.smem %s0, 33
  %s67 = sld [smem:[%s66]]
  %s68 = scalar_lea.smem %s0, 34
  %s69 = sld [smem:[%s68]]
  %s70 = scalar_lea.smem %s0, 35
  %s71 = sld [smem:[%s70]]
  %s72 = scalar_lea.smem %s0, 36
  %s73 = sld [smem:[%s72]]
  %s74 = scalar_lea.smem %s0, 37
  %s75 = sld [smem:[%s74]]
  %s76 = scalar_lea.smem %s0, 38
  %s77 = sld [smem:[%s76]]
  %s78 = scalar_lea.smem %s0, 39
  %s79 = sld [smem:[%s78]]
  %s80 = scalar_lea.smem %s0, 40
  %s81 = sld [smem:[%s80]]
  %s82 = scalar_lea.smem %s0, 41
  %s83 = sld [smem:[%s82]]
  %s84 = scalar_lea.smem %s0, 42
  %s85 = sld [smem:[%s84]]
  %s86 = scalar_lea.smem %s0, 43
  %s87 = sld [smem:[%s86]]
  %s88 = scalar_lea.smem %s0, 44
  %s89 = sld [smem:[%s88]]
  %s90 = scalar_lea.smem %s0, 45
  %s91 = sld [smem:[%s90]]
  %s92 = scalar_lea.smem %s0, 46
  %s93 = sld [smem:[%s92]]
  %s94 = scalar_lea.smem %s0, 47
  %s95 = sld [smem:[%s94]]
  %s96 = scalar_lea.smem %s0, 48
  %s97 = sld [smem:[%s96]]
  %s98 = scalar_lea.smem %s0, 49
  %s99 = sld [smem:[%s98]]
  %s100 = scalar_lea.smem %s0, 50
  %s101 = sld [smem:[%s100]]
  %s102 = scalar_lea.smem %s0, 51
  %s103 = sld [smem:[%s102]]
  %s104 = scalar_lea.smem %s0, 52
  %s105 = sld [smem:[%s104]]
  %s106 = scalar_lea.smem %s0, 53
  %s107 = sld [smem:[%s106]]
  %s108 = sld [smem:[#allocation0]]
  $region382: #{forward.1} parent=0
    _
  %s110 = ssub.s32 1, %s108
  %s111 = scalar_select 0, %s110, %s108
  %v112 = vstv %s105
  %113 = vst [vmem:[#allocation2] sm:$0x1] %v112
  $region1: #{forward.1} parent=0
    #allocation3 [shape = 'u8[20480]{0}', space=vmem, size = 0x5000, scoped, tag = 'input window, operand 2, single buffered']
    #allocation4 [shape = 's32[1]{0}', space=sflag, size = 0x4, scoped, tag = 'scoped memory for forward.1']
    #allocation5 [shape = 'u8[512]{0}', space=vmem, size = 0x400, scoped, tag = 'input window, operand 3, single buffered']
    #allocation6 [shape = 's32[1]{0}', space=sflag, size = 0x4, scoped, tag = 'scoped memory for forward.1']
    #allocation7 [shape = 'u8[512]{0}', space=vmem, size = 0x400, scoped, tag = 'input window, operand 5, single buffered']
    #allocation8 [shape = 'u8[512]{0}', space=vmem, size = 0x400, scoped, tag = 'input window, operand 7, single buffered']
    #allocation9 [shape = 's32[1]{0}', space=sflag, size = 0x4, scoped, tag = 'scoped memory for forward.1']
    #allocation10 [shape = 'u8[65536]{0}', space=vmem, size = 0x10000, scoped, tag = 'input window, operand 8, single buffered']
    #allocation11 [shape = 'u8[512]{0}', space=vmem, size = 0x400, scoped, tag = 'input window, operand 9, single buffered']
    #allocation12 [shape = 's32[1]{0}', space=sflag, size = 0x4, scoped, tag = 'scoped memory for forward.1']
    #allocation13 [shape = 'u8[65536]{0}', space=vmem, size = 0x10000, scoped, tag = 'input window, operand 10, single buffered']
    #allocation14 [shape = 'u8[65536]{0}', space=vmem, size = 0x10000, scoped, tag = 'input window, operand 11, single buffered']
    #allocation15 [shape = 's32[1]{0}', space=sflag, size = 0x4, scoped, tag = 'scoped memory for forward.1']
    #allocation16 [shape = 'u8[512]{0}', space=vmem, size = 0x400, scoped, tag = 'input window, operand 12, single buffered']
    #allocation17 [shape = 'u8[512]{0}', space=vmem, size = 0x400, scoped, tag = 'input window, operand 14, single buffered']
    #allocation18 [shape = 's32[1]{0}', space=sflag, size = 0x4, scoped, tag = 'scoped memory for forward.1']
    #allocation19 [shape = 'u8[65536]{0}', space=vmem, size = 0x10000, scoped, tag = 'input window, operand 15, single buffered']
    #allocation20 [shape = 'u8[512]{0}', space=vmem, size = 0x400, scoped, tag = 'input window, operand 17, single buffered']
    #allocation21 [shape = 's32[1]{0}', space=sflag, size = 0x4, scoped, tag = 'scoped memory for forward.1']
    #allocation22 [shape = 'u8[65536]{0}', space=vmem, size = 0x10000, scoped, tag = 'input window, operand 18, single buffered']
    #allocation23 [shape = 'u8[512]{0}', space=vmem, size = 0x400, scoped, tag = 'input window, operand 20, single buffered']
    #allocation24 [shape = 's32[1]{0}', space=sflag, size = 0x4, scoped, tag = 'scoped memory for forward.1']
    #allocation25 [shape = 'u8[512]{0}', space=vmem, size = 0x400, scoped, tag = 'input window, operand 23, single buffered']
    #allocation26 [shape = 'u8[4096]{0}', space=vmem, size = 0x1000, scoped, tag = 'input window, operand 24, single buffered']
    #allocation27 [shape = 's32[1]{0}', space=sflag, size = 0x4, scoped, tag = 'scoped memory for forward.1']
    #allocation28 [shape = 'u8[4096]{0}', space=vmem, size = 0x1000, scoped, tag = 'input window, operand 25, single buffered']
    #allocation29 [shape = 'u8[4096]{0}', space=vmem, size = 0x1000, scoped, tag = 'input window, operand 26, single buffered']
    #allocation30 [shape = 's32[1]{0}', space=sflag, size = 0x4, scoped, tag = 'scoped memory for forward.1']
    #allocation31 [shape = 'u8[512]{0}', space=vmem, size = 0x400, scoped, tag = 'input window, operand 27, single buffered']
    #allocation32 [shape = 'u8[512]{0}', space=vmem, size = 0x400, scoped, tag = 'input window, operand 28, single buffered']
    #allocation33 [shape = 's32[1]{0}', space=sflag, size = 0x4, scoped, tag = 'scoped memory for forward.1']
    #allocation34 [shape = 'u8[512]{0}', space=vmem, size = 0x400, scoped, tag = 'input window, operand 29, single buffered']
    #allocation35 [shape = 'u8[32768]{0}', space=vmem, size = 0x8000, scoped, tag = 'input window, operand 30, single buffered']
    #allocation36 [shape = 's32[1]{0}', space=sflag, size = 0x4, scoped, tag = 'scoped memory for forward.1']
    #allocation37 [shape = 'u8[32768]{0}', space=vmem, size = 0x8000, scoped, tag = 'input window, operand 31, single buffered']
    #allocation38 [shape = 'u8[32768]{0}', space=vmem, size = 0x8000, scoped, tag = 'input window, operand 32, single buffered']
    #allocation39 [shape = 's32[1]{0}', space=sflag, size = 0x4, scoped, tag = 'scoped memory for forward.1']
    #allocation40 [shape = 'u8[512]{0}', space=vmem, size = 0x400, scoped, tag = 'input window, operand 33, single buffered']
    #allocation41 [shape = 'u8[512]{0}', space=vmem, size = 0x400, scoped, tag = 'input window, operand 34, single buffered']
    #allocation42 [shape = 's32[1]{0}', space=sflag, size = 0x4, scoped, tag = 'scoped memory for forward.1']
    #allocation43 [shape = 'u8[512]{0}', space=vmem, size = 0x400, scoped, tag = 'input window, operand 35, single buffered']
    #allocation44 [shape = 'u8[32768]{0}', space=vmem, size = 0x8000, scoped, tag = 'input window, operand 36, single buffered']
    #allocation45 [shape = 's32[1]{0}', space=sflag, size = 0x4, scoped, tag = 'scoped memory for forward.1']
    #allocation46 [shape = 'u8[32768]{0}', space=vmem, size = 0x8000, scoped, tag = 'input window, operand 37, single buffered']
    #allocation47 [shape = 'u8[32768]{0}', space=vmem, size = 0x8000, scoped, tag = 'input window, operand 38, single buffered']
    #allocation48 [shape = 's32[1]{0}', space=sflag, size = 0x4, scoped, tag = 'scoped memory for forward.1']
    #allocation49 [shape = 'u8[512]{0}', space=vmem, size = 0x400, scoped, tag = 'input window, operand 39, single buffered']
    #allocation50 [shape = 'u8[512]{0}', space=vmem, size = 0x400, scoped, tag = 'input window, operand 40, single buffered']
    #allocation51 [shape = 's32[1]{0}', space=sflag, size = 0x4, scoped, tag = 'scoped memory for forward.1']
    #allocation52 [shape = 'u8[512]{0}', space=vmem, size = 0x400, scoped, tag = 'input window, operand 41, single buffered']
    #allocation53 [shape = 'u8[32768]{0}', space=vmem, size = 0x8000, scoped, tag = 'input window, operand 42, single buffered']
    #allocation54 [shape = 's32[1]{0}', space=sflag, size = 0x4, scoped, tag = 'scoped memory for forward.1']
    #allocation55 [shape = 'u8[512]{0}', space=vmem, size = 0x400, scoped, tag = 'input window, operand 43, single buffered']
    #allocation56 [shape = 'u8[32768]{0}', space=vmem, size = 0x8000, scoped, tag = 'input window, operand 44, single buffered']
    #allocation57 [shape = 's32[1]{0}', space=sflag, size = 0x4, scoped, tag = 'scoped memory for forward.1']
    #allocation58 [shape = 'u8[512]{0}', space=vmem, size = 0x400, scoped, tag = 'input window, operand 45, single buffered']
    #allocation59 [shape = 'u8[32768]{0}', space=vmem, size = 0x8000, scoped, tag = 'input window, operand 46, single buffered']
    #allocation60 [shape = 's32[1]{0}', space=sflag, size = 0x4, scoped, tag = 'scoped memory for forward.1']
    #allocation61 [shape = 'u8[512]{0}', space=vmem, size = 0x400, scoped, tag = 'input window, operand 48, single buffered']
    #allocation62 [shape = 'u8[32768]{0}', space=vmem, size = 0x8000, scoped, tag = 'input window, operand 49, single buffered']
    #allocation63 [shape = 's32[1]{0}', space=sflag, size = 0x4, scoped, tag = 'scoped memory for forward.1']
    %114 = vsyncpa [#allocation4], 0
    %115 = vsyncpa [#allocation6], 0
    %116 = vsyncpa [#allocation9], 0
    %117 = vsyncpa [#allocation12], 0
    %118 = vsyncpa [#allocation15], 0
    %119 = vsyncpa [#allocation18], 0
    %120 = vsyncpa [#allocation21], 0
    %121 = vsyncpa [#allocation24], 0
    %122 = vsyncpa [#allocation27], 0
    %123 = vsyncpa [#allocation30], 0
    %124 = vsyncpa [#allocation33], 0
    %125 = vsyncpa [#allocation36], 0
    %126 = vsyncpa [#allocation39], 0
    %127 = vsyncpa [#allocation42], 0
    %128 = vsyncpa [#allocation45], 0
    %129 = vsyncpa [#allocation48], 0
    %130 = vsyncpa [#allocation51], 0
    %131 = vsyncpa [#allocation54], 0
    %132 = vsyncpa [#allocation57], 0
    %133 = vsyncpa [#allocation60], 0
    %134 = vsyncpa [#allocation63], 0
    // Predicated region
    $region2: #{forward.1} parent=1 // pred_check
      _
    $region3: #{forward.1} parent=1 // pred_check_branch
      %136 = sbr.rel (0) target = $region5
    $region4: #{forward.1} parent=1 // pred_region
      _
    $region5: #{forward.1} parent=1 // pred_fallthru
      _
    // Predicated region
    $region6: #{forward.1} parent=1 // pred_check
      _
    $region7: #{forward.1} parent=1 // pred_check_branch
      %138 = sbr.rel (0) target = $region9
    $region8: #{forward.1} parent=1 // pred_region
      _
    $region9: #{forward.1} parent=1 // pred_fallthru
      _
    // Predicated region
    $region10: #{forward.1} parent=1 // pred_check
      _
    $region11: #{forward.1} parent=1 // pred_check_branch
      %140 = sbr.rel (0) target = $region13
    $region12: #{forward.1} parent=1 // pred_region
      %s142 = ssub.s32 640, 640
      %143 = vsyncadd [#allocation4], %s142
      %s144 = sshll.u32 [#allocation3], 4
      %s145 = int_to_ptr.vmem [resolvable:$true] %s144
      %150 = dma.hbm_to_vmem [thread:$0]  %s5, 640, %s145, [#allocation4], 128, 128, 8
    $region13: #{forward.1} parent=1 // pred_fallthru
      _
    // Predicated region
    $region14: #{forward.1} parent=1 // pred_check
      _
    $region15: #{forward.1} parent=1 // pred_check_branch
      %152 = sbr.rel (0) target = $region17
    $region16: #{forward.1} parent=1 // pred_region
      %s154 = ssub.s32 16, 16
      %155 = vsyncadd [#allocation6], %s154
      %s157 = sshll.u32 [#allocation5], 4
      %s158 = int_to_ptr.vmem [resolvable:$true] %s157
      %160 = dma.hbm_to_vmem [thread:$0]  %s7, 16, %s158, [#allocation6]
    $region17: #{forward.1} parent=1 // pred_fallthru
      _
    // Predicated region
    $region18: #{forward.1} parent=1 // pred_check
      _
    $region19: #{forward.1} parent=1 // pred_check_branch
      %162 = sbr.rel (0) target = $region21
    $region20: #{forward.1} parent=1 // pred_region
      _
    $region21: #{forward.1} parent=1 // pred_fallthru
      _
    // Predicated region
    $region22: #{forward.1} parent=1 // pred_check
      _
    $region23: #{forward.1} parent=1 // pred_check_branch
      %164 = sbr.rel (0) target = $region25
    $region24: #{forward.1} parent=1 // pred_region
      %s166 = ssub.s32 16, 16
      %167 = vsyncadd [#allocation6], %s166
      %s169 = sshll.u32 [#allocation7], 4
      %s170 = int_to_ptr.vmem [resolvable:$true] %s169
      %172 = dma.hbm_to_vmem [thread:$0]  %s11, 16, %s170, [#allocation6]
    $region25: #{forward.1} parent=1 // pred_fallthru
      _
    // Predicated region
    $region26: #{forward.1} parent=1 // pred_check
      _
    $region27: #{forward.1} parent=1 // pred_check_branch
      %174 = sbr.rel (0) target = $region29
    $region28: #{forward.1} parent=1 // pred_region
      _
    $region29: #{forward.1} parent=1 // pred_fallthru
      _
    // Predicated region
    $region30: #{forward.1} parent=1 // pred_check
      _
    $region31: #{forward.1} parent=1 // pred_check_branch
      %176 = sbr.rel (0) target = $region33
    $region32: #{forward.1} parent=1 // pred_region
      %s178 = ssub.s32 16, 16
      %179 = vsyncadd [#allocation9], %s178
      %s181 = sshll.u32 [#allocation8], 4
      %s182 = int_to_ptr.vmem [resolvable:$true] %s181
      %184 = dma.hbm_to_vmem [thread:$0]  %s15, 16, %s182, [#allocation9]
    $region33: #{forward.1} parent=1 // pred_fallthru
      _
    // Predicated region
    $region34: #{forward.1} parent=1 // pred_check
      _
    $region35: #{forward.1} parent=1 // pred_check_branch
      %186 = sbr.rel (0) target = $region37
    $region36: #{forward.1} parent=1 // pred_region
      %s188 = ssub.s32 2048, 2048
      %189 = vsyncadd [#allocation9], %s188
      %s190 = sshll.u32 [#allocation10], 4
      %s191 = int_to_ptr.vmem [resolvable:$true] %s190
      %196 = dma.hbm_to_vmem [thread:$0]  %s17, 2048, %s191, [#allocation9], 128, 128, 8
    $region37: #{forward.1} parent=1 // pred_fallthru
      _
    // Predicated region
    $region38: #{forward.1} parent=1 // pred_check
      _
    $region39: #{forward.1} parent=1 // pred_check_branch
      %198 = sbr.rel (0) target = $region41
    $region40: #{forward.1} parent=1 // pred_region
      %s200 = ssub.s32 16, 16
      %201 = vsyncadd [#allocation12], %s200
      %s203 = sshll.u32 [#allocation11], 4
      %s204 = int_to_ptr.vmem [resolvable:$true] %s203
      %206 = dma.hbm_to_vmem [thread:$0]  %s19, 16, %s204, [#allocation12]
    $region41: #{forward.1} parent=1 // pred_fallthru
      _
    // Predicated region
    $region42: #{forward.1} parent=1 // pred_check
      _
    $region43: #{forward.1} parent=1 // pred_check_branch
      %208 = sbr.rel (0) target = $region45
    $region44: #{forward.1} parent=1 // pred_region
      %s210 = ssub.s32 2048, 2048
      %211 = vsyncadd [#allocation12], %s210
      %s212 = sshll.u32 [#allocation13], 4
      %s213 = int_to_ptr.vmem [resolvable:$true] %s212
      %218 = dma.hbm_to_vmem [thread:$0]  %s21, 2048, %s213, [#allocation12], 128, 128, 8
    $region45: #{forward.1} parent=1 // pred_fallthru
      _
    // Predicated region
    $region46: #{forward.1} parent=1 // pred_check
      _
    $region47: #{forward.1} parent=1 // pred_check_branch
      %220 = sbr.rel (0) target = $region49
    $region48: #{forward.1} parent=1 // pred_region
      %s222 = ssub.s32 2048, 2048
      %223 = vsyncadd [#allocation15], %s222
      %s224 = sshll.u32 [#allocation14], 4
      %s225 = int_to_ptr.vmem [resolvable:$true] %s224
      %230 = dma.hbm_to_vmem [thread:$0]  %s23, 2048, %s225, [#allocation15], 128, 128, 8
    $region49: #{forward.1} parent=1 // pred_fallthru
      _
    // Predicated region
    $region50: #{forward.1} parent=1 // pred_check
      _
    $region51: #{forward.1} parent=1 // pred_check_branch
      %232 = sbr.rel (0) target = $region53
    $region52: #{forward.1} parent=1 // pred_region
      %s234 = ssub.s32 16, 16
      %235 = vsyncadd [#allocation15], %s234
      %s237 = sshll.u32 [#allocation16], 4
      %s238 = int_to_ptr.vmem [resolvable:$true] %s237
      %240 = dma.hbm_to_vmem [thread:$0]  %s25, 16, %s238, [#allocation15]
    $region53: #{forward.1} parent=1 // pred_fallthru
      _
    // Predicated region
    $region54: #{forward.1} parent=1 // pred_check
      _
    $region55: #{forward.1} parent=1 // pred_check_branch
      %242 = sbr.rel (0) target = $region57
    $region56: #{forward.1} parent=1 // pred_region
      _
    $region57: #{forward.1} parent=1 // pred_fallthru
      _
    // Predicated region
    $region58: #{forward.1} parent=1 // pred_check
      _
    $region59: #{forward.1} parent=1 // pred_check_branch
      %244 = sbr.rel (0) target = $region61
    $region60: #{forward.1} parent=1 // pred_region
      %s246 = ssub.s32 16, 16
      %247 = vsyncadd [#allocation18], %s246
      %s249 = sshll.u32 [#allocation17], 4
      %s250 = int_to_ptr.vmem [resolvable:$true] %s249
      %252 = dma.hbm_to_vmem [thread:$0]  %s29, 16, %s250, [#allocation18]
    $region61: #{forward.1} parent=1 // pred_fallthru
      _
    // Predicated region
    $region62: #{forward.1} parent=1 // pred_check
      _
    $region63: #{forward.1} parent=1 // pred_check_branch
      %254 = sbr.rel (0) target = $region65
    $region64: #{forward.1} parent=1 // pred_region
      %s256 = ssub.s32 2048, 2048
      %257 = vsyncadd [#allocation18], %s256
      %s258 = sshll.u32 [#allocation19], 4
      %s259 = int_to_ptr.vmem [resolvable:$true] %s258
      %264 = dma.hbm_to_vmem [thread:$0]  %s31, 2048, %s259, [#allocation18], 128, 128, 8
    $region65: #{forward.1} parent=1 // pred_fallthru
      _
    // Predicated region
    $region66: #{forward.1} parent=1 // pred_check
      _
    $region67: #{forward.1} parent=1 // pred_check_branch
      %266 = sbr.rel (0) target = $region69
    $region68: #{forward.1} parent=1 // pred_region
      _
    $region69: #{forward.1} parent=1 // pred_fallthru
      _
    // Predicated region
    $region70: #{forward.1} parent=1 // pred_check
      _
    $region71: #{forward.1} parent=1 // pred_check_branch
      %268 = sbr.rel (0) target = $region73
    $region72: #{forward.1} parent=1 // pred_region
      %s270 = ssub.s32 16, 16
      %271 = vsyncadd [#allocation21], %s270
      %s273 = sshll.u32 [#allocation20], 4
      %s274 = int_to_ptr.vmem [resolvable:$true] %s273
      %276 = dma.hbm_to_vmem [thread:$0]  %s35, 16, %s274, [#allocation21]
    $region73: #{forward.1} parent=1 // pred_fallthru
      _
    // Predicated region
    $region74: #{forward.1} parent=1 // pred_check
      _
    $region75: #{forward.1} parent=1 // pred_check_branch
      %278 = sbr.rel (0) target = $region77
    $region76: #{forward.1} parent=1 // pred_region
      %s280 = ssub.s32 2048, 2048
      %281 = vsyncadd [#allocation21], %s280
      %s282 = sshll.u32 [#allocation22], 4
      %s283 = int_to_ptr.vmem [resolvable:$true] %s282
      %288 = dma.hbm_to_vmem [thread:$0]  %s37, 2048, %s283, [#allocation21], 128, 128, 8
    $region77: #{forward.1} parent=1 // pred_fallthru
      _
    // Predicated region
    $region78: #{forward.1} parent=1 // pred_check
      _
    $region79: #{forward.1} parent=1 // pred_check_branch
      %290 = sbr.rel (0) target = $region81
    $region80: #{forward.1} parent=1 // pred_region
      _
    $region81: #{forward.1} parent=1 // pred_fallthru
      _
    // Predicated region
    $region82: #{forward.1} parent=1 // pred_check
      _
    $region83: #{forward.1} parent=1 // pred_check_branch
      %292 = sbr.rel (0) target = $region85
    $region84: #{forward.1} parent=1 // pred_region
      %s294 = ssub.s32 16, 16
      %295 = vsyncadd [#allocation24], %s294
      %s297 = sshll.u32 [#allocation23], 4
      %s298 = int_to_ptr.vmem [resolvable:$true] %s297
      %300 = dma.hbm_to_vmem [thread:$0]  %s41, 16, %s298, [#allocation24]
    $region85: #{forward.1} parent=1 // pred_fallthru
      _
    // Predicated region
    $region86: #{forward.1} parent=1 // pred_check
      _
    $region87: #{forward.1} parent=1 // pred_check_branch
      %302 = sbr.rel (0) target = $region89
    $region88: #{forward.1} parent=1 // pred_region
      _
    $region89: #{forward.1} parent=1 // pred_fallthru
      _
    // Predicated region
    $region90: #{forward.1} parent=1 // pred_check
      _
    $region91: #{forward.1} parent=1 // pred_check_branch
      %304 = sbr.rel (0) target = $region93
    $region92: #{forward.1} parent=1 // pred_region
      _
    $region93: #{forward.1} parent=1 // pred_fallthru
      _
    // Predicated region
    $region94: #{forward.1} parent=1 // pred_check
      _
    $region95: #{forward.1} parent=1 // pred_check_branch
      %306 = sbr.rel (0) target = $region97
    $region96: #{forward.1} parent=1 // pred_region
      %s308 = ssub.s32 16, 16
      %309 = vsyncadd [#allocation24], %s308
      %s311 = sshll.u32 [#allocation25], 4
      %s312 = int_to_ptr.vmem [resolvable:$true] %s311
      %314 = dma.hbm_to_vmem [thread:$0]  %s47, 16, %s312, [#allocation24]
    $region97: #{forward.1} parent=1 // pred_fallthru
      _
    // Predicated region
    $region98: #{forward.1} parent=1 // pred_check
      _
    $region99: #{forward.1} parent=1 // pred_check_branch
      %316 = sbr.rel (0) target = $region101
    $region100: #{forward.1} parent=1 // pred_region
      %s318 = ssub.s32 128, 128
      %319 = vsyncadd [#allocation27], %s318
      %s321 = sshll.u32 [#allocation26], 4
      %s322 = int_to_ptr.vmem [resolvable:$true] %s321
      %324 = dma.hbm_to_vmem [thread:$0]  %s49, 128, %s322, [#allocation27]
    $region101: #{forward.1} parent=1 // pred_fallthru
      _
    // Predicated region
    $region102: #{forward.1} parent=1 // pred_check
      _
    $region103: #{forward.1} parent=1 // pred_check_branch
      %326 = sbr.rel (0) target = $region105
    $region104: #{forward.1} parent=1 // pred_region
      %s328 = ssub.s32 128, 128
      %329 = vsyncadd [#allocation27], %s328
      %s331 = sshll.u32 [#allocation28], 4
      %s332 = int_to_ptr.vmem [resolvable:$true] %s331
      %334 = dma.hbm_to_vmem [thread:$0]  %s51, 128, %s332, [#allocation27]
    $region105: #{forward.1} parent=1 // pred_fallthru
      _
    // Predicated region
    $region106: #{forward.1} parent=1 // pred_check
      _
    $region107: #{forward.1} parent=1 // pred_check_branch
      %336 = sbr.rel (0) target = $region109
    $region108: #{forward.1} parent=1 // pred_region
      %s338 = ssub.s32 128, 128
      %339 = vsyncadd [#allocation30], %s338
      %s341 = sshll.u32 [#allocation29], 4
      %s342 = int_to_ptr.vmem [resolvable:$true] %s341
      %344 = dma.hbm_to_vmem [thread:$0]  %s53, 128, %s342, [#allocation30]
    $region109: #{forward.1} parent=1 // pred_fallthru
      _
    // Predicated region
    $region110: #{forward.1} parent=1 // pred_check
      _
    $region111: #{forward.1} parent=1 // pred_check_branch
      %346 = sbr.rel (0) target = $region113
    $region112: #{forward.1} parent=1 // pred_region
      %s348 = ssub.s32 16, 16
      %349 = vsyncadd [#allocation30], %s348
      %s351 = sshll.u32 [#allocation31], 4
      %s352 = int_to_ptr.vmem [resolvable:$true] %s351
      %354 = dma.hbm_to_vmem [thread:$0]  %s55, 16, %s352, [#allocation30]
    $region113: #{forward.1} parent=1 // pred_fallthru
      _
    // Predicated region
    $region114: #{forward.1} parent=1 // pred_check
      _
    $region115: #{forward.1} parent=1 // pred_check_branch
      %356 = sbr.rel (0) target = $region117
    $region116: #{forward.1} parent=1 // pred_region
      %s358 = ssub.s32 16, 16
      %359 = vsyncadd [#allocation33], %s358
      %s361 = sshll.u32 [#allocation32], 4
      %s362 = int_to_ptr.vmem [resolvable:$true] %s361
      %364 = dma.hbm_to_vmem [thread:$0]  %s57, 16, %s362, [#allocation33]
    $region117: #{forward.1} parent=1 // pred_fallthru
      _
    // Predicated region
    $region118: #{forward.1} parent=1 // pred_check
      _
    $region119: #{forward.1} parent=1 // pred_check_branch
      %366 = sbr.rel (0) target = $region121
    $region120: #{forward.1} parent=1 // pred_region
      %s368 = ssub.s32 16, 16
      %369 = vsyncadd [#allocation33], %s368
      %s371 = sshll.u32 [#allocation34], 4
      %s372 = int_to_ptr.vmem [resolvable:$true] %s371
      %374 = dma.hbm_to_vmem [thread:$0]  %s59, 16, %s372, [#allocation33]
    $region121: #{forward.1} parent=1 // pred_fallthru
      _
    // Predicated region
    $region122: #{forward.1} parent=1 // pred_check
      _
    $region123: #{forward.1} parent=1 // pred_check_branch
      %376 = sbr.rel (0) target = $region125
    $region124: #{forward.1} parent=1 // pred_region
      %s378 = ssub.s32 1024, 1024
      %379 = vsyncadd [#allocation36], %s378
      %s380 = sshll.u32 [#allocation35], 4
      %s381 = int_to_ptr.vmem [resolvable:$true] %s380
      %386 = dma.hbm_to_vmem [thread:$0]  %s61, 1024, %s381, [#allocation36], 128, 128, 8
    $region125: #{forward.1} parent=1 // pred_fallthru
      _
    // Predicated region
    $region126: #{forward.1} parent=1 // pred_check
      _
    $region127: #{forward.1} parent=1 // pred_check_branch
      %388 = sbr.rel (0) target = $region129
    $region128: #{forward.1} parent=1 // pred_region
      %s390 = ssub.s32 1024, 1024
      %391 = vsyncadd [#allocation36], %s390
      %s392 = sshll.u32 [#allocation37], 4
      %s393 = int_to_ptr.vmem [resolvable:$true] %s392
      %398 = dma.hbm_to_vmem [thread:$0]  %s63, 1024, %s393, [#allocation36], 128, 128, 8
    $region129: #{forward.1} parent=1 // pred_fallthru
      _
    // Predicated region
    $region130: #{forward.1} parent=1 // pred_check
      _
    $region131: #{forward.1} parent=1 // pred_check_branch
      %400 = sbr.rel (0) target = $region133
    $region132: #{forward.1} parent=1 // pred_region
      %s402 = ssub.s32 1024, 1024
      %403 = vsyncadd [#allocation39], %s402
      %s404 = sshll.u32 [#allocation38], 4
      %s405 = int_to_ptr.vmem [resolvable:$true] %s404
      %410 = dma.hbm_to_vmem [thread:$0]  %s65, 1024, %s405, [#allocation39], 128, 128, 8
    $region133: #{forward.1} parent=1 // pred_fallthru
      _
    // Predicated region
    $region134: #{forward.1} parent=1 // pred_check
      _
    $region135: #{forward.1} parent=1 // pred_check_branch
      %412 = sbr.rel (0) target = $region137
    $region136: #{forward.1} parent=1 // pred_region
      %s414 = ssub.s32 16, 16
      %415 = vsyncadd [#allocation39], %s414
      %s417 = sshll.u32 [#allocation40], 4
      %s418 = int_to_ptr.vmem [resolvable:$true] %s417
      %420 = dma.hbm_to_vmem [thread:$0]  %s67, 16, %s418, [#allocation39]
    $region137: #{forward.1} parent=1 // pred_fallthru
      _
    // Predicated region
    $region138: #{forward.1} parent=1 // pred_check
      _
    $region139: #{forward.1} parent=1 // pred_check_branch
      %422 = sbr.rel (0) target = $region141
    $region140: #{forward.1} parent=1 // pred_region
      %s424 = ssub.s32 16, 16
      %425 = vsyncadd [#allocation42], %s424
      %s427 = sshll.u32 [#allocation41], 4
      %s428 = int_to_ptr.vmem [resolvable:$true] %s427
      %430 = dma.hbm_to_vmem [thread:$0]  %s69, 16, %s428, [#allocation42]
    $region141: #{forward.1} parent=1 // pred_fallthru
      _
    // Predicated region
    $region142: #{forward.1} parent=1 // pred_check
      _
    $region143: #{forward.1} parent=1 // pred_check_branch
      %432 = sbr.rel (0) target = $region145
    $region144: #{forward.1} parent=1 // pred_region
      %s434 = ssub.s32 16, 16
      %435 = vsyncadd [#allocation42], %s434
      %s437 = sshll.u32 [#allocation43], 4
      %s438 = int_to_ptr.vmem [resolvable:$true] %s437
      %440 = dma.hbm_to_vmem [thread:$0]  %s71, 16, %s438, [#allocation42]
    $region145: #{forward.1} parent=1 // pred_fallthru
      _
    // Predicated region
    $region146: #{forward.1} parent=1 // pred_check
      _
    $region147: #{forward.1} parent=1 // pred_check_branch
      %442 = sbr.rel (0) target = $region149
    $region148: #{forward.1} parent=1 // pred_region
      %s444 = ssub.s32 1024, 1024
      %445 = vsyncadd [#allocation45], %s444
      %s446 = sshll.u32 [#allocation44], 4
      %s447 = int_to_ptr.vmem [resolvable:$true] %s446
      %452 = dma.hbm_to_vmem [thread:$0]  %s73, 1024, %s447, [#allocation45], 128, 128, 8
    $region149: #{forward.1} parent=1 // pred_fallthru
      _
    // Predicated region
    $region150: #{forward.1} parent=1 // pred_check
      _
    $region151: #{forward.1} parent=1 // pred_check_branch
      %454 = sbr.rel (0) target = $region153
    $region152: #{forward.1} parent=1 // pred_region
      %s456 = ssub.s32 1024, 1024
      %457 = vsyncadd [#allocation45], %s456
      %s458 = sshll.u32 [#allocation46], 4
      %s459 = int_to_ptr.vmem [resolvable:$true] %s458
      %464 = dma.hbm_to_vmem [thread:$0]  %s75, 1024, %s459, [#allocation45], 128, 128, 8
    $region153: #{forward.1} parent=1 // pred_fallthru
      _
    // Predicated region
    $region154: #{forward.1} parent=1 // pred_check
      _
    $region155: #{forward.1} parent=1 // pred_check_branch
      %466 = sbr.rel (0) target = $region157
    $region156: #{forward.1} parent=1 // pred_region
      %s468 = ssub.s32 1024, 1024
      %469 = vsyncadd [#allocation48], %s468
      %s470 = sshll.u32 [#allocation47], 4
      %s471 = int_to_ptr.vmem [resolvable:$true] %s470
      %476 = dma.hbm_to_vmem [thread:$0]  %s77, 1024, %s471, [#allocation48], 128, 128, 8
    $region157: #{forward.1} parent=1 // pred_fallthru
      _
    // Predicated region
    $region158: #{forward.1} parent=1 // pred_check
      _
    $region159: #{forward.1} parent=1 // pred_check_branch
      %478 = sbr.rel (0) target = $region161
    $region160: #{forward.1} parent=1 // pred_region
      %s480 = ssub.s32 16, 16
      %481 = vsyncadd [#allocation48], %s480
      %s483 = sshll.u32 [#allocation49], 4
      %s484 = int_to_ptr.vmem [resolvable:$true] %s483
      %486 = dma.hbm_to_vmem [thread:$0]  %s79, 16, %s484, [#allocation48]
    $region161: #{forward.1} parent=1 // pred_fallthru
      _
    // Predicated region
    $region162: #{forward.1} parent=1 // pred_check
      _
    $region163: #{forward.1} parent=1 // pred_check_branch
      %488 = sbr.rel (0) target = $region165
    $region164: #{forward.1} parent=1 // pred_region
      %s490 = ssub.s32 16, 16
      %491 = vsyncadd [#allocation51], %s490
      %s493 = sshll.u32 [#allocation50], 4
      %s494 = int_to_ptr.vmem [resolvable:$true] %s493
      %496 = dma.hbm_to_vmem [thread:$0]  %s81, 16, %s494, [#allocation51]
    $region165: #{forward.1} parent=1 // pred_fallthru
      _
    // Predicated region
    $region166: #{forward.1} parent=1 // pred_check
      _
    $region167: #{forward.1} parent=1 // pred_check_branch
      %498 = sbr.rel (0) target = $region169
    $region168: #{forward.1} parent=1 // pred_region
      %s500 = ssub.s32 16, 16
      %501 = vsyncadd [#allocation51], %s500
      %s503 = sshll.u32 [#allocation52], 4
      %s504 = int_to_ptr.vmem [resolvable:$true] %s503
      %506 = dma.hbm_to_vmem [thread:$0]  %s83, 16, %s504, [#allocation51]
    $region169: #{forward.1} parent=1 // pred_fallthru
      _
    // Predicated region
    $region170: #{forward.1} parent=1 // pred_check
      _
    $region171: #{forward.1} parent=1 // pred_check_branch
      %508 = sbr.rel (0) target = $region173
    $region172: #{forward.1} parent=1 // pred_region
      %s510 = ssub.s32 1024, 1024
      %511 = vsyncadd [#allocation54], %s510
      %s512 = sshll.u32 [#allocation53], 4
      %s513 = int_to_ptr.vmem [resolvable:$true] %s512
      %518 = dma.hbm_to_vmem [thread:$0]  %s85, 1024, %s513, [#allocation54], 128, 128, 8
    $region173: #{forward.1} parent=1 // pred_fallthru
      _
    // Predicated region
    $region174: #{forward.1} parent=1 // pred_check
      _
    $region175: #{forward.1} parent=1 // pred_check_branch
      %520 = sbr.rel (0) target = $region177
    $region176: #{forward.1} parent=1 // pred_region
      %s522 = ssub.s32 16, 16
      %523 = vsyncadd [#allocation54], %s522
      %s525 = sshll.u32 [#allocation55], 4
      %s526 = int_to_ptr.vmem [resolvable:$true] %s525
      %528 = dma.hbm_to_vmem [thread:$0]  %s87, 16, %s526, [#allocation54]
    $region177: #{forward.1} parent=1 // pred_fallthru
      _
    // Predicated region
    $region178: #{forward.1} parent=1 // pred_check
      _
    $region179: #{forward.1} parent=1 // pred_check_branch
      %530 = sbr.rel (0) target = $region181
    $region180: #{forward.1} parent=1 // pred_region
      %s532 = ssub.s32 1024, 1024
      %533 = vsyncadd [#allocation57], %s532
      %s534 = sshll.u32 [#allocation56], 4
      %s535 = int_to_ptr.vmem [resolvable:$true] %s534
      %540 = dma.hbm_to_vmem [thread:$0]  %s89, 1024, %s535, [#allocation57], 128, 128, 8
    $region181: #{forward.1} parent=1 // pred_fallthru
      _
    // Predicated region
    $region182: #{forward.1} parent=1 // pred_check
      _
    $region183: #{forward.1} parent=1 // pred_check_branch
      %542 = sbr.rel (0) target = $region185
    $region184: #{forward.1} parent=1 // pred_region
      %s544 = ssub.s32 16, 16
      %545 = vsyncadd [#allocation57], %s544
      %s547 = sshll.u32 [#allocation58], 4
      %s548 = int_to_ptr.vmem [resolvable:$true] %s547
      %550 = dma.hbm_to_vmem [thread:$0]  %s91, 16, %s548, [#allocation57]
    $region185: #{forward.1} parent=1 // pred_fallthru
      _
    // Predicated region
    $region186: #{forward.1} parent=1 // pred_check
      _
    $region187: #{forward.1} parent=1 // pred_check_branch
      %552 = sbr.rel (0) target = $region189
    $region188: #{forward.1} parent=1 // pred_region
      %s554 = ssub.s32 1024, 1024
      %555 = vsyncadd [#allocation60], %s554
      %s556 = sshll.u32 [#allocation59], 4
      %s557 = int_to_ptr.vmem [resolvable:$true] %s556
      %562 = dma.hbm_to_vmem [thread:$0]  %s93, 1024, %s557, [#allocation60], 128, 128, 8
    $region189: #{forward.1} parent=1 // pred_fallthru
      _
    // Predicated region
    $region190: #{forward.1} parent=1 // pred_check
      _
    $region191: #{forward.1} parent=1 // pred_check_branch
      %564 = sbr.rel (0) target = $region193
    $region192: #{forward.1} parent=1 // pred_region
      _
    $region193: #{forward.1} parent=1 // pred_fallthru
      _
    // Predicated region
    $region194: #{forward.1} parent=1 // pred_check
      _
    $region195: #{forward.1} parent=1 // pred_check_branch
      %566 = sbr.rel (0) target = $region197
    $region196: #{forward.1} parent=1 // pred_region
      %s568 = ssub.s32 16, 16
      %569 = vsyncadd [#allocation60], %s568
      %s571 = sshll.u32 [#allocation61], 4
      %s572 = int_to_ptr.vmem [resolvable:$true] %s571
      %574 = dma.hbm_to_vmem [thread:$0]  %s97, 16, %s572, [#allocation60]
    $region197: #{forward.1} parent=1 // pred_fallthru
      _
    // Predicated region
    $region198: #{forward.1} parent=1 // pred_check
      _
    $region199: #{forward.1} parent=1 // pred_check_branch
      %576 = sbr.rel (0) target = $region201
    $region200: #{forward.1} parent=1 // pred_region
      %s578 = ssub.s32 1024, 1024
      %579 = vsyncadd [#allocation63], %s578
      %s580 = sshll.u32 [#allocation62], 4
      %s581 = int_to_ptr.vmem [resolvable:$true] %s580
      %586 = dma.hbm_to_vmem [thread:$0]  %s99, 1024, %s581, [#allocation63], 128, 128, 8
    $region201: #{forward.1} parent=1 // pred_fallthru
      _
    // Predicated region
    $region202: #{forward.1} parent=1 // pred_check
      _
    $region203: #{forward.1} parent=1 // pred_check_branch
      %588 = sbr.rel (0) target = $region205
    $region204: #{forward.1} parent=1 // pred_region
      _
    $region205: #{forward.1} parent=1 // pred_fallthru
      _
    // Predicated region
    $region206: #{forward.1} parent=1 // pred_check
      _
    $region207: #{forward.1} parent=1 // pred_check_branch
      %590 = sbr.rel (0) target = $region209
    $region208: #{forward.1} parent=1 // pred_region
      _
    $region209: #{forward.1} parent=1 // pred_fallthru
      _
    // Predicated region
    $region210: #{forward.1} parent=1 // pred_check
      _
    $region211: #{forward.1} parent=1 // pred_check_branch
      %592 = sbr.rel (0) target = $region213
    $region212: #{forward.1} parent=1 // pred_region
      _
    $region213: #{forward.1} parent=1 // pred_fallthru
      _
    // Predicated region
    $region214: #{forward.1} parent=1 // pred_check
      _
    $region215: #{forward.1} parent=1 // pred_check_branch
      %594 = sbr.rel (0) target = $region217
    $region216: #{forward.1} parent=1 // pred_region
      %595 = dma.done [#allocation4], 640
    $region217: #{forward.1} parent=1 // pred_fallthru
      _
    // Predicated region
    $region218: #{forward.1} parent=1 // pred_check
      _
    $region219: #{forward.1} parent=1 // pred_check_branch
      %597 = sbr.rel (0) target = $region221
    $region220: #{forward.1} parent=1 // pred_region
      %598 = dma.done [#allocation6], 16
    $region221: #{forward.1} parent=1 // pred_fallthru
      _
    // Predicated region
    $region222: #{forward.1} parent=1 // pred_check
      _
    $region223: #{forward.1} parent=1 // pred_check_branch
      %600 = sbr.rel (0) target = $region225
    $region224: #{forward.1} parent=1 // pred_region
      %601 = dma.done [#allocation6], 16
    $region225: #{forward.1} parent=1 // pred_fallthru
      _
    // Predicated region
    $region226: #{forward.1} parent=1 // pred_check
      _
    $region227: #{forward.1} parent=1 // pred_check_branch
      %603 = sbr.rel (0) target = $region229
    $region228: #{forward.1} parent=1 // pred_region
      %604 = dma.done [#allocation9], 16
    $region229: #{forward.1} parent=1 // pred_fallthru
      _
    // Predicated region
    $region230: #{forward.1} parent=1 // pred_check
      _
    $region231: #{forward.1} parent=1 // pred_check_branch
      %606 = sbr.rel (0) target = $region233
    $region232: #{forward.1} parent=1 // pred_region
      %607 = dma.done [#allocation9], 2048
    $region233: #{forward.1} parent=1 // pred_fallthru
      _
    // Predicated region
    $region234: #{forward.1} parent=1 // pred_check
      _
    $region235: #{forward.1} parent=1 // pred_check_branch
      %609 = sbr.rel (0) target = $region237
    $region236: #{forward.1} parent=1 // pred_region
      %610 = dma.done [#allocation12], 16
    $region237: #{forward.1} parent=1 // pred_fallthru
      _
    // Predicated region
    $region238: #{forward.1} parent=1 // pred_check
      _
    $region239: #{forward.1} parent=1 // pred_check_branch
      %612 = sbr.rel (0) target = $region241
    $region240: #{forward.1} parent=1 // pred_region
      %613 = dma.done [#allocation12], 2048
    $region241: #{forward.1} parent=1 // pred_fallthru
      _
    // Predicated region
    $region242: #{forward.1} parent=1 // pred_check
      _
    $region243: #{forward.1} parent=1 // pred_check_branch
      %615 = sbr.rel (0) target = $region245
    $region244: #{forward.1} parent=1 // pred_region
      %616 = dma.done [#allocation15], 2048
    $region245: #{forward.1} parent=1 // pred_fallthru
      _
    // Predicated region
    $region246: #{forward.1} parent=1 // pred_check
      _
    $region247: #{forward.1} parent=1 // pred_check_branch
      %618 = sbr.rel (0) target = $region249
    $region248: #{forward.1} parent=1 // pred_region
      %619 = dma.done [#allocation15], 16
    $region249: #{forward.1} parent=1 // pred_fallthru
      _
    // Predicated region
    $region250: #{forward.1} parent=1 // pred_check
      _
    $region251: #{forward.1} parent=1 // pred_check_branch
      %621 = sbr.rel (0) target = $region253
    $region252: #{forward.1} parent=1 // pred_region
      %622 = dma.done [#allocation18], 16
    $region253: #{forward.1} parent=1 // pred_fallthru
      _
    // Predicated region
    $region254: #{forward.1} parent=1 // pred_check
      _
    $region255: #{forward.1} parent=1 // pred_check_branch
      %624 = sbr.rel (0) target = $region257
    $region256: #{forward.1} parent=1 // pred_region
      %625 = dma.done [#allocation18], 2048
    $region257: #{forward.1} parent=1 // pred_fallthru
      _
    // Predicated region
    $region258: #{forward.1} parent=1 // pred_check
      _
    $region259: #{forward.1} parent=1 // pred_check_branch
      %627 = sbr.rel (0) target = $region261
    $region260: #{forward.1} parent=1 // pred_region
      %628 = dma.done [#allocation21], 16
    $region261: #{forward.1} parent=1 // pred_fallthru
      _
    // Predicated region
    $region262: #{forward.1} parent=1 // pred_check
      _
    $region263: #{forward.1} parent=1 // pred_check_branch
      %630 = sbr.rel (0) target = $region265
    $region264: #{forward.1} parent=1 // pred_region
      %631 = dma.done [#allocation21], 2048
    $region265: #{forward.1} parent=1 // pred_fallthru
      _
    // Predicated region
    $region266: #{forward.1} parent=1 // pred_check
      _
    $region267: #{forward.1} parent=1 // pred_check_branch
      %633 = sbr.rel (0) target = $region269
    $region268: #{forward.1} parent=1 // pred_region
      %634 = dma.done [#allocation24], 16
    $region269: #{forward.1} parent=1 // pred_fallthru
      _
    // Predicated region
    $region270: #{forward.1} parent=1 // pred_check
      _
    $region271: #{forward.1} parent=1 // pred_check_branch
      %636 = sbr.rel (0) target = $region273
    $region272: #{forward.1} parent=1 // pred_region
      %637 = dma.done [#allocation24], 16
    $region273: #{forward.1} parent=1 // pred_fallthru
      _
    // Predicated region
    $region274: #{forward.1} parent=1 // pred_check
      _
    $region275: #{forward.1} parent=1 // pred_check_branch
      %639 = sbr.rel (0) target = $region277
    $region276: #{forward.1} parent=1 // pred_region
      %640 = dma.done [#allocation27], 128
    $region277: #{forward.1} parent=1 // pred_fallthru
      _
    // Predicated region
    $region278: #{forward.1} parent=1 // pred_check
      _
    $region279: #{forward.1} parent=1 // pred_check_branch
      %642 = sbr.rel (0) target = $region281
    $region280: #{forward.1} parent=1 // pred_region
      %643 = dma.done [#allocation27], 128
    $region281: #{forward.1} parent=1 // pred_fallthru
      _
    // Predicated region
    $region282: #{forward.1} parent=1 // pred_check
      _
    $region283: #{forward.1} parent=1 // pred_check_branch
      %645 = sbr.rel (0) target = $region285
    $region284: #{forward.1} parent=1 // pred_region
      %646 = dma.done [#allocation30], 128
    $region285: #{forward.1} parent=1 // pred_fallthru
      _
    // Predicated region
    $region286: #{forward.1} parent=1 // pred_check
      _
    $region287: #{forward.1} parent=1 // pred_check_branch
      %648 = sbr.rel (0) target = $region289
    $region288: #{forward.1} parent=1 // pred_region
      %649 = dma.done [#allocation30], 16
    $region289: #{forward.1} parent=1 // pred_fallthru
      _
    // Predicated region
    $region290: #{forward.1} parent=1 // pred_check
      _
    $region291: #{forward.1} parent=1 // pred_check_branch
      %651 = sbr.rel (0) target = $region293
    $region292: #{forward.1} parent=1 // pred_region
      %652 = dma.done [#allocation33], 16
    $region293: #{forward.1} parent=1 // pred_fallthru
      _
    // Predicated region
    $region294: #{forward.1} parent=1 // pred_check
      _
    $region295: #{forward.1} parent=1 // pred_check_branch
      %654 = sbr.rel (0) target = $region297
    $region296: #{forward.1} parent=1 // pred_region
      %655 = dma.done [#allocation33], 16
    $region297: #{forward.1} parent=1 // pred_fallthru
      _
    // Predicated region
    $region298: #{forward.1} parent=1 // pred_check
      _
    $region299: #{forward.1} parent=1 // pred_check_branch
      %657 = sbr.rel (0) target = $region301
    $region300: #{forward.1} parent=1 // pred_region
      %658 = dma.done [#allocation36], 1024
    $region301: #{forward.1} parent=1 // pred_fallthru
      _
    // Predicated region
    $region302: #{forward.1} parent=1 // pred_check
      _
    $region303: #{forward.1} parent=1 // pred_check_branch
      %660 = sbr.rel (0) target = $region305
    $region304: #{forward.1} parent=1 // pred_region
      %661 = dma.done [#allocation36], 1024
    $region305: #{forward.1} parent=1 // pred_fallthru
      _
    // Predicated region
    $region306: #{forward.1} parent=1 // pred_check
      _
    $region307: #{forward.1} parent=1 // pred_check_branch
      %663 = sbr.rel (0) target = $region309
    $region308: #{forward.1} parent=1 // pred_region
      %664 = dma.done [#allocation39], 1024
    $region309: #{forward.1} parent=1 // pred_fallthru
      _
    // Predicated region
    $region310: #{forward.1} parent=1 // pred_check
      _
    $region311: #{forward.1} parent=1 // pred_check_branch
      %666 = sbr.rel (0) target = $region313
    $region312: #{forward.1} parent=1 // pred_region
      %667 = dma.done [#allocation39], 16
    $region313: #{forward.1} parent=1 // pred_fallthru
      _
    // Predicated region
    $region314: #{forward.1} parent=1 // pred_check
      _
    $region315: #{forward.1} parent=1 // pred_check_branch
      %669 = sbr.rel (0) target = $region317
    $region316: #{forward.1} parent=1 // pred_region
      %670 = dma.done [#allocation42], 16
    $region317: #{forward.1} parent=1 // pred_fallthru
      _
    // Predicated region
    $region318: #{forward.1} parent=1 // pred_check
      _
    $region319: #{forward.1} parent=1 // pred_check_branch
      %672 = sbr.rel (0) target = $region321
    $region320: #{forward.1} parent=1 // pred_region
      %673 = dma.done [#allocation42], 16
    $region321: #{forward.1} parent=1 // pred_fallthru
      _
    // Predicated region
    $region322: #{forward.1} parent=1 // pred_check
      _
    $region323: #{forward.1} parent=1 // pred_check_branch
      %675 = sbr.rel (0) target = $region325
    $region324: #{forward.1} parent=1 // pred_region
      %676 = dma.done [#allocation45], 1024
    $region325: #{forward.1} parent=1 // pred_fallthru
      _
    // Predicated region
    $region326: #{forward.1} parent=1 // pred_check
      _
    $region327: #{forward.1} parent=1 // pred_check_branch
      %678 = sbr.rel (0) target = $region329
    $region328: #{forward.1} parent=1 // pred_region
      %679 = dma.done [#allocation45], 1024
    $region329: #{forward.1} parent=1 // pred_fallthru
      _
    // Predicated region
    $region330: #{forward.1} parent=1 // pred_check
      _
    $region331: #{forward.1} parent=1 // pred_check_branch
      %681 = sbr.rel (0) target = $region333
    $region332: #{forward.1} parent=1 // pred_region
      %682 = dma.done [#allocation48], 1024
    $region333: #{forward.1} parent=1 // pred_fallthru
      _
    // Predicated region
    $region334: #{forward.1} parent=1 // pred_check
      _
    $region335: #{forward.1} parent=1 // pred_check_branch
      %684 = sbr.rel (0) target = $region337
    $region336: #{forward.1} parent=1 // pred_region
      %685 = dma.done [#allocation48], 16
    $region337: #{forward.1} parent=1 // pred_fallthru
      _
    // Predicated region
    $region338: #{forward.1} parent=1 // pred_check
      _
    $region339: #{forward.1} parent=1 // pred_check_branch
      %687 = sbr.rel (0) target = $region341
    $region340: #{forward.1} parent=1 // pred_region
      %688 = dma.done [#allocation51], 16
    $region341: #{forward.1} parent=1 // pred_fallthru
      _
    // Predicated region
    $region342: #{forward.1} parent=1 // pred_check
      _
    $region343: #{forward.1} parent=1 // pred_check_branch
      %690 = sbr.rel (0) target = $region345
    $region344: #{forward.1} parent=1 // pred_region
      %691 = dma.done [#allocation51], 16
    $region345: #{forward.1} parent=1 // pred_fallthru
      _
    // Predicated region
    $region346: #{forward.1} parent=1 // pred_check
      _
    $region347: #{forward.1} parent=1 // pred_check_branch
      %693 = sbr.rel (0) target = $region349
    $region348: #{forward.1} parent=1 // pred_region
      %694 = dma.done [#allocation54], 1024
    $region349: #{forward.1} parent=1 // pred_fallthru
      _
    // Predicated region
    $region350: #{forward.1} parent=1 // pred_check
      _
    $region351: #{forward.1} parent=1 // pred_check_branch
      %696 = sbr.rel (0) target = $region353
    $region352: #{forward.1} parent=1 // pred_region
      %697 = dma.done [#allocation54], 16
    $region353: #{forward.1} parent=1 // pred_fallthru
      _
    // Predicated region
    $region354: #{forward.1} parent=1 // pred_check
      _
    $region355: #{forward.1} parent=1 // pred_check_branch
      %699 = sbr.rel (0) target = $region357
    $region356: #{forward.1} parent=1 // pred_region
      %700 = dma.done [#allocation57], 1024
    $region357: #{forward.1} parent=1 // pred_fallthru
      _
    // Predicated region
    $region358: #{forward.1} parent=1 // pred_check
      _
    $region359: #{forward.1} parent=1 // pred_check_branch
      %702 = sbr.rel (0) target = $region361
    $region360: #{forward.1} parent=1 // pred_region
      %703 = dma.done [#allocation57], 16
    $region361: #{forward.1} parent=1 // pred_fallthru
      _
    // Predicated region
    $region362: #{forward.1} parent=1 // pred_check
      _
    $region363: #{forward.1} parent=1 // pred_check_branch
      %705 = sbr.rel (0) target = $region365
    $region364: #{forward.1} parent=1 // pred_region
      %706 = dma.done [#allocation60], 1024
    $region365: #{forward.1} parent=1 // pred_fallthru
      _
    // Predicated region
    $region366: #{forward.1} parent=1 // pred_check
      _
    $region367: #{forward.1} parent=1 // pred_check_branch
      %708 = sbr.rel (0) target = $region369
    $region368: #{forward.1} parent=1 // pred_region
      %709 = dma.done [#allocation60], 16
    $region369: #{forward.1} parent=1 // pred_fallthru
      _
    // Predicated region
    $region370: #{forward.1} parent=1 // pred_check
      _
    $region371: #{forward.1} parent=1 // pred_check_branch
      %711 = sbr.rel (0) target = $region373
    $region372: #{forward.1} parent=1 // pred_region
      %712 = dma.done [#allocation63], 1024
    $region373: #{forward.1} parent=1 // pred_fallthru
      _
    %v714 = vld [vmem:[%s1] sm:$0xff]
    %v715 = vld [vmem:[%s1 + $0x8] sm:$0xff]
    %v716 = vld [vmem:[%s1 + $0x10] sm:$0xff]
    %v717 = vld [vmem:[%s1 + $0x18] sm:$0xff]
    %v718 = vld [vmem:[%s1 + $0x20] sm:$0xff]
    %v719 = vld [vmem:[%s1 + $0x28] sm:$0xff]
    %v720 = vld [vmem:[%s1 + $0x30] sm:$0xff]
    %v721 = vld [vmem:[%s1 + $0x38] sm:$0xff]
    %v722 = vld [vmem:[%s3] sm:$0xff]
    %v723 = vld [vmem:[%s3 + $0x8] sm:$0xff]
    %v724 = vld [vmem:[#allocation3] sm:$0xff]
    %v725 = vld [vmem:[#allocation3 + $0x8] sm:$0xff]
    %v726 = vld [vmem:[#allocation3 + $0x10] sm:$0xff]
    %v727 = vld [vmem:[#allocation3 + $0x18] sm:$0xff]
    %v728 = vld [vmem:[#allocation3 + $0x20] sm:$0xff]
    %v729 = vpack.c.bf16 %v718, %v714
    %v730 = vpack.c.bf16 %v725, %v724
    %v731 = vpack.c.bf16 %v727, %v726
    %v732 = vpack.c.bf16 %v728, %v728
    %v733 = vld [vmem:[#allocation5] sm:$0x1]
    %v735 = vlaneseq
    %v736 = vshrl.u32 %v735, 7
    %v737 = vsub.s32 0, %v736
    %v738 = vrot.slane %v733, %v737
    %741 = vrot.lane.b32.xlu0 %v729, 112
    %v742 = vpop.permute.xlu0 %741
    %vm743 = vcmask 326656
    %v745 = vsel %vm743, %v742, 0
    %vm747 = vcmask 1043456
    %v749 = vsel %vm747, %v732, 0
    %751 = vmatprep.subr.bf16.mxu0 0
    %752 = vmatpush1.bf16.msra.mxu0 %v730
    %753 = vmatprep.subr.bf16.mxu0 0
    %754 = vmatpush1.bf16.msra.mxu0 %v731
    %755 = vmatprep.subr.bf16.mxu0 0
    %756 = vmatpush1.bf16.msra.mxu0 %v749
    %757 = vmatprep.subr.bf16.mxu0 0
    %758 = vmatpush1.bf16.msra.mxu0 0
    %759 = vmatprep.subr.bf16.mxu0 0
    %760 = vmatpush1.bf16.msra.mxu0 0
    %761 = vmatprep.subr.bf16.mxu0 0
    %762 = vmatpush1.bf16.msra.mxu0 0
    %763 = vmatprep.subr.bf16.mxu0 0
    %764 = vmatpush1.bf16.msra.mxu0 0
    %765 = vmatprep.subr.bf16.mxu0 0
    %766 = vmatpush1.bf16.msra.mxu0 0
    %767 = vmatprep.subr.bf16.mxu0 0
    %768 = vmatpush1.bf16.msra.mxu0 0
    %769 = vmatprep.subr.bf16.mxu0 0
    %770 = vmatpush1.bf16.msra.mxu0 0
    %771 = vmatprep.subr.bf16.mxu0 0
    %772 = vmatpush1.bf16.msra.mxu0 0
    %773 = vmatprep.subr.bf16.mxu0 0
    %774 = vmatpush1.bf16.msra.mxu0 0
    %775 = vmatprep.subr.bf16.mxu0 0
    %776 = vmatpush1.bf16.msra.mxu0 0
    %777 = vmatprep.subr.bf16.mxu0 0
    %778 = vmatpush1.bf16.msra.mxu0 0
    %779 = vmatprep.subr.bf16.mxu0 0
    %780 = vmatpush1.bf16.msra.mxu0 0
    %781 = vmatprep.subr.bf16.mxu0 0
    %782 = vmatpush1.bf16.msra.mxu0 0
    %783 = vmatprep.mubr.bf16.mxu0 0
    %784 = vmatmul.mubr.bf16.gmra.mrb[0].mxu0 %v745
    %v785 = vpop.f32.mrb[0].mxu0
    %v786 = vadd.f32 %v738, %v785
    %v787 = vpop.f32.mrb[0].mxu0
    %v788 = vpop.f32.mrb[0].mxu0
    %v789 = vadd.f32 %v738, %v788
    %v790 = vpop.f32.mrb[0].mxu0
    %791 = vdwg.mxu0
    %v792 = vsub.f32 0.0, %v786
    %v793 = vsub.f32 0.0, %v789
    %v794 = vmul.f32 %v792, 1.442695
    %v795 = vpow.pop %v794
    %v796 = vmul.f32 %v793, 1.442695
    %v797 = vpow.pop %v796
    %v798 = vadd.f32 %v795, 1.0
    %v799 = vadd.f32 %v797, 1.0
    %v800 = vrcp.pop %v798
    %v801 = vrcp.pop %v799
    %v802 = vld [vmem:[%s9] sm:$0xff]
    %v803 = vld [vmem:[%s9 + $0x8] sm:$0xff]
    %v804 = vld [vmem:[%s9 + $0x10] sm:$0xff]
    %v805 = vld [vmem:[%s9 + $0x18] sm:$0xff]
    %v806 = vld [vmem:[%s9 + $0x20] sm:$0xff]
    %v807 = vld [vmem:[%s9 + $0x28] sm:$0xff]
    %v808 = vld [vmem:[%s9 + $0x30] sm:$0xff]
    %v809 = vld [vmem:[%s9 + $0x38] sm:$0xff]
    %v810 = vld [vmem:[%s9 + $0x40] sm:$0xff]
    %v811 = vld [vmem:[%s9 + $0x48] sm:$0xff]
    %v812 = vld [vmem:[%s9 + $0x50] sm:$0xff]
    %v813 = vld [vmem:[%s9 + $0x58] sm:$0xff]
    %v814 = vld [vmem:[%s9 + $0x60] sm:$0xff]
    %v815 = vld [vmem:[%s9 + $0x68] sm:$0xff]
    %v816 = vld [vmem:[%s9 + $0x70] sm:$0xff]
    %v817 = vld [vmem:[%s9 + $0x78] sm:$0xff]
    %v818 = vpack.c.bf16 %v801, %v800
    %v819 = vpack.c.bf16 %v803, %v802
    %v820 = vpack.c.bf16 %v805, %v804
    %v821 = vpack.c.bf16 %v807, %v806
    %v822 = vpack.c.bf16 %v809, %v808
    %v823 = vpack.c.bf16 %v811, %v810
    %v824 = vpack.c.bf16 %v813, %v812
    %v825 = vpack.c.bf16 %v815, %v814
    %v826 = vpack.c.bf16 %v817, %v816
    %v827 = vld [vmem:[#allocation7] sm:$0x1]
    %v829 = vlaneseq
    %v830 = vshrl.u32 %v829, 7
    %v831 = vsub.s32 0, %v830
    %v832 = vrot.slane %v827, %v831
    %834 = vmatprep.subr.bf16.mxu0 0
    %835 = vmatpush1.bf16.msra.mxu0 %v819
    %836 = vmatprep.subr.bf16.mxu0 0
    %837 = vmatpush1.bf16.msra.mxu0 %v820
    %838 = vmatprep.subr.bf16.mxu0 0
    %839 = vmatpush1.bf16.msra.mxu0 %v821
    %840 = vmatprep.subr.bf16.mxu0 0
    %841 = vmatpush1.bf16.msra.mxu0 %v822
    %842 = vmatprep.subr.bf16.mxu0 0
    %843 = vmatpush1.bf16.msra.mxu0 %v823
    %844 = vmatprep.subr.bf16.mxu0 0
    %845 = vmatpush1.bf16.msra.mxu0 %v824
    %846 = vmatprep.subr.bf16.mxu0 0
    %847 = vmatpush1.bf16.msra.mxu0 %v825
    %848 = vmatprep.subr.bf16.mxu0 0
    %849 = vmatpush1.bf16.msra.mxu0 %v826
    %850 = vmatprep.subr.bf16.mxu0 0
    %851 = vmatpush1.bf16.msra.mxu0 0
    %852 = vmatprep.subr.bf16.mxu0 0
    %853 = vmatpush1.bf16.msra.mxu0 0
    %854 = vmatprep.subr.bf16.mxu0 0
    %855 = vmatpush1.bf16.msra.mxu0 0
    %856 = vmatprep.subr.bf16.mxu0 0
    %857 = vmatpush1.bf16.msra.mxu0 0
    %858 = vmatprep.subr.bf16.mxu0 0
    %859 = vmatpush1.bf16.msra.mxu0 0
    %860 = vmatprep.subr.bf16.mxu0 0
    %861 = vmatpush1.bf16.msra.mxu0 0
    %862 = vmatprep.subr.bf16.mxu0 0
    %863 = vmatpush1.bf16.msra.mxu0 0
    %864 = vmatprep.subr.bf16.mxu0 0
    %865 = vmatpush1.bf16.msra.mxu0 0
    %866 = vmatprep.mubr.bf16.mxu0 0
    %867 = vmatmul.mubr.bf16.gmra.mrb[0].mxu0 %v818
    %v868 = vpop.f32.mrb[0].mxu0
    %v869 = vadd.f32 %v832, %v868
    %v870 = vpop.f32.mrb[0].mxu0
    %v871 = vpop.f32.mrb[0].mxu0
    %v872 = vadd.f32 %v832, %v871
    %v873 = vpop.f32.mrb[0].mxu0
    %874 = vdwg.mxu0
    %v875 = vsub.f32 0.0, %v869
    %v876 = vsub.f32 0.0, %v872
    %v877 = vmul.f32 %v875, 1.442695
    %v878 = vpow.pop %v877
    %v879 = vmul.f32 %v876, 1.442695
    %v880 = vpow.pop %v879
    %v881 = vadd.f32 %v878, 1.0
    %v882 = vadd.f32 %v880, 1.0
    %v883 = vrcp.pop %v881
    %v884 = vrcp.pop %v882
    %v885 = vld [vmem:[%s13] sm:$0xff]
    %v886 = vld [vmem:[%s13 + $0x8] sm:$0xff]
    %v887 = vld [vmem:[%s13 + $0x10] sm:$0xff]
    %v888 = vld [vmem:[%s13 + $0x18] sm:$0xff]
    %v889 = vld [vmem:[%s13 + $0x20] sm:$0xff]
    %v890 = vld [vmem:[%s13 + $0x28] sm:$0xff]
    %v891 = vld [vmem:[%s13 + $0x30] sm:$0xff]
    %v892 = vld [vmem:[%s13 + $0x38] sm:$0xff]
    %v893 = vld [vmem:[%s13 + $0x40] sm:$0xff]
    %v894 = vld [vmem:[%s13 + $0x48] sm:$0xff]
    %v895 = vld [vmem:[%s13 + $0x50] sm:$0xff]
    %v896 = vld [vmem:[%s13 + $0x58] sm:$0xff]
    %v897 = vld [vmem:[%s13 + $0x60] sm:$0xff]
    %v898 = vld [vmem:[%s13 + $0x68] sm:$0xff]
    %v899 = vld [vmem:[%s13 + $0x70] sm:$0xff]
    %v900 = vld [vmem:[%s13 + $0x78] sm:$0xff]
    %v901 = vld [vmem:[%s13 + $0x80] sm:$0xff]
    %v902 = vld [vmem:[%s13 + $0x88] sm:$0xff]
    %v903 = vld [vmem:[%s13 + $0x90] sm:$0xff]
    %v904 = vld [vmem:[%s13 + $0x98] sm:$0xff]
    %v905 = vld [vmem:[%s13 + $0xa0] sm:$0xff]
    %v906 = vld [vmem:[%s13 + $0xa8] sm:$0xff]
    %v907 = vld [vmem:[%s13 + $0xb0] sm:$0xff]
    %v908 = vld [vmem:[%s13 + $0xb8] sm:$0xff]
    %v909 = vld [vmem:[%s13 + $0xc0] sm:$0xff]
    %v910 = vld [vmem:[%s13 + $0xc8] sm:$0xff]
    %v911 = vld [vmem:[%s13 + $0xd0] sm:$0xff]
    %v912 = vld [vmem:[%s13 + $0xd8] sm:$0xff]
    %v913 = vld [vmem:[%s13 + $0xe0] sm:$0xff]
    %v914 = vld [vmem:[%s13 + $0xe8] sm:$0xff]
    %v915 = vld [vmem:[%s13 + $0xf0] sm:$0xff]
    %v916 = vld [vmem:[%s13 + $0xf8] sm:$0xff]
    %v917 = vld [vmem:[%s13 + $0x100] sm:$0xff]
    %v918 = vld [vmem:[%s13 + $0x108] sm:$0xff]
    %v919 = vld [vmem:[%s13 + $0x110] sm:$0xff]
    %v920 = vld [vmem:[%s13 + $0x118] sm:$0xff]
    %v921 = vld [vmem:[%s13 + $0x120] sm:$0xff]
    %v922 = vld [vmem:[%s13 + $0x128] sm:$0xff]
    %v923 = vld [vmem:[%s13 + $0x130] sm:$0xff]
    %v924 = vld [vmem:[%s13 + $0x138] sm:$0xff]
    %v925 = vld [vmem:[%s13 + $0x140] sm:$0xff]
    %v926 = vld [vmem:[%s13 + $0x148] sm:$0xff]
    %v927 = vld [vmem:[%s13 + $0x150] sm:$0xff]
    %v928 = vld [vmem:[%s13 + $0x158] sm:$0xff]
    %v929 = vld [vmem:[%s13 + $0x160] sm:$0xff]
    %v930 = vld [vmem:[%s13 + $0x168] sm:$0x1f]
    %v931 = vpack.c.bf16 %v719, %v715
    %v932 = vpack.c.bf16 %v720, %v716
    %v933 = vpack.c.bf16 %v721, %v717
    %v934 = vpack.c.bf16 %v886, %v885
    %v935 = vpack.c.bf16 %v888, %v887
    %v936 = vpack.c.bf16 %v890, %v889
    %v937 = vpack.c.bf16 %v892, %v891
    %v938 = vpack.c.bf16 %v894, %v893
    %v939 = vpack.c.bf16 %v896, %v895
    %v940 = vpack.c.bf16 %v898, %v897
    %v941 = vpack.c.bf16 %v900, %v899
    %v942 = vpack.c.bf16 %v902, %v901
    %v943 = vpack.c.bf16 %v904, %v903
    %v944 = vpack.c.bf16 %v906, %v905
    %v945 = vpack.c.bf16 %v908, %v907
    %v946 = vpack.c.bf16 %v910, %v909
    %v947 = vpack.c.bf16 %v912, %v911
    %v948 = vpack.c.bf16 %v914, %v913
    %v949 = vpack.c.bf16 %v916, %v915
    %v950 = vpack.c.bf16 %v918, %v917
    %v951 = vpack.c.bf16 %v920, %v919
    %v952 = vpack.c.bf16 %v922, %v921
    %v953 = vpack.c.bf16 %v924, %v923
    %v954 = vpack.c.bf16 %v926, %v925
    %v955 = vpack.c.bf16 %v928, %v927
    %v956 = vpack.c.bf16 %v930, %v929
    %v957 = vld [vmem:[#allocation8] sm:$0x1]
    %v959 = vlaneseq
    %v960 = vshrl.u32 %v959, 7
    %v961 = vsub.s32 0, %v960
    %v962 = vrot.slane %v957, %v961
    %967 = vrot.lane.b32.xlu0 %v729, 72
    %v968 = vpop.permute.xlu0 %967
    %969 = vrot.lane.b32.xlu0 %v931, 72
    %v970 = vpop.permute.xlu0 %969
    %971 = vrot.lane.b32.xlu0 %v932, 72
    %v972 = vpop.permute.xlu0 %971
    %973 = vrot.lane.b32.xlu0 %v933, 72
    %v974 = vpop.permute.xlu0 %973
    %vm975 = vcmask 588800
    %v976 = vsel %vm975, %v968, %v970
    %v977 = vsel %vm975, %v970, %v972
    %v978 = vsel %vm975, %v972, %v974
    %vm981 = vcmask 891904
    %v983 = vsel %vm981, %v978, 0
    %vm985 = vcmask 1045504
    %vm986 = vcmask 1046528
    %v987 = vsel %vm985, 4294967295, 65535
    %v988 = vsel %vm986, %v987, 0
    %v990 = vand.u32 %v956, %v988
    %992 = vmatprep.subr.bf16.mxu0 0
    %993 = vmatpush1.bf16.msra.mxu0 %v934
    %994 = vmatprep.subr.bf16.mxu0 0
    %995 = vmatpush1.bf16.msra.mxu0 %v935
    %996 = vmatprep.subr.bf16.mxu0 0
    %997 = vmatpush1.bf16.msra.mxu0 %v936
    %998 = vmatprep.subr.bf16.mxu0 0
    %999 = vmatpush1.bf16.msra.mxu0 %v937
    %1000 = vmatprep.subr.bf16.mxu0 0
    %1001 = vmatpush1.bf16.msra.mxu0 %v938
    %1002 = vmatprep.subr.bf16.mxu0 0
    %1003 = vmatpush1.bf16.msra.mxu0 %v939
    %1004 = vmatprep.subr.bf16.mxu0 0
    %1005 = vmatpush1.bf16.msra.mxu0 %v940
    %1006 = vmatprep.subr.bf16.mxu0 0
    %1007 = vmatpush1.bf16.msra.mxu0 %v941
    %1008 = vmatprep.subr.bf16.mxu0 0
    %1009 = vmatpush1.bf16.msra.mxu0 %v942
    %1010 = vmatprep.subr.bf16.mxu0 0
    %1011 = vmatpush1.bf16.msra.mxu0 %v943
    %1012 = vmatprep.subr.bf16.mxu0 0
    %1013 = vmatpush1.bf16.msra.mxu0 %v944
    %1014 = vmatprep.subr.bf16.mxu0 0
    %1015 = vmatpush1.bf16.msra.mxu0 %v945
    %1016 = vmatprep.subr.bf16.mxu0 0
    %1017 = vmatpush1.bf16.msra.mxu0 %v946
    %1018 = vmatprep.subr.bf16.mxu0 0
    %1019 = vmatpush1.bf16.msra.mxu0 %v947
    %1020 = vmatprep.subr.bf16.mxu0 0
    %1021 = vmatpush1.bf16.msra.mxu0 %v948
    %1022 = vmatprep.subr.bf16.mxu0 0
    %1023 = vmatpush1.bf16.msra.mxu0 %v949
    %1024 = vmatprep.mubr.bf16.mxu0 %v977
    %1025 = vmatmul.mubr.bf16.gmra.mrb[0].mxu0 %v976
    %v1026 = vpop.f32.mrb[0].mxu0
    %v1027 = vadd.f32 %v962, %v1026
    %v1028 = vpop.f32.mrb[0].mxu0
    %v1029 = vpop.f32.mrb[0].mxu0
    %v1030 = vadd.f32 %v962, %v1029
    %v1031 = vpop.f32.mrb[0].mxu0
    %1032 = vdwg.mxu0
    %1033 = vmatprep.subr.bf16.mxu0 0
    %1034 = vmatpush1.bf16.msra.mxu0 %v950
    %1035 = vmatprep.subr.bf16.mxu0 0
    %1036 = vmatpush1.bf16.msra.mxu0 %v951
    %1037 = vmatprep.subr.bf16.mxu0 0
    %1038 = vmatpush1.bf16.msra.mxu0 %v952
    %1039 = vmatprep.subr.bf16.mxu0 0
    %1040 = vmatpush1.bf16.msra.mxu0 %v953
    %1041 = vmatprep.subr.bf16.mxu0 0
    %1042 = vmatpush1.bf16.msra.mxu0 %v954
    %1043 = vmatprep.subr.bf16.mxu0 0
    %1044 = vmatpush1.bf16.msra.mxu0 %v955
    %1045 = vmatprep.subr.bf16.mxu0 0
    %1046 = vmatpush1.bf16.msra.mxu0 %v990
    %1047 = vmatprep.subr.bf16.mxu0 0
    %1048 = vmatpush1.bf16.msra.mxu0 0
    %1049 = vmatprep.subr.bf16.mxu0 0
    %1050 = vmatpush1.bf16.msra.mxu0 0
    %1051 = vmatprep.subr.bf16.mxu0 0
    %1052 = vmatpush1.bf16.msra.mxu0 0
    %1053 = vmatprep.subr.bf16.mxu0 0
    %1054 = vmatpush1.bf16.msra.mxu0 0
    %1055 = vmatprep.subr.bf16.mxu0 0
    %1056 = vmatpush1.bf16.msra.mxu0 0
    %1057 = vmatprep.subr.bf16.mxu0 0
    %1058 = vmatpush1.bf16.msra.mxu0 0
    %1059 = vmatprep.subr.bf16.mxu0 0
    %1060 = vmatpush1.bf16.msra.mxu0 0
    %1061 = vmatprep.subr.bf16.mxu0 0
    %1062 = vmatpush1.bf16.msra.mxu0 0
    %1063 = vmatprep.subr.bf16.mxu0 0
    %1064 = vmatpush1.bf16.msra.mxu0 0
    %1065 = vmatprep.mubr.bf16.mxu0 0
    %1066 = vmatmul.mubr.bf16.gmra.mrb[0].mxu0 %v983
    %v1067 = vpop.f32.mrb[0].mxu0
    %v1068 = vadd.f32 %v1027, %v1067
    %v1069 = vpop.f32.mrb[0].mxu0
    %v1070 = vpop.f32.mrb[0].mxu0
    %v1071 = vadd.f32 %v1030, %v1070
    %v1072 = vpop.f32.mrb[0].mxu0
    %1073 = vdwg.mxu0
    %vm1074 = vcmp.gt.f32.partialorder %v1068, 0.0
    %vm1075 = vcmp.gt.f32.partialorder %v1071, 0.0
    %v1076 = vmul.f32 %v1068, 0.01
    %v1077 = vmul.f32 %v1071, 0.01
    %v1078 = vsel %vm1074, %v1068, %v1076
    %v1079 = vsel %vm1075, %v1071, %v1077
    %v1080 = vld [vmem:[#allocation10] sm:$0xff]
    %v1081 = vld [vmem:[#allocation10 + $0x8] sm:$0xff]
    %v1082 = vld [vmem:[#allocation10 + $0x10] sm:$0xff]
    %v1083 = vld [vmem:[#allocation10 + $0x18] sm:$0xff]
    %v1084 = vld [vmem:[#allocation10 + $0x20] sm:$0xff]
    %v1085 = vld [vmem:[#allocation10 + $0x28] sm:$0xff]
    %v1086 = vld [vmem:[#allocation10 + $0x30] sm:$0xff]
    %v1087 = vld [vmem:[#allocation10 + $0x38] sm:$0xff]
    %v1088 = vld [vmem:[#allocation10 + $0x40] sm:$0xff]
    %v1089 = vld [vmem:[#allocation10 + $0x48] sm:$0xff]
    %v1090 = vld [vmem:[#allocation10 + $0x50] sm:$0xff]
    %v1091 = vld [vmem:[#allocation10 + $0x58] sm:$0xff]
    %v1092 = vld [vmem:[#allocation10 + $0x60] sm:$0xff]
    %v1093 = vld [vmem:[#allocation10 + $0x68] sm:$0xff]
    %v1094 = vld [vmem:[#allocation10 + $0x70] sm:$0xff]
    %v1095 = vld [vmem:[#allocation10 + $0x78] sm:$0xff]
    %v1096 = vpack.c.bf16 %v1079, %v1078
    %v1097 = vpack.c.bf16 %v1081, %v1080
    %v1098 = vpack.c.bf16 %v1083, %v1082
    %v1099 = vpack.c.bf16 %v1085, %v1084
    %v1100 = vpack.c.bf16 %v1087, %v1086
    %v1101 = vpack.c.bf16 %v1089, %v1088
    %v1102 = vpack.c.bf16 %v1091, %v1090
    %v1103 = vpack.c.bf16 %v1093, %v1092
    %v1104 = vpack.c.bf16 %v1095, %v1094
    %v1105 = vld [vmem:[#allocation11] sm:$0x1]
    %v1107 = vlaneseq
    %v1108 = vshrl.u32 %v1107, 7
    %v1109 = vsub.s32 0, %v1108
    %v1110 = vrot.slane %v1105, %v1109
    %1112 = vmatprep.subr.bf16.mxu0 0
    %1113 = vmatpush1.bf16.msra.mxu0 %v1097
    %1114 = vmatprep.subr.bf16.mxu0 0
    %1115 = vmatpush1.bf16.msra.mxu0 %v1098
    %1116 = vmatprep.subr.bf16.mxu0 0
    %1117 = vmatpush1.bf16.msra.mxu0 %v1099
    %1118 = vmatprep.subr.bf16.mxu0 0
    %1119 = vmatpush1.bf16.msra.mxu0 %v1100
    %1120 = vmatprep.subr.bf16.mxu0 0
    %1121 = vmatpush1.bf16.msra.mxu0 %v1101
    %1122 = vmatprep.subr.bf16.mxu0 0
    %1123 = vmatpush1.bf16.msra.mxu0 %v1102
    %1124 = vmatprep.subr.bf16.mxu0 0
    %1125 = vmatpush1.bf16.msra.mxu0 %v1103
    %1126 = vmatprep.subr.bf16.mxu0 0
    %1127 = vmatpush1.bf16.msra.mxu0 %v1104
    %1128 = vmatprep.subr.bf16.mxu0 0
    %1129 = vmatpush1.bf16.msra.mxu0 0
    %1130 = vmatprep.subr.bf16.mxu0 0
    %1131 = vmatpush1.bf16.msra.mxu0 0
    %1132 = vmatprep.subr.bf16.mxu0 0
    %1133 = vmatpush1.bf16.msra.mxu0 0
    %1134 = vmatprep.subr.bf16.mxu0 0
    %1135 = vmatpush1.bf16.msra.mxu0 0
    %1136 = vmatprep.subr.bf16.mxu0 0
    %1137 = vmatpush1.bf16.msra.mxu0 0
    %1138 = vmatprep.subr.bf16.mxu0 0
    %1139 = vmatpush1.bf16.msra.mxu0 0
    %1140 = vmatprep.subr.bf16.mxu0 0
    %1141 = vmatpush1.bf16.msra.mxu0 0
    %1142 = vmatprep.subr.bf16.mxu0 0
    %1143 = vmatpush1.bf16.msra.mxu0 0
    %1144 = vmatprep.mubr.bf16.mxu0 0
    %1145 = vmatmul.mubr.bf16.gmra.mrb[0].mxu0 %v1096
    %v1146 = vpop.f32.mrb[0].mxu0
    %v1147 = vadd.f32 %v1110, %v1146
    %v1148 = vpop.f32.mrb[0].mxu0
    %v1149 = vpop.f32.mrb[0].mxu0
    %v1150 = vadd.f32 %v1110, %v1149
    %v1151 = vpop.f32.mrb[0].mxu0
    %1152 = vdwg.mxu0
    %vm1153 = vcmp.gt.f32.partialorder %v1147, 0.0
    %vm1154 = vcmp.gt.f32.partialorder %v1150, 0.0
    %v1155 = vmul.f32 %v1147, 0.01
    %v1156 = vmul.f32 %v1150, 0.01
    %v1157 = vsel %vm1153, %v1147, %v1155
    %v1158 = vsel %vm1154, %v1150, %v1156
    %v1159 = vld [vmem:[#allocation13] sm:$0xff]
    %v1160 = vld [vmem:[#allocation13 + $0x8] sm:$0xff]
    %v1161 = vld [vmem:[#allocation13 + $0x10] sm:$0xff]
    %v1162 = vld [vmem:[#allocation13 + $0x18] sm:$0xff]
    %v1163 = vld [vmem:[#allocation13 + $0x20] sm:$0xff]
    %v1164 = vld [vmem:[#allocation13 + $0x28] sm:$0xff]
    %v1165 = vld [vmem:[#allocation13 + $0x30] sm:$0xff]
    %v1166 = vld [vmem:[#allocation13 + $0x38] sm:$0xff]
    %v1167 = vld [vmem:[#allocation13 + $0x40] sm:$0xff]
    %v1168 = vld [vmem:[#allocation13 + $0x48] sm:$0xff]
    %v1169 = vld [vmem:[#allocation13 + $0x50] sm:$0xff]
    %v1170 = vld [vmem:[#allocation13 + $0x58] sm:$0xff]
    %v1171 = vld [vmem:[#allocation13 + $0x60] sm:$0xff]
    %v1172 = vld [vmem:[#allocation13 + $0x68] sm:$0xff]
    %v1173 = vld [vmem:[#allocation13 + $0x70] sm:$0xff]
    %v1174 = vld [vmem:[#allocation13 + $0x78] sm:$0xff]
    %v1175 = vpack.c.bf16 %v884, %v883
    %v1176 = vpack.c.bf16 %v1160, %v1159
    %v1177 = vpack.c.bf16 %v1162, %v1161
    %v1178 = vpack.c.bf16 %v1164, %v1163
    %v1179 = vpack.c.bf16 %v1166, %v1165
    %v1180 = vpack.c.bf16 %v1168, %v1167
    %v1181 = vpack.c.bf16 %v1170, %v1169
    %v1182 = vpack.c.bf16 %v1172, %v1171
    %v1183 = vpack.c.bf16 %v1174, %v1173
    %v1184 = vld [vmem:[#allocation14] sm:$0xff]
    %v1185 = vld [vmem:[#allocation14 + $0x8] sm:$0xff]
    %v1186 = vld [vmem:[#allocation14 + $0x10] sm:$0xff]
    %v1187 = vld [vmem:[#allocation14 + $0x18] sm:$0xff]
    %v1188 = vld [vmem:[#allocation14 + $0x20] sm:$0xff]
    %v1189 = vld [vmem:[#allocation14 + $0x28] sm:$0xff]
    %v1190 = vld [vmem:[#allocation14 + $0x30] sm:$0xff]
    %v1191 = vld [vmem:[#allocation14 + $0x38] sm:$0xff]
    %v1192 = vld [vmem:[#allocation14 + $0x40] sm:$0xff]
    %v1193 = vld [vmem:[#allocation14 + $0x48] sm:$0xff]
    %v1194 = vld [vmem:[#allocation14 + $0x50] sm:$0xff]
    %v1195 = vld [vmem:[#allocation14 + $0x58] sm:$0xff]
    %v1196 = vld [vmem:[#allocation14 + $0x60] sm:$0xff]
    %v1197 = vld [vmem:[#allocation14 + $0x68] sm:$0xff]
    %v1198 = vld [vmem:[#allocation14 + $0x70] sm:$0xff]
    %v1199 = vld [vmem:[#allocation14 + $0x78] sm:$0xff]
    %v1200 = vpack.c.bf16 %v1158, %v1157
    %v1201 = vpack.c.bf16 %v1185, %v1184
    %v1202 = vpack.c.bf16 %v1187, %v1186
    %v1203 = vpack.c.bf16 %v1189, %v1188
    %v1204 = vpack.c.bf16 %v1191, %v1190
    %v1205 = vpack.c.bf16 %v1193, %v1192
    %v1206 = vpack.c.bf16 %v1195, %v1194
    %v1207 = vpack.c.bf16 %v1197, %v1196
    %v1208 = vpack.c.bf16 %v1199, %v1198
    %1209 = vmatprep.subr.bf16.mxu0 0
    %1210 = vmatpush1.bf16.msra.mxu0 %v1201
    %1211 = vmatprep.subr.bf16.mxu0 0
    %1212 = vmatpush1.bf16.msra.mxu0 %v1202
    %1213 = vmatprep.subr.bf16.mxu0 0
    %1214 = vmatpush1.bf16.msra.mxu0 %v1203
    %1215 = vmatprep.subr.bf16.mxu0 0
    %1216 = vmatpush1.bf16.msra.mxu0 %v1204
    %1217 = vmatprep.subr.bf16.mxu0 0
    %1218 = vmatpush1.bf16.msra.mxu0 %v1205
    %1219 = vmatprep.subr.bf16.mxu0 0
    %1220 = vmatpush1.bf16.msra.mxu0 %v1206
    %1221 = vmatprep.subr.bf16.mxu0 0
    %1222 = vmatpush1.bf16.msra.mxu0 %v1207
    %1223 = vmatprep.subr.bf16.mxu0 0
    %1224 = vmatpush1.bf16.msra.mxu0 %v1208
    %1225 = vmatprep.subr.bf16.mxu0 0
    %1226 = vmatpush1.bf16.msra.mxu0 0
    %1227 = vmatprep.subr.bf16.mxu0 0
    %1228 = vmatpush1.bf16.msra.mxu0 0
    %1229 = vmatprep.subr.bf16.mxu0 0
    %1230 = vmatpush1.bf16.msra.mxu0 0
    %1231 = vmatprep.subr.bf16.mxu0 0
    %1232 = vmatpush1.bf16.msra.mxu0 0
    %1233 = vmatprep.subr.bf16.mxu0 0
    %1234 = vmatpush1.bf16.msra.mxu0 0
    %1235 = vmatprep.subr.bf16.mxu0 0
    %1236 = vmatpush1.bf16.msra.mxu0 0
    %1237 = vmatprep.subr.bf16.mxu0 0
    %1238 = vmatpush1.bf16.msra.mxu0 0
    %1239 = vmatprep.subr.bf16.mxu0 0
    %1240 = vmatpush1.bf16.msra.mxu0 0
    %1241 = vmatprep.mubr.bf16.mxu0 0
    %1242 = vmatmul.mubr.bf16.gmra.mrb[0].mxu0 %v1200
    %v1243 = vpop.f32.mrb[0].mxu0
    %v1244 = vadd.f32 0.0, %v1243
    %v1245 = vpop.f32.mrb[0].mxu0
    %v1246 = vpop.f32.mrb[0].mxu0
    %v1247 = vadd.f32 0.0, %v1246
    %v1248 = vpop.f32.mrb[0].mxu0
    %1249 = vdwg.mxu0
    %1250 = vmatprep.subr.bf16.mxu0 0
    %1251 = vmatpush1.bf16.msra.mxu0 %v1176
    %1252 = vmatprep.subr.bf16.mxu0 0
    %1253 = vmatpush1.bf16.msra.mxu0 %v1177
    %1254 = vmatprep.subr.bf16.mxu0 0
    %1255 = vmatpush1.bf16.msra.mxu0 %v1178
    %1256 = vmatprep.subr.bf16.mxu0 0
    %1257 = vmatpush1.bf16.msra.mxu0 %v1179
    %1258 = vmatprep.subr.bf16.mxu0 0
    %1259 = vmatpush1.bf16.msra.mxu0 %v1180
    %1260 = vmatprep.subr.bf16.mxu0 0
    %1261 = vmatpush1.bf16.msra.mxu0 %v1181
    %1262 = vmatprep.subr.bf16.mxu0 0
    %1263 = vmatpush1.bf16.msra.mxu0 %v1182
    %1264 = vmatprep.subr.bf16.mxu0 0
    %1265 = vmatpush1.bf16.msra.mxu0 %v1183
    %1266 = vmatprep.subr.bf16.mxu0 0
    %1267 = vmatpush1.bf16.msra.mxu0 0
    %1268 = vmatprep.subr.bf16.mxu0 0
    %1269 = vmatpush1.bf16.msra.mxu0 0
    %1270 = vmatprep.subr.bf16.mxu0 0
    %1271 = vmatpush1.bf16.msra.mxu0 0
    %1272 = vmatprep.subr.bf16.mxu0 0
    %1273 = vmatpush1.bf16.msra.mxu0 0
    %1274 = vmatprep.subr.bf16.mxu0 0
    %1275 = vmatpush1.bf16.msra.mxu0 0
    %1276 = vmatprep.subr.bf16.mxu0 0
    %1277 = vmatpush1.bf16.msra.mxu0 0
    %1278 = vmatprep.subr.bf16.mxu0 0
    %1279 = vmatpush1.bf16.msra.mxu0 0
    %1280 = vmatprep.subr.bf16.mxu0 0
    %1281 = vmatpush1.bf16.msra.mxu0 0
    %1282 = vmatprep.mubr.bf16.mxu0 0
    %1283 = vmatmul.mubr.bf16.gmra.mrb[0].mxu0 %v1175
    %v1284 = vpop.f32.mrb[0].mxu0
    %v1285 = vadd.f32 %v1244, %v1284
    %v1286 = vpop.f32.mrb[0].mxu0
    %v1287 = vpop.f32.mrb[0].mxu0
    %v1288 = vadd.f32 %v1247, %v1287
    %v1289 = vpop.f32.mrb[0].mxu0
    %1290 = vdwg.mxu0
    %v1291 = vld [vmem:[#allocation16] sm:$0x1]
    %v1293 = vlaneseq
    %v1294 = vshrl.u32 %v1293, 7
    %v1295 = vsub.s32 0, %v1294
    %v1296 = vrot.slane %v1291, %v1295
    %v1298 = vadd.f32 %v1285, %v1296
    %v1299 = vadd.f32 %v1288, %v1296
    %vm1300 = vcmp.gt.f32.partialorder %v1298, 0.0
    %vm1301 = vcmp.gt.f32.partialorder %v1299, 0.0
    %v1302 = vmul.f32 %v1298, 0.01
    %v1303 = vmul.f32 %v1299, 0.01
    %v1304 = vsel %vm1300, %v1298, %v1302
    %v1305 = vsel %vm1301, %v1299, %v1303
    %v1306 = vld [vmem:[%s27] sm:$0xff]
    %v1307 = vld [vmem:[%s27 + $0x8] sm:$0xff]
    %v1308 = vld [vmem:[%s27 + $0x10] sm:$0xff]
    %v1309 = vld [vmem:[%s27 + $0x18] sm:$0xff]
    %v1310 = vld [vmem:[%s27 + $0x20] sm:$0xff]
    %v1311 = vld [vmem:[%s27 + $0x28] sm:$0xff]
    %v1312 = vld [vmem:[%s27 + $0x30] sm:$0xff]
    %v1313 = vld [vmem:[%s27 + $0x38] sm:$0xff]
    %v1314 = vld [vmem:[%s27 + $0x40] sm:$0xff]
    %v1315 = vld [vmem:[%s27 + $0x48] sm:$0xff]
    %v1316 = vld [vmem:[%s27 + $0x50] sm:$0xff]
    %v1317 = vld [vmem:[%s27 + $0x58] sm:$0xff]
    %v1318 = vld [vmem:[%s27 + $0x60] sm:$0xff]
    %v1319 = vld [vmem:[%s27 + $0x68] sm:$0xff]
    %v1320 = vld [vmem:[%s27 + $0x70] sm:$0xff]
    %v1321 = vld [vmem:[%s27 + $0x78] sm:$0xff]
    %v1322 = vpack.c.bf16 %v1305, %v1304
    %v1323 = vpack.c.bf16 %v1307, %v1306
    %v1324 = vpack.c.bf16 %v1309, %v1308
    %v1325 = vpack.c.bf16 %v1311, %v1310
    %v1326 = vpack.c.bf16 %v1313, %v1312
    %v1327 = vpack.c.bf16 %v1315, %v1314
    %v1328 = vpack.c.bf16 %v1317, %v1316
    %v1329 = vpack.c.bf16 %v1319, %v1318
    %v1330 = vpack.c.bf16 %v1321, %v1320
    %v1331 = vld [vmem:[#allocation17] sm:$0x1]
    %v1333 = vlaneseq
    %v1334 = vshrl.u32 %v1333, 7
    %v1335 = vsub.s32 0, %v1334
    %v1336 = vrot.slane %v1331, %v1335
    %1338 = vmatprep.subr.bf16.mxu0 0
    %1339 = vmatpush1.bf16.msra.mxu0 %v1323
    %1340 = vmatprep.subr.bf16.mxu0 0
    %1341 = vmatpush1.bf16.msra.mxu0 %v1324
    %1342 = vmatprep.subr.bf16.mxu0 0
    %1343 = vmatpush1.bf16.msra.mxu0 %v1325
    %1344 = vmatprep.subr.bf16.mxu0 0
    %1345 = vmatpush1.bf16.msra.mxu0 %v1326
    %1346 = vmatprep.subr.bf16.mxu0 0
    %1347 = vmatpush1.bf16.msra.mxu0 %v1327
    %1348 = vmatprep.subr.bf16.mxu0 0
    %1349 = vmatpush1.bf16.msra.mxu0 %v1328
    %1350 = vmatprep.subr.bf16.mxu0 0
    %1351 = vmatpush1.bf16.msra.mxu0 %v1329
    %1352 = vmatprep.subr.bf16.mxu0 0
    %1353 = vmatpush1.bf16.msra.mxu0 %v1330
    %1354 = vmatprep.subr.bf16.mxu0 0
    %1355 = vmatpush1.bf16.msra.mxu0 0
    %1356 = vmatprep.subr.bf16.mxu0 0
    %1357 = vmatpush1.bf16.msra.mxu0 0
    %1358 = vmatprep.subr.bf16.mxu0 0
    %1359 = vmatpush1.bf16.msra.mxu0 0
    %1360 = vmatprep.subr.bf16.mxu0 0
    %1361 = vmatpush1.bf16.msra.mxu0 0
    %1362 = vmatprep.subr.bf16.mxu0 0
    %1363 = vmatpush1.bf16.msra.mxu0 0
    %1364 = vmatprep.subr.bf16.mxu0 0
    %1365 = vmatpush1.bf16.msra.mxu0 0
    %1366 = vmatprep.subr.bf16.mxu0 0
    %1367 = vmatpush1.bf16.msra.mxu0 0
    %1368 = vmatprep.subr.bf16.mxu0 0
    %1369 = vmatpush1.bf16.msra.mxu0 0
    %1370 = vmatprep.mubr.bf16.mxu0 0
    %1371 = vmatmul.mubr.bf16.gmra.mrb[0].mxu0 %v1322
    %v1372 = vpop.f32.mrb[0].mxu0
    %v1373 = vadd.f32 %v1336, %v1372
    %v1374 = vpop.f32.mrb[0].mxu0
    %v1375 = vpop.f32.mrb[0].mxu0
    %v1376 = vadd.f32 %v1336, %v1375
    %v1377 = vpop.f32.mrb[0].mxu0
    %1378 = vdwg.mxu0
    %vm1379 = vcmp.gt.f32.partialorder %v1373, 0.0
    %vm1380 = vcmp.gt.f32.partialorder %v1376, 0.0
    %v1381 = vmul.f32 %v1373, 0.01
    %v1382 = vmul.f32 %v1376, 0.01
    %v1383 = vsel %vm1379, %v1373, %v1381
    %v1384 = vsel %vm1380, %v1376, %v1382
    %v1385 = vlaneseq
    %v1386 = vand.u32 %v1385, 127
    %v1387 = vcvt.s32.f32 %v1386
    %v1388 = vld [vmem:[#allocation19] sm:$0xff]
    %v1389 = vld [vmem:[#allocation19 + $0x8] sm:$0xff]
    %v1390 = vld [vmem:[#allocation19 + $0x10] sm:$0xff]
    %v1391 = vld [vmem:[#allocation19 + $0x18] sm:$0xff]
    %v1392 = vld [vmem:[#allocation19 + $0x20] sm:$0xff]
    %v1393 = vld [vmem:[#allocation19 + $0x28] sm:$0xff]
    %v1394 = vld [vmem:[#allocation19 + $0x30] sm:$0xff]
    %v1395 = vld [vmem:[#allocation19 + $0x38] sm:$0xff]
    %v1396 = vld [vmem:[#allocation19 + $0x40] sm:$0xff]
    %v1397 = vld [vmem:[#allocation19 + $0x48] sm:$0xff]
    %v1398 = vld [vmem:[#allocation19 + $0x50] sm:$0xff]
    %v1399 = vld [vmem:[#allocation19 + $0x58] sm:$0xff]
    %v1400 = vld [vmem:[#allocation19 + $0x60] sm:$0xff]
    %v1401 = vld [vmem:[#allocation19 + $0x68] sm:$0xff]
    %v1402 = vld [vmem:[#allocation19 + $0x70] sm:$0xff]
    %v1403 = vld [vmem:[#allocation19 + $0x78] sm:$0xff]
    %v1404 = vld [vmem:[%s33] sm:$0xff]
    %v1405 = vld [vmem:[%s33 + $0x8] sm:$0xff]
    %v1406 = vld [vmem:[%s33 + $0x10] sm:$0xff]
    %v1407 = vld [vmem:[%s33 + $0x18] sm:$0xff]
    %v1408 = vld [vmem:[%s33 + $0x20] sm:$0xff]
    %v1409 = vld [vmem:[%s33 + $0x28] sm:$0xff]
    %v1410 = vld [vmem:[%s33 + $0x30] sm:$0xff]
    %v1411 = vld [vmem:[%s33 + $0x38] sm:$0xff]
    %v1412 = vld [vmem:[%s33 + $0x40] sm:$0xff]
    %v1413 = vld [vmem:[%s33 + $0x48] sm:$0xff]
    %v1414 = vld [vmem:[%s33 + $0x50] sm:$0xff]
    %v1415 = vld [vmem:[%s33 + $0x58] sm:$0xff]
    %v1416 = vld [vmem:[%s33 + $0x60] sm:$0xff]
    %v1417 = vld [vmem:[%s33 + $0x68] sm:$0xff]
    %v1418 = vld [vmem:[%s33 + $0x70] sm:$0xff]
    %v1419 = vld [vmem:[%s33 + $0x78] sm:$0xff]
    %v1420 = vld [vmem:[#allocation20] sm:$0x1]
    %v1421 = vpack.c.bf16 %v1384, %v1383
    %v1422 = vpack.c.bf16 %v1389, %v1388
    %v1423 = vpack.c.bf16 %v1391, %v1390
    %v1424 = vpack.c.bf16 %v1393, %v1392
    %v1425 = vpack.c.bf16 %v1395, %v1394
    %v1426 = vpack.c.bf16 %v1397, %v1396
    %v1427 = vpack.c.bf16 %v1399, %v1398
    %v1428 = vpack.c.bf16 %v1401, %v1400
    %v1429 = vpack.c.bf16 %v1403, %v1402
    %1430 = vmatprep.subr.bf16.mxu0 0
    %1431 = vmatpush1.bf16.msra.mxu0 %v1422
    %1432 = vmatprep.subr.bf16.mxu0 0
    %1433 = vmatpush1.bf16.msra.mxu0 %v1423
    %1434 = vmatprep.subr.bf16.mxu0 0
    %1435 = vmatpush1.bf16.msra.mxu0 %v1424
    %1436 = vmatprep.subr.bf16.mxu0 0
    %1437 = vmatpush1.bf16.msra.mxu0 %v1425
    %1438 = vmatprep.subr.bf16.mxu0 0
    %1439 = vmatpush1.bf16.msra.mxu0 %v1426
    %1440 = vmatprep.subr.bf16.mxu0 0
    %1441 = vmatpush1.bf16.msra.mxu0 %v1427
    %1442 = vmatprep.subr.bf16.mxu0 0
    %1443 = vmatpush1.bf16.msra.mxu0 %v1428
    %1444 = vmatprep.subr.bf16.mxu0 0
    %1445 = vmatpush1.bf16.msra.mxu0 %v1429
    %1446 = vmatprep.subr.bf16.mxu0 0
    %1447 = vmatpush1.bf16.msra.mxu0 0
    %1448 = vmatprep.subr.bf16.mxu0 0
    %1449 = vmatpush1.bf16.msra.mxu0 0
    %1450 = vmatprep.subr.bf16.mxu0 0
    %1451 = vmatpush1.bf16.msra.mxu0 0
    %1452 = vmatprep.subr.bf16.mxu0 0
    %1453 = vmatpush1.bf16.msra.mxu0 0
    %1454 = vmatprep.subr.bf16.mxu0 0
    %1455 = vmatpush1.bf16.msra.mxu0 0
    %1456 = vmatprep.subr.bf16.mxu0 0
    %1457 = vmatpush1.bf16.msra.mxu0 0
    %1458 = vmatprep.subr.bf16.mxu0 0
    %1459 = vmatpush1.bf16.msra.mxu0 0
    %1460 = vmatprep.subr.bf16.mxu0 0
    %1461 = vmatpush1.bf16.msra.mxu0 0
    %1462 = vmatprep.mubr.bf16.mxu0 0
    %1463 = vmatmul.mubr.bf16.gmra.mrb[0].mxu0 %v1421
    %v1464 = vpop.f32.mrb[0].mxu0
    %v1465 = vadd.f32 0.0, %v1464
    %v1466 = vpop.f32.mrb[0].mxu0
    %v1467 = vpop.f32.mrb[0].mxu0
    %v1468 = vadd.f32 0.0, %v1467
    %v1469 = vpop.f32.mrb[0].mxu0
    %1470 = vdwg.mxu0
    %v1471 = vpack.c.bf16 %v1468, %v1465
    %v1472 = vpack.c.bf16 %v1405, %v1404
    %v1473 = vpack.c.bf16 %v1407, %v1406
    %v1474 = vpack.c.bf16 %v1409, %v1408
    %v1475 = vpack.c.bf16 %v1411, %v1410
    %v1476 = vpack.c.bf16 %v1413, %v1412
    %v1477 = vpack.c.bf16 %v1415, %v1414
    %v1478 = vpack.c.bf16 %v1417, %v1416
    %v1479 = vpack.c.bf16 %v1419, %v1418
    %1480 = vmatprep.subr.bf16.mxu0 0
    %1481 = vmatpush1.bf16.msra.mxu0 %v1472
    %1482 = vmatprep.subr.bf16.mxu0 0
    %1483 = vmatpush1.bf16.msra.mxu0 %v1473
    %1484 = vmatprep.subr.bf16.mxu0 0
    %1485 = vmatpush1.bf16.msra.mxu0 %v1474
    %1486 = vmatprep.subr.bf16.mxu0 0
    %1487 = vmatpush1.bf16.msra.mxu0 %v1475
    %1488 = vmatprep.subr.bf16.mxu0 0
    %1489 = vmatpush1.bf16.msra.mxu0 %v1476
    %1490 = vmatprep.subr.bf16.mxu0 0
    %1491 = vmatpush1.bf16.msra.mxu0 %v1477
    %1492 = vmatprep.subr.bf16.mxu0 0
    %1493 = vmatpush1.bf16.msra.mxu0 %v1478
    %1494 = vmatprep.subr.bf16.mxu0 0
    %1495 = vmatpush1.bf16.msra.mxu0 %v1479
    %1496 = vmatprep.subr.bf16.mxu0 0
    %1497 = vmatpush1.bf16.msra.mxu0 0
    %1498 = vmatprep.subr.bf16.mxu0 0
    %1499 = vmatpush1.bf16.msra.mxu0 0
    %1500 = vmatprep.subr.bf16.mxu0 0
    %1501 = vmatpush1.bf16.msra.mxu0 0
    %1502 = vmatprep.subr.bf16.mxu0 0
    %1503 = vmatpush1.bf16.msra.mxu0 0
    %1504 = vmatprep.subr.bf16.mxu0 0
    %1505 = vmatpush1.bf16.msra.mxu0 0
    %1506 = vmatprep.subr.bf16.mxu0 0
    %1507 = vmatpush1.bf16.msra.mxu0 0
    %1508 = vmatprep.subr.bf16.mxu0 0
    %1509 = vmatpush1.bf16.msra.mxu0 0
    %1510 = vmatprep.subr.bf16.mxu0 0
    %1511 = vmatpush1.bf16.msra.mxu0 0
    %1512 = vmatprep.mubr.bf16.mxu0 0
    %1513 = vmatmul.mubr.bf16.gmra.mrb[0].mxu0 %v1471
    %v1514 = vpop.f32.mrb[0].mxu0
    %v1515 = vadd.f32 0.0, %v1514
    %v1516 = vpop.f32.mrb[0].mxu0
    %v1517 = vpop.f32.mrb[0].mxu0
    %v1518 = vadd.f32 0.0, %v1517
    %v1519 = vpop.f32.mrb[0].mxu0
    %1520 = vdwg.mxu0
    %vm1521 = vcmask 15360
    %v1523 = vsel %vm1521, %v1387, 0
    %v1526 = vsel %vm1521, %v1515, 0
    %v1529 = vsel %vm1521, %v1518, 0
    %1531 = vmatprep.subr.mxu0 0.0
    %1532 = vmatpush1.xpose.msra.mxu0 %v1526
    %1533 = vmatprep.subr.mxu0 0.0
    %1534 = vmatpush1.xpose.msra.mxu0 %v1529
    %1535 = vmatprep.subr.mxu0 0.0
    %1536 = vmatpush1.xpose.msra.mxu0 0.0
    %1537 = vmatprep.subr.mxu0 0.0
    %1538 = vmatpush1.xpose.msra.mxu0 0.0
    %1539 = vmatprep.subr.mxu0 0.0
    %1540 = vmatpush1.xpose.msra.mxu0 0.0
    %1541 = vmatprep.subr.mxu0 0.0
    %1542 = vmatpush1.xpose.msra.mxu0 0.0
    %1543 = vmatprep.subr.mxu0 0.0
    %1544 = vmatpush1.xpose.msra.mxu0 0.0
    %1545 = vmatprep.subr.mxu0 0.0
    %1546 = vmatpush1.xpose.msra.mxu0 0.0
    %1547 = vmatprep.subr.mxu0 0.0
    %1548 = vmatpush1.xpose.msra.mxu0 0.0
    %1549 = vmatprep.subr.mxu0 0.0
    %1550 = vmatpush1.xpose.msra.mxu0 0.0
    %1551 = vmatprep.subr.mxu0 0.0
    %1552 = vmatpush1.xpose.msra.mxu0 0.0
    %1553 = vmatprep.subr.mxu0 0.0
    %1554 = vmatpush1.xpose.msra.mxu0 0.0
    %1555 = vmatprep.subr.mxu0 0.0
    %1556 = vmatpush1.xpose.msra.mxu0 0.0
    %1557 = vmatprep.subr.mxu0 0.0
    %1558 = vmatpush1.xpose.msra.mxu0 0.0
    %1559 = vmatprep.subr.mxu0 0.0
    %1560 = vmatpush1.xpose.msra.mxu0 0.0
    %1561 = vmatprep.subr.mxu0 0.0
    %1562 = vmatpush1.xpose.msra.mxu0 0.0
    %1563 = vmatprep.subr.mxu0 0.0
    %1564 = vmatpush1.xpose.msra.mxu0 0.0
    %1565 = vmatprep.subr.mxu0 0.0
    %1566 = vmatpush1.xpose.msra.mxu0 0.0
    %1567 = vmatprep.subr.mxu0 0.0
    %1568 = vmatpush1.xpose.msra.mxu0 0.0
    %1569 = vmatprep.subr.mxu0 0.0
    %1570 = vmatpush1.xpose.msra.mxu0 0.0
    %1571 = vmatprep.subr.mxu0 0.0
    %1572 = vmatpush1.xpose.msra.mxu0 0.0
    %1573 = vmatprep.subr.mxu0 0.0
    %1574 = vmatpush1.xpose.msra.mxu0 0.0
    %1575 = vmatprep.subr.mxu0 0.0
    %1576 = vmatpush1.xpose.msra.mxu0 0.0
    %1577 = vmatprep.subr.mxu0 0.0
    %1578 = vmatpush1.xpose.msra.mxu0 0.0
    %1579 = vmatprep.subr.mxu0 0.0
    %1580 = vmatpush1.xpose.msra.mxu0 0.0
    %1581 = vmatprep.subr.mxu0 0.0
    %1582 = vmatpush1.xpose.msra.mxu0 0.0
    %1583 = vmatprep.subr.mxu0 0.0
    %1584 = vmatpush1.xpose.msra.mxu0 0.0
    %1585 = vmatprep.subr.mxu0 0.0
    %1586 = vmatpush1.xpose.msra.mxu0 0.0
    %1587 = vmatprep.subr.mxu0 0.0
    %1588 = vmatpush1.xpose.msra.mxu0 0.0
    %1589 = vmatprep.subr.mxu0 0.0
    %1590 = vmatpush1.xpose.msra.mxu0 0.0
    %1591 = vmatprep.subr.mxu0 0.0
    %1592 = vmatpush1.xpose.msra.mxu0 0.0
    %1593 = vmatprep.subr.mxu0 0.0
    %1594 = vmatpush1.xpose.msra.mxu0 0.0
    %1595 = vmatprep.mubr.f32.mxu0 0.0
    %1596 = vmatmul.mubr.f32.gmra.mrb[0].mxu0 %v1523
    %v1597 = vpop.f32.mrb[0].mxu0
    %v1598 = vadd.f32 0.0, %v1597
    %v1599 = vpop.f32.mrb[0].mxu0
    %1600 = vdwg.mxu0
    %1601 = vset.pattern.permute.xlu0 0
    %1602 = vperm.xlu0 %1601, %v1515
    %v1603 = vpop.permute.xlu0 %1602
    %1605 = vset.pattern.permute.xlu0 0
    %1606 = vperm.xlu0 %1605, %v1518
    %v1607 = vpop.permute.xlu0 %1606
    %v1609 = vlaneseq
    %v1610 = vshrl.u32 %v1609, 7
    %v1611 = vsub.s32 0, %v1610
    %v1612 = vrot.slane %v1598, %v1611
    %v1613 = vadd.f32 %v1603, %v1612
    %v1614 = vadd.f32 %v1607, %v1612
    %vm1615 = vcmp.gt.f32.partialorder %v1613, 0.0
    %vm1616 = vcmp.gt.f32.partialorder %v1614, 0.0
    %v1617 = vmul.f32 %v1613, 0.2
    %v1618 = vmul.f32 %v1614, 0.2
    %v1619 = vsel %vm1615, %v1613, %v1617
    %v1620 = vsel %vm1616, %v1614, %v1618
    %vm1621 = vcmp.gt.f32.partialorder %v722, 0.0
    %vm1622 = vcmp.gt.f32.partialorder %v723, 0.0
    %v1623 = vsel %vm1621, %v1619, -1e+30
    %v1624 = vsel %vm1622, %v1620, -1e+30
    %vm1625 = vcmask 130048
    %v1626 = vsel %vm1625, %v1623, -inf
    %1627 = vmax.xlane.f32.xlu0 %v1626
    %v1628 = vpop.xlane.xlu0 %1627
    %v1629 = vsel %vm1625, %v1624, -inf
    %1630 = vmax.xlane.f32.xlu0 %v1629
    %v1631 = vpop.xlane.xlu0 %1630
    %v1632 = vsub.f32 %v1623, %v1628
    %v1633 = vsub.f32 %v1624, %v1631
    %v1634 = vmul.f32 %v1632, 1.442695
    %v1635 = vpow.pop %v1634
    %v1636 = vmul.f32 %v1633, 1.442695
    %v1637 = vpow.pop %v1636
    %v1638 = vsel %vm1625, %v1635, 0.0
    %1639 = vadd.xlane.f32.xlu0 %v1638
    %v1640 = vpop.xlane.xlu0 %1639
    %v1641 = vsel %vm1625, %v1637, 0.0
    %1642 = vadd.xlane.f32.xlu0 %v1641
    %v1643 = vpop.xlane.xlu0 %1642
    %v1644 = vrcp.pop %v1640
    %v1645 = vrcp.pop %v1643
    %v1646 = vmul.f32 %v1635, %v1644
    %v1647 = vmul.f32 %v1637, %v1645
    %v1648 = vpack.c.bf16 %v1647, %v1646
    %v1650 = vlaneseq
    %v1651 = vshrl.u32 %v1650, 7
    %v1652 = vsub.s32 0, %v1651
    %v1653 = vrot.slane %v1420, %v1652
    %v1656 = vsel %vm1625, %v1648, 0
    %1658 = vmatprep.subr.bf16.mxu0 0
    %1659 = vmatpush1.bf16.msra.mxu0 %v1471
    %1660 = vmatprep.subr.bf16.mxu0 0
    %1661 = vmatpush1.bf16.msra.mxu0 0
    %1662 = vmatprep.subr.bf16.mxu0 0
    %1663 = vmatpush1.bf16.msra.mxu0 0
    %1664 = vmatprep.subr.bf16.mxu0 0
    %1665 = vmatpush1.bf16.msra.mxu0 0
    %1666 = vmatprep.subr.bf16.mxu0 0
    %1667 = vmatpush1.bf16.msra.mxu0 0
    %1668 = vmatprep.subr.bf16.mxu0 0
    %1669 = vmatpush1.bf16.msra.mxu0 0
    %1670 = vmatprep.subr.bf16.mxu0 0
    %1671 = vmatpush1.bf16.msra.mxu0 0
    %1672 = vmatprep.subr.bf16.mxu0 0
    %1673 = vmatpush1.bf16.msra.mxu0 0
    %1674 = vmatprep.subr.bf16.mxu0 0
    %1675 = vmatpush1.bf16.msra.mxu0 0
    %1676 = vmatprep.subr.bf16.mxu0 0
    %1677 = vmatpush1.bf16.msra.mxu0 0
    %1678 = vmatprep.subr.bf16.mxu0 0
    %1679 = vmatpush1.bf16.msra.mxu0 0
    %1680 = vmatprep.subr.bf16.mxu0 0
    %1681 = vmatpush1.bf16.msra.mxu0 0
    %1682 = vmatprep.subr.bf16.mxu0 0
    %1683 = vmatpush1.bf16.msra.mxu0 0
    %1684 = vmatprep.subr.bf16.mxu0 0
    %1685 = vmatpush1.bf16.msra.mxu0 0
    %1686 = vmatprep.subr.bf16.mxu0 0
    %1687 = vmatpush1.bf16.msra.mxu0 0
    %1688 = vmatprep.subr.bf16.mxu0 0
    %1689 = vmatpush1.bf16.msra.mxu0 0
    %1690 = vmatprep.mubr.bf16.mxu0 0
    %1691 = vmatmul.mubr.bf16.gmra.mrb[0].mxu0 %v1656
    %v1692 = vpop.f32.mrb[0].mxu0
    %v1693 = vadd.f32 %v1653, %v1692
    %v1694 = vpop.f32.mrb[0].mxu0
    %v1695 = vpop.f32.mrb[0].mxu0
    %v1696 = vadd.f32 %v1653, %v1695
    %v1697 = vpop.f32.mrb[0].mxu0
    %1698 = vdwg.mxu0
    %vm1699 = vcmp.gt.f32.partialorder %v1693, 0.0
    %vm1700 = vcmp.gt.f32.partialorder %v1696, 0.0
    %v1701 = vmul.f32 %v1693, 0.01
    %v1702 = vmul.f32 %v1696, 0.01
    %v1703 = vsel %vm1699, %v1693, %v1701
    %v1704 = vsel %vm1700, %v1696, %v1702
    %v1705 = vld [vmem:[#allocation22] sm:$0xff]
    %v1706 = vld [vmem:[#allocation22 + $0x8] sm:$0xff]
    %v1707 = vld [vmem:[#allocation22 + $0x10] sm:$0xff]
    %v1708 = vld [vmem:[#allocation22 + $0x18] sm:$0xff]
    %v1709 = vld [vmem:[#allocation22 + $0x20] sm:$0xff]
    %v1710 = vld [vmem:[#allocation22 + $0x28] sm:$0xff]
    %v1711 = vld [vmem:[#allocation22 + $0x30] sm:$0xff]
    %v1712 = vld [vmem:[#allocation22 + $0x38] sm:$0xff]
    %v1713 = vld [vmem:[#allocation22 + $0x40] sm:$0xff]
    %v1714 = vld [vmem:[#allocation22 + $0x48] sm:$0xff]
    %v1715 = vld [vmem:[#allocation22 + $0x50] sm:$0xff]
    %v1716 = vld [vmem:[#allocation22 + $0x58] sm:$0xff]
    %v1717 = vld [vmem:[#allocation22 + $0x60] sm:$0xff]
    %v1718 = vld [vmem:[#allocation22 + $0x68] sm:$0xff]
    %v1719 = vld [vmem:[#allocation22 + $0x70] sm:$0xff]
    %v1720 = vld [vmem:[#allocation22 + $0x78] sm:$0xff]
    %v1721 = vld [vmem:[%s39] sm:$0xff]
    %v1722 = vld [vmem:[%s39 + $0x8] sm:$0xff]
    %v1723 = vld [vmem:[%s39 + $0x10] sm:$0xff]
    %v1724 = vld [vmem:[%s39 + $0x18] sm:$0xff]
    %v1725 = vld [vmem:[%s39 + $0x20] sm:$0xff]
    %v1726 = vld [vmem:[%s39 + $0x28] sm:$0xff]
    %v1727 = vld [vmem:[%s39 + $0x30] sm:$0xff]
    %v1728 = vld [vmem:[%s39 + $0x38] sm:$0xff]
    %v1729 = vld [vmem:[%s39 + $0x40] sm:$0xff]
    %v1730 = vld [vmem:[%s39 + $0x48] sm:$0xff]
    %v1731 = vld [vmem:[%s39 + $0x50] sm:$0xff]
    %v1732 = vld [vmem:[%s39 + $0x58] sm:$0xff]
    %v1733 = vld [vmem:[%s39 + $0x60] sm:$0xff]
    %v1734 = vld [vmem:[%s39 + $0x68] sm:$0xff]
    %v1735 = vld [vmem:[%s39 + $0x70] sm:$0xff]
    %v1736 = vld [vmem:[%s39 + $0x78] sm:$0xff]
    %v1737 = vld [vmem:[#allocation23] sm:$0x1]
    %v1738 = vpack.c.bf16 %v1704, %v1703
    %v1739 = vpack.c.bf16 %v1706, %v1705
    %v1740 = vpack.c.bf16 %v1708, %v1707
    %v1741 = vpack.c.bf16 %v1710, %v1709
    %v1742 = vpack.c.bf16 %v1712, %v1711
    %v1743 = vpack.c.bf16 %v1714, %v1713
    %v1744 = vpack.c.bf16 %v1716, %v1715
    %v1745 = vpack.c.bf16 %v1718, %v1717
    %v1746 = vpack.c.bf16 %v1720, %v1719
    %1747 = vmatprep.subr.bf16.mxu0 0
    %1748 = vmatpush1.bf16.msra.mxu0 %v1739
    %1749 = vmatprep.subr.bf16.mxu0 0
    %1750 = vmatpush1.bf16.msra.mxu0 %v1740
    %1751 = vmatprep.subr.bf16.mxu0 0
    %1752 = vmatpush1.bf16.msra.mxu0 %v1741
    %1753 = vmatprep.subr.bf16.mxu0 0
    %1754 = vmatpush1.bf16.msra.mxu0 %v1742
    %1755 = vmatprep.subr.bf16.mxu0 0
    %1756 = vmatpush1.bf16.msra.mxu0 %v1743
    %1757 = vmatprep.subr.bf16.mxu0 0
    %1758 = vmatpush1.bf16.msra.mxu0 %v1744
    %1759 = vmatprep.subr.bf16.mxu0 0
    %1760 = vmatpush1.bf16.msra.mxu0 %v1745
    %1761 = vmatprep.subr.bf16.mxu0 0
    %1762 = vmatpush1.bf16.msra.mxu0 %v1746
    %1763 = vmatprep.subr.bf16.mxu0 0
    %1764 = vmatpush1.bf16.msra.mxu0 0
    %1765 = vmatprep.subr.bf16.mxu0 0
    %1766 = vmatpush1.bf16.msra.mxu0 0
    %1767 = vmatprep.subr.bf16.mxu0 0
    %1768 = vmatpush1.bf16.msra.mxu0 0
    %1769 = vmatprep.subr.bf16.mxu0 0
    %1770 = vmatpush1.bf16.msra.mxu0 0
    %1771 = vmatprep.subr.bf16.mxu0 0
    %1772 = vmatpush1.bf16.msra.mxu0 0
    %1773 = vmatprep.subr.bf16.mxu0 0
    %1774 = vmatpush1.bf16.msra.mxu0 0
    %1775 = vmatprep.subr.bf16.mxu0 0
    %1776 = vmatpush1.bf16.msra.mxu0 0
    %1777 = vmatprep.subr.bf16.mxu0 0
    %1778 = vmatpush1.bf16.msra.mxu0 0
    %1779 = vmatprep.mubr.bf16.mxu0 0
    %1780 = vmatmul.mubr.bf16.gmra.mrb[0].mxu0 %v1738
    %v1781 = vpop.f32.mrb[0].mxu0
    %v1782 = vadd.f32 0.0, %v1781
    %v1783 = vpop.f32.mrb[0].mxu0
    %v1784 = vpop.f32.mrb[0].mxu0
    %v1785 = vadd.f32 0.0, %v1784
    %v1786 = vpop.f32.mrb[0].mxu0
    %1787 = vdwg.mxu0
    %v1788 = vpack.c.bf16 %v1785, %v1782
    %v1789 = vpack.c.bf16 %v1722, %v1721
    %v1790 = vpack.c.bf16 %v1724, %v1723
    %v1791 = vpack.c.bf16 %v1726, %v1725
    %v1792 = vpack.c.bf16 %v1728, %v1727
    %v1793 = vpack.c.bf16 %v1730, %v1729
    %v1794 = vpack.c.bf16 %v1732, %v1731
    %v1795 = vpack.c.bf16 %v1734, %v1733
    %v1796 = vpack.c.bf16 %v1736, %v1735
    %1797 = vmatprep.subr.bf16.mxu0 0
    %1798 = vmatpush1.bf16.msra.mxu0 %v1789
    %1799 = vmatprep.subr.bf16.mxu0 0
    %1800 = vmatpush1.bf16.msra.mxu0 %v1790
    %1801 = vmatprep.subr.bf16.mxu0 0
    %1802 = vmatpush1.bf16.msra.mxu0 %v1791
    %1803 = vmatprep.subr.bf16.mxu0 0
    %1804 = vmatpush1.bf16.msra.mxu0 %v1792
    %1805 = vmatprep.subr.bf16.mxu0 0
    %1806 = vmatpush1.bf16.msra.mxu0 %v1793
    %1807 = vmatprep.subr.bf16.mxu0 0
    %1808 = vmatpush1.bf16.msra.mxu0 %v1794
    %1809 = vmatprep.subr.bf16.mxu0 0
    %1810 = vmatpush1.bf16.msra.mxu0 %v1795
    %1811 = vmatprep.subr.bf16.mxu0 0
    %1812 = vmatpush1.bf16.msra.mxu0 %v1796
    %1813 = vmatprep.subr.bf16.mxu0 0
    %1814 = vmatpush1.bf16.msra.mxu0 0
    %1815 = vmatprep.subr.bf16.mxu0 0
    %1816 = vmatpush1.bf16.msra.mxu0 0
    %1817 = vmatprep.subr.bf16.mxu0 0
    %1818 = vmatpush1.bf16.msra.mxu0 0
    %1819 = vmatprep.subr.bf16.mxu0 0
    %1820 = vmatpush1.bf16.msra.mxu0 0
    %1821 = vmatprep.subr.bf16.mxu0 0
    %1822 = vmatpush1.bf16.msra.mxu0 0
    %1823 = vmatprep.subr.bf16.mxu0 0
    %1824 = vmatpush1.bf16.msra.mxu0 0
    %1825 = vmatprep.subr.bf16.mxu0 0
    %1826 = vmatpush1.bf16.msra.mxu0 0
    %1827 = vmatprep.subr.bf16.mxu0 0
    %1828 = vmatpush1.bf16.msra.mxu0 0
    %1829 = vmatprep.mubr.bf16.mxu0 0
    %1830 = vmatmul.mubr.bf16.gmra.mrb[0].mxu0 %v1788
    %v1831 = vpop.f32.mrb[0].mxu0
    %v1832 = vadd.f32 0.0, %v1831
    %v1833 = vpop.f32.mrb[0].mxu0
    %v1834 = vpop.f32.mrb[0].mxu0
    %v1835 = vadd.f32 0.0, %v1834
    %v1836 = vpop.f32.mrb[0].mxu0
    %1837 = vdwg.mxu0
    %v1839 = vsel %vm1521, %v1832, 0
    %v1842 = vsel %vm1521, %v1835, 0
    %1844 = vmatprep.subr.mxu0 0.0
    %1845 = vmatpush1.xpose.msra.mxu0 %v1839
    %1846 = vmatprep.subr.mxu0 0.0
    %1847 = vmatpush1.xpose.msra.mxu0 %v1842
    %1848 = vmatprep.subr.mxu0 0.0
    %1849 = vmatpush1.xpose.msra.mxu0 0.0
    %1850 = vmatprep.subr.mxu0 0.0
    %1851 = vmatpush1.xpose.msra.mxu0 0.0
    %1852 = vmatprep.subr.mxu0 0.0
    %1853 = vmatpush1.xpose.msra.mxu0 0.0
    %1854 = vmatprep.subr.mxu0 0.0
    %1855 = vmatpush1.xpose.msra.mxu0 0.0
    %1856 = vmatprep.subr.mxu0 0.0
    %1857 = vmatpush1.xpose.msra.mxu0 0.0
    %1858 = vmatprep.subr.mxu0 0.0
    %1859 = vmatpush1.xpose.msra.mxu0 0.0
    %1860 = vmatprep.subr.mxu0 0.0
    %1861 = vmatpush1.xpose.msra.mxu0 0.0
    %1862 = vmatprep.subr.mxu0 0.0
    %1863 = vmatpush1.xpose.msra.mxu0 0.0
    %1864 = vmatprep.subr.mxu0 0.0
    %1865 = vmatpush1.xpose.msra.mxu0 0.0
    %1866 = vmatprep.subr.mxu0 0.0
    %1867 = vmatpush1.xpose.msra.mxu0 0.0
    %1868 = vmatprep.subr.mxu0 0.0
    %1869 = vmatpush1.xpose.msra.mxu0 0.0
    %1870 = vmatprep.subr.mxu0 0.0
    %1871 = vmatpush1.xpose.msra.mxu0 0.0
    %1872 = vmatprep.subr.mxu0 0.0
    %1873 = vmatpush1.xpose.msra.mxu0 0.0
    %1874 = vmatprep.subr.mxu0 0.0
    %1875 = vmatpush1.xpose.msra.mxu0 0.0
    %1876 = vmatprep.subr.mxu0 0.0
    %1877 = vmatpush1.xpose.msra.mxu0 0.0
    %1878 = vmatprep.subr.mxu0 0.0
    %1879 = vmatpush1.xpose.msra.mxu0 0.0
    %1880 = vmatprep.subr.mxu0 0.0
    %1881 = vmatpush1.xpose.msra.mxu0 0.0
    %1882 = vmatprep.subr.mxu0 0.0
    %1883 = vmatpush1.xpose.msra.mxu0 0.0
    %1884 = vmatprep.subr.mxu0 0.0
    %1885 = vmatpush1.xpose.msra.mxu0 0.0
    %1886 = vmatprep.subr.mxu0 0.0
    %1887 = vmatpush1.xpose.msra.mxu0 0.0
    %1888 = vmatprep.subr.mxu0 0.0
    %1889 = vmatpush1.xpose.msra.mxu0 0.0
    %1890 = vmatprep.subr.mxu0 0.0
    %1891 = vmatpush1.xpose.msra.mxu0 0.0
    %1892 = vmatprep.subr.mxu0 0.0
    %1893 = vmatpush1.xpose.msra.mxu0 0.0
    %1894 = vmatprep.subr.mxu0 0.0
    %1895 = vmatpush1.xpose.msra.mxu0 0.0
    %1896 = vmatprep.subr.mxu0 0.0
    %1897 = vmatpush1.xpose.msra.mxu0 0.0
    %1898 = vmatprep.subr.mxu0 0.0
    %1899 = vmatpush1.xpose.msra.mxu0 0.0
    %1900 = vmatprep.subr.mxu0 0.0
    %1901 = vmatpush1.xpose.msra.mxu0 0.0
    %1902 = vmatprep.subr.mxu0 0.0
    %1903 = vmatpush1.xpose.msra.mxu0 0.0
    %1904 = vmatprep.subr.mxu0 0.0
    %1905 = vmatpush1.xpose.msra.mxu0 0.0
    %1906 = vmatprep.subr.mxu0 0.0
    %1907 = vmatpush1.xpose.msra.mxu0 0.0
    %1908 = vmatprep.mubr.f32.mxu0 0.0
    %1909 = vmatmul.mubr.f32.gmra.mrb[0].mxu0 %v1523
    %v1910 = vpop.f32.mrb[0].mxu0
    %v1911 = vadd.f32 0.0, %v1910
    %v1912 = vpop.f32.mrb[0].mxu0
    %1913 = vdwg.mxu0
    %1914 = vset.pattern.permute.xlu0 0
    %1915 = vperm.xlu0 %1914, %v1832
    %v1916 = vpop.permute.xlu0 %1915
    %1918 = vset.pattern.permute.xlu0 0
    %1919 = vperm.xlu0 %1918, %v1835
    %v1920 = vpop.permute.xlu0 %1919
    %v1922 = vlaneseq
    %v1923 = vshrl.u32 %v1922, 7
    %v1924 = vsub.s32 0, %v1923
    %v1925 = vrot.slane %v1911, %v1924
    %v1926 = vadd.f32 %v1916, %v1925
    %v1927 = vadd.f32 %v1920, %v1925
    %vm1928 = vcmp.gt.f32.partialorder %v1926, 0.0
    %vm1929 = vcmp.gt.f32.partialorder %v1927, 0.0
    %v1930 = vmul.f32 %v1926, 0.2
    %v1931 = vmul.f32 %v1927, 0.2
    %v1932 = vsel %vm1928, %v1926, %v1930
    %v1933 = vsel %vm1929, %v1927, %v1931
    %v1934 = vsel %vm1621, %v1932, -1e+30
    %v1935 = vsel %vm1622, %v1933, -1e+30
    %v1936 = vsel %vm1625, %v1934, -inf
    %1937 = vmax.xlane.f32.xlu0 %v1936
    %v1938 = vpop.xlane.xlu0 %1937
    %v1939 = vsel %vm1625, %v1935, -inf
    %1940 = vmax.xlane.f32.xlu0 %v1939
    %v1941 = vpop.xlane.xlu0 %1940
    %v1942 = vsub.f32 %v1934, %v1938
    %v1943 = vsub.f32 %v1935, %v1941
    %v1944 = vmul.f32 %v1942, 1.442695
    %v1945 = vpow.pop %v1944
    %v1946 = vmul.f32 %v1943, 1.442695
    %v1947 = vpow.pop %v1946
    %v1948 = vsel %vm1625, %v1945, 0.0
    %1949 = vadd.xlane.f32.xlu0 %v1948
    %v1950 = vpop.xlane.xlu0 %1949
    %v1951 = vsel %vm1625, %v1947, 0.0
    %1952 = vadd.xlane.f32.xlu0 %v1951
    %v1953 = vpop.xlane.xlu0 %1952
    %v1954 = vrcp.pop %v1950
    %v1955 = vrcp.pop %v1953
    %v1956 = vmul.f32 %v1945, %v1954
    %v1957 = vmul.f32 %v1947, %v1955
    %v1958 = vpack.c.bf16 %v1957, %v1956
    %v1960 = vlaneseq
    %v1961 = vshrl.u32 %v1960, 7
    %v1962 = vsub.s32 0, %v1961
    %v1963 = vrot.slane %v1737, %v1962
    %v1966 = vsel %vm1625, %v1958, 0
    %1968 = vmatprep.subr.bf16.mxu0 0
    %1969 = vmatpush1.bf16.msra.mxu0 %v1788
    %1970 = vmatprep.subr.bf16.mxu0 0
    %1971 = vmatpush1.bf16.msra.mxu0 0
    %1972 = vmatprep.subr.bf16.mxu0 0
    %1973 = vmatpush1.bf16.msra.mxu0 0
    %1974 = vmatprep.subr.bf16.mxu0 0
    %1975 = vmatpush1.bf16.msra.mxu0 0
    %1976 = vmatprep.subr.bf16.mxu0 0
    %1977 = vmatpush1.bf16.msra.mxu0 0
    %1978 = vmatprep.subr.bf16.mxu0 0
    %1979 = vmatpush1.bf16.msra.mxu0 0
    %1980 = vmatprep.subr.bf16.mxu0 0
    %1981 = vmatpush1.bf16.msra.mxu0 0
    %1982 = vmatprep.subr.bf16.mxu0 0
    %1983 = vmatpush1.bf16.msra.mxu0 0
    %1984 = vmatprep.subr.bf16.mxu0 0
    %1985 = vmatpush1.bf16.msra.mxu0 0
    %1986 = vmatprep.subr.bf16.mxu0 0
    %1987 = vmatpush1.bf16.msra.mxu0 0
    %1988 = vmatprep.subr.bf16.mxu0 0
    %1989 = vmatpush1.bf16.msra.mxu0 0
    %1990 = vmatprep.subr.bf16.mxu0 0
    %1991 = vmatpush1.bf16.msra.mxu0 0
    %1992 = vmatprep.subr.bf16.mxu0 0
    %1993 = vmatpush1.bf16.msra.mxu0 0
    %1994 = vmatprep.subr.bf16.mxu0 0
    %1995 = vmatpush1.bf16.msra.mxu0 0
    %1996 = vmatprep.subr.bf16.mxu0 0
    %1997 = vmatpush1.bf16.msra.mxu0 0
    %1998 = vmatprep.subr.bf16.mxu0 0
    %1999 = vmatpush1.bf16.msra.mxu0 0
    %2000 = vmatprep.mubr.bf16.mxu0 0
    %2001 = vmatmul.mubr.bf16.gmra.mrb[0].mxu0 %v1966
    %v2002 = vpop.f32.mrb[0].mxu0
    %v2003 = vadd.f32 %v1963, %v2002
    %v2004 = vpop.f32.mrb[0].mxu0
    %v2005 = vpop.f32.mrb[0].mxu0
    %v2006 = vadd.f32 %v1963, %v2005
    %v2007 = vpop.f32.mrb[0].mxu0
    %2008 = vdwg.mxu0
    %vm2009 = vcmp.gt.f32.partialorder %v2003, 0.0
    %vm2010 = vcmp.gt.f32.partialorder %v2006, 0.0
    %v2011 = vmul.f32 %v2003, 0.01
    %v2012 = vmul.f32 %v2006, 0.01
    %v2013 = vsel %vm2009, %v2003, %v2011
    %v2014 = vsel %vm2010, %v2006, %v2012
    %v2015 = vld [vmem:[%s43] sm:$0xff]
    %v2016 = vld [vmem:[%s43 + $0x8] sm:$0xff]
    %v2017 = vld [vmem:[%s43 + $0x10] sm:$0xff]
    %v2018 = vld [vmem:[%s43 + $0x18] sm:$0xff]
    %v2019 = vld [vmem:[%s43 + $0x20] sm:$0xff]
    %v2020 = vld [vmem:[%s43 + $0x28] sm:$0xff]
    %v2021 = vld [vmem:[%s43 + $0x30] sm:$0xff]
    %v2022 = vld [vmem:[%s43 + $0x38] sm:$0xff]
    %v2023 = vld [vmem:[%s43 + $0x40] sm:$0xff]
    %v2024 = vld [vmem:[%s43 + $0x48] sm:$0xff]
    %v2025 = vld [vmem:[%s43 + $0x50] sm:$0xff]
    %v2026 = vld [vmem:[%s43 + $0x58] sm:$0xff]
    %v2027 = vld [vmem:[%s43 + $0x60] sm:$0xff]
    %v2028 = vld [vmem:[%s43 + $0x68] sm:$0xff]
    %v2029 = vld [vmem:[%s43 + $0x70] sm:$0xff]
    %v2030 = vld [vmem:[%s43 + $0x78] sm:$0xff]
    %v2031 = vld [vmem:[%s45] sm:$0xff]
    %v2032 = vld [vmem:[%s45 + $0x8] sm:$0xff]
    %v2033 = vld [vmem:[%s45 + $0x10] sm:$0xff]
    %v2034 = vld [vmem:[%s45 + $0x18] sm:$0xff]
    %v2035 = vld [vmem:[%s45 + $0x20] sm:$0xff]
    %v2036 = vld [vmem:[%s45 + $0x28] sm:$0xff]
    %v2037 = vld [vmem:[%s45 + $0x30] sm:$0xff]
    %v2038 = vld [vmem:[%s45 + $0x38] sm:$0xff]
    %v2039 = vld [vmem:[#allocation25] sm:$0x1]
    %v2040 = vpack.c.bf16 %v2014, %v2013
    %v2041 = vpack.c.bf16 %v2016, %v2015
    %v2042 = vpack.c.bf16 %v2018, %v2017
    %v2043 = vpack.c.bf16 %v2020, %v2019
    %v2044 = vpack.c.bf16 %v2022, %v2021
    %v2045 = vpack.c.bf16 %v2024, %v2023
    %v2046 = vpack.c.bf16 %v2026, %v2025
    %v2047 = vpack.c.bf16 %v2028, %v2027
    %v2048 = vpack.c.bf16 %v2030, %v2029
    %2049 = vmatprep.subr.bf16.mxu0 0
    %2050 = vmatpush1.bf16.msra.mxu0 %v2041
    %2051 = vmatprep.subr.bf16.mxu0 0
    %2052 = vmatpush1.bf16.msra.mxu0 %v2042
    %2053 = vmatprep.subr.bf16.mxu0 0
    %2054 = vmatpush1.bf16.msra.mxu0 %v2043
    %2055 = vmatprep.subr.bf16.mxu0 0
    %2056 = vmatpush1.bf16.msra.mxu0 %v2044
    %2057 = vmatprep.subr.bf16.mxu0 0
    %2058 = vmatpush1.bf16.msra.mxu0 %v2045
    %2059 = vmatprep.subr.bf16.mxu0 0
    %2060 = vmatpush1.bf16.msra.mxu0 %v2046
    %2061 = vmatprep.subr.bf16.mxu0 0
    %2062 = vmatpush1.bf16.msra.mxu0 %v2047
    %2063 = vmatprep.subr.bf16.mxu0 0
    %2064 = vmatpush1.bf16.msra.mxu0 %v2048
    %2065 = vmatprep.subr.bf16.mxu0 0
    %2066 = vmatpush1.bf16.msra.mxu0 0
    %2067 = vmatprep.subr.bf16.mxu0 0
    %2068 = vmatpush1.bf16.msra.mxu0 0
    %2069 = vmatprep.subr.bf16.mxu0 0
    %2070 = vmatpush1.bf16.msra.mxu0 0
    %2071 = vmatprep.subr.bf16.mxu0 0
    %2072 = vmatpush1.bf16.msra.mxu0 0
    %2073 = vmatprep.subr.bf16.mxu0 0
    %2074 = vmatpush1.bf16.msra.mxu0 0
    %2075 = vmatprep.subr.bf16.mxu0 0
    %2076 = vmatpush1.bf16.msra.mxu0 0
    %2077 = vmatprep.subr.bf16.mxu0 0
    %2078 = vmatpush1.bf16.msra.mxu0 0
    %2079 = vmatprep.subr.bf16.mxu0 0
    %2080 = vmatpush1.bf16.msra.mxu0 0
    %2081 = vmatprep.mubr.bf16.mxu0 0
    %2082 = vmatmul.mubr.bf16.gmra.mrb[0].mxu0 %v2040
    %v2083 = vpop.f32.mrb[0].mxu0
    %v2084 = vadd.f32 0.0, %v2083
    %v2085 = vpop.f32.mrb[0].mxu0
    %v2086 = vpop.f32.mrb[0].mxu0
    %v2087 = vadd.f32 0.0, %v2086
    %v2088 = vpop.f32.mrb[0].mxu0
    %2089 = vdwg.mxu0
    %v2090 = vpack.c.bf16 %v2087, %v2084
    %v2091 = vpack.c.bf16 %v2032, %v2031
    %v2092 = vpack.c.bf16 %v2034, %v2033
    %v2093 = vpack.c.bf16 %v2036, %v2035
    %v2094 = vpack.c.bf16 %v2038, %v2037
    %vm2095 = vcmask 523264
    %v2097 = vsel %vm2095, %v2090, 0
    %2099 = vmatprep.subr.bf16.mxu0 0
    %2100 = vmatpush1.bf16.msra.mxu0 %v2091
    %2101 = vmatprep.subr.bf16.mxu0 0
    %2102 = vmatpush1.bf16.msra.mxu0 %v2092
    %2103 = vmatprep.subr.bf16.mxu0 0
    %2104 = vmatpush1.bf16.msra.mxu0 %v2093
    %2105 = vmatprep.subr.bf16.mxu0 0
    %2106 = vmatpush1.bf16.msra.mxu0 %v2094
    %2107 = vmatprep.subr.bf16.mxu0 0
    %2108 = vmatpush1.bf16.msra.mxu0 0
    %2109 = vmatprep.subr.bf16.mxu0 0
    %2110 = vmatpush1.bf16.msra.mxu0 0
    %2111 = vmatprep.subr.bf16.mxu0 0
    %2112 = vmatpush1.bf16.msra.mxu0 0
    %2113 = vmatprep.subr.bf16.mxu0 0
    %2114 = vmatpush1.bf16.msra.mxu0 0
    %2115 = vmatprep.subr.bf16.mxu0 0
    %2116 = vmatpush1.bf16.msra.mxu0 0
    %2117 = vmatprep.subr.bf16.mxu0 0
    %2118 = vmatpush1.bf16.msra.mxu0 0
    %2119 = vmatprep.subr.bf16.mxu0 0
    %2120 = vmatpush1.bf16.msra.mxu0 0
    %2121 = vmatprep.subr.bf16.mxu0 0
    %2122 = vmatpush1.bf16.msra.mxu0 0
    %2123 = vmatprep.subr.bf16.mxu0 0
    %2124 = vmatpush1.bf16.msra.mxu0 0
    %2125 = vmatprep.subr.bf16.mxu0 0
    %2126 = vmatpush1.bf16.msra.mxu0 0
    %2127 = vmatprep.subr.bf16.mxu0 0
    %2128 = vmatpush1.bf16.msra.mxu0 0
    %2129 = vmatprep.subr.bf16.mxu0 0
    %2130 = vmatpush1.bf16.msra.mxu0 0
    %2131 = vmatprep.mubr.bf16.mxu0 0
    %2132 = vmatmul.mubr.bf16.gmra.mrb[0].mxu0 %v2097
    %v2133 = vpop.f32.mrb[0].mxu0
    %v2134 = vadd.f32 0.0, %v2133
    %v2135 = vpop.f32.mrb[0].mxu0
    %v2136 = vpop.f32.mrb[0].mxu0
    %v2137 = vadd.f32 0.0, %v2136
    %v2138 = vpop.f32.mrb[0].mxu0
    %2139 = vdwg.mxu0
    %v2141 = vsel %vm1521, %v2134, 0
    %v2144 = vsel %vm1521, %v2137, 0
    %2146 = vmatprep.subr.mxu0 0.0
    %2147 = vmatpush1.xpose.msra.mxu0 %v2141
    %2148 = vmatprep.subr.mxu0 0.0
    %2149 = vmatpush1.xpose.msra.mxu0 %v2144
    %2150 = vmatprep.subr.mxu0 0.0
    %2151 = vmatpush1.xpose.msra.mxu0 0.0
    %2152 = vmatprep.subr.mxu0 0.0
    %2153 = vmatpush1.xpose.msra.mxu0 0.0
    %2154 = vmatprep.subr.mxu0 0.0
    %2155 = vmatpush1.xpose.msra.mxu0 0.0
    %2156 = vmatprep.subr.mxu0 0.0
    %2157 = vmatpush1.xpose.msra.mxu0 0.0
    %2158 = vmatprep.subr.mxu0 0.0
    %2159 = vmatpush1.xpose.msra.mxu0 0.0
    %2160 = vmatprep.subr.mxu0 0.0
    %2161 = vmatpush1.xpose.msra.mxu0 0.0
    %2162 = vmatprep.subr.mxu0 0.0
    %2163 = vmatpush1.xpose.msra.mxu0 0.0
    %2164 = vmatprep.subr.mxu0 0.0
    %2165 = vmatpush1.xpose.msra.mxu0 0.0
    %2166 = vmatprep.subr.mxu0 0.0
    %2167 = vmatpush1.xpose.msra.mxu0 0.0
    %2168 = vmatprep.subr.mxu0 0.0
    %2169 = vmatpush1.xpose.msra.mxu0 0.0
    %2170 = vmatprep.subr.mxu0 0.0
    %2171 = vmatpush1.xpose.msra.mxu0 0.0
    %2172 = vmatprep.subr.mxu0 0.0
    %2173 = vmatpush1.xpose.msra.mxu0 0.0
    %2174 = vmatprep.subr.mxu0 0.0
    %2175 = vmatpush1.xpose.msra.mxu0 0.0
    %2176 = vmatprep.subr.mxu0 0.0
    %2177 = vmatpush1.xpose.msra.mxu0 0.0
    %2178 = vmatprep.subr.mxu0 0.0
    %2179 = vmatpush1.xpose.msra.mxu0 0.0
    %2180 = vmatprep.subr.mxu0 0.0
    %2181 = vmatpush1.xpose.msra.mxu0 0.0
    %2182 = vmatprep.subr.mxu0 0.0
    %2183 = vmatpush1.xpose.msra.mxu0 0.0
    %2184 = vmatprep.subr.mxu0 0.0
    %2185 = vmatpush1.xpose.msra.mxu0 0.0
    %2186 = vmatprep.subr.mxu0 0.0
    %2187 = vmatpush1.xpose.msra.mxu0 0.0
    %2188 = vmatprep.subr.mxu0 0.0
    %2189 = vmatpush1.xpose.msra.mxu0 0.0
    %2190 = vmatprep.subr.mxu0 0.0
    %2191 = vmatpush1.xpose.msra.mxu0 0.0
    %2192 = vmatprep.subr.mxu0 0.0
    %2193 = vmatpush1.xpose.msra.mxu0 0.0
    %2194 = vmatprep.subr.mxu0 0.0
    %2195 = vmatpush1.xpose.msra.mxu0 0.0
    %2196 = vmatprep.subr.mxu0 0.0
    %2197 = vmatpush1.xpose.msra.mxu0 0.0
    %2198 = vmatprep.subr.mxu0 0.0
    %2199 = vmatpush1.xpose.msra.mxu0 0.0
    %2200 = vmatprep.subr.mxu0 0.0
    %2201 = vmatpush1.xpose.msra.mxu0 0.0
    %2202 = vmatprep.subr.mxu0 0.0
    %2203 = vmatpush1.xpose.msra.mxu0 0.0
    %2204 = vmatprep.subr.mxu0 0.0
    %2205 = vmatpush1.xpose.msra.mxu0 0.0
    %2206 = vmatprep.subr.mxu0 0.0
    %2207 = vmatpush1.xpose.msra.mxu0 0.0
    %2208 = vmatprep.subr.mxu0 0.0
    %2209 = vmatpush1.xpose.msra.mxu0 0.0
    %2210 = vmatprep.mubr.f32.mxu0 0.0
    %2211 = vmatmul.mubr.f32.gmra.mrb[0].mxu0 %v1523
    %v2212 = vpop.f32.mrb[0].mxu0
    %v2213 = vadd.f32 0.0, %v2212
    %v2214 = vpop.f32.mrb[0].mxu0
    %2215 = vdwg.mxu0
    %2216 = vset.pattern.permute.xlu0 0
    %2217 = vperm.xlu0 %2216, %v2134
    %v2218 = vpop.permute.xlu0 %2217
    %2220 = vset.pattern.permute.xlu0 0
    %2221 = vperm.xlu0 %2220, %v2137
    %v2222 = vpop.permute.xlu0 %2221
    %v2224 = vlaneseq
    %v2225 = vshrl.u32 %v2224, 7
    %v2226 = vsub.s32 0, %v2225
    %v2227 = vrot.slane %v2213, %v2226
    %v2228 = vadd.f32 %v2218, %v2227
    %v2229 = vadd.f32 %v2222, %v2227
    %vm2230 = vcmp.gt.f32.partialorder %v2228, 0.0
    %vm2231 = vcmp.gt.f32.partialorder %v2229, 0.0
    %v2232 = vmul.f32 %v2228, 0.2
    %v2233 = vmul.f32 %v2229, 0.2
    %v2234 = vsel %vm2230, %v2228, %v2232
    %v2235 = vsel %vm2231, %v2229, %v2233
    %v2236 = vsel %vm1621, %v2234, -1e+30
    %v2237 = vsel %vm1622, %v2235, -1e+30
    %v2238 = vsel %vm1625, %v2236, -inf
    %2239 = vmax.xlane.f32.xlu0 %v2238
    %v2240 = vpop.xlane.xlu0 %2239
    %v2241 = vsel %vm1625, %v2237, -inf
    %2242 = vmax.xlane.f32.xlu0 %v2241
    %v2243 = vpop.xlane.xlu0 %2242
    %v2244 = vsub.f32 %v2236, %v2240
    %v2245 = vsub.f32 %v2237, %v2243
    %v2246 = vmul.f32 %v2244, 1.442695
    %v2247 = vpow.pop %v2246
    %v2248 = vmul.f32 %v2245, 1.442695
    %v2249 = vpow.pop %v2248
    %v2250 = vsel %vm1625, %v2247, 0.0
    %2251 = vadd.xlane.f32.xlu0 %v2250
    %v2252 = vpop.xlane.xlu0 %2251
    %v2253 = vsel %vm1625, %v2249, 0.0
    %2254 = vadd.xlane.f32.xlu0 %v2253
    %v2255 = vpop.xlane.xlu0 %2254
    %v2256 = vrcp.pop %v2252
    %v2257 = vrcp.pop %v2255
    %v2258 = vmul.f32 %v2247, %v2256
    %v2259 = vmul.f32 %v2249, %v2257
    %v2260 = vpack.c.bf16 %v2259, %v2258
    %v2262 = vlaneseq
    %v2263 = vshrl.u32 %v2262, 7
    %v2264 = vsub.s32 0, %v2263
    %v2265 = vrot.slane %v2039, %v2264
    %v2268 = vsel %vm1625, %v2260, 0
    %2270 = vmatprep.subr.bf16.mxu0 0
    %2271 = vmatpush1.bf16.msra.mxu0 %v2090
    %2272 = vmatprep.subr.bf16.mxu0 0
    %2273 = vmatpush1.bf16.msra.mxu0 0
    %2274 = vmatprep.subr.bf16.mxu0 0
    %2275 = vmatpush1.bf16.msra.mxu0 0
    %2276 = vmatprep.subr.bf16.mxu0 0
    %2277 = vmatpush1.bf16.msra.mxu0 0
    %2278 = vmatprep.subr.bf16.mxu0 0
    %2279 = vmatpush1.bf16.msra.mxu0 0
    %2280 = vmatprep.subr.bf16.mxu0 0
    %2281 = vmatpush1.bf16.msra.mxu0 0
    %2282 = vmatprep.subr.bf16.mxu0 0
    %2283 = vmatpush1.bf16.msra.mxu0 0
    %2284 = vmatprep.subr.bf16.mxu0 0
    %2285 = vmatpush1.bf16.msra.mxu0 0
    %2286 = vmatprep.subr.bf16.mxu0 0
    %2287 = vmatpush1.bf16.msra.mxu0 0
    %2288 = vmatprep.subr.bf16.mxu0 0
    %2289 = vmatpush1.bf16.msra.mxu0 0
    %2290 = vmatprep.subr.bf16.mxu0 0
    %2291 = vmatpush1.bf16.msra.mxu0 0
    %2292 = vmatprep.subr.bf16.mxu0 0
    %2293 = vmatpush1.bf16.msra.mxu0 0
    %2294 = vmatprep.subr.bf16.mxu0 0
    %2295 = vmatpush1.bf16.msra.mxu0 0
    %2296 = vmatprep.subr.bf16.mxu0 0
    %2297 = vmatpush1.bf16.msra.mxu0 0
    %2298 = vmatprep.subr.bf16.mxu0 0
    %2299 = vmatpush1.bf16.msra.mxu0 0
    %2300 = vmatprep.subr.bf16.mxu0 0
    %2301 = vmatpush1.bf16.msra.mxu0 0
    %2302 = vmatprep.mubr.bf16.mxu0 0
    %2303 = vmatmul.mubr.bf16.gmra.mrb[0].mxu0 %v2268
    %v2304 = vpop.f32.mrb[0].mxu0
    %v2305 = vadd.f32 %v2265, %v2304
    %v2306 = vpop.f32.mrb[0].mxu0
    %v2307 = vpop.f32.mrb[0].mxu0
    %v2308 = vadd.f32 %v2265, %v2307
    %v2309 = vpop.f32.mrb[0].mxu0
    %2310 = vdwg.mxu0
    %vm2311 = vcmp.gt.f32.partialorder %v2305, 0.0
    %vm2312 = vcmp.gt.f32.partialorder %v2308, 0.0
    %v2313 = vmul.f32 %v2305, 0.01
    %v2314 = vmul.f32 %v2308, 0.01
    %v2315 = vsel %vm2311, %v2305, %v2313
    %v2316 = vsel %vm2312, %v2308, %v2314
    %v2317 = vld [vmem:[#allocation26] sm:$0xff]
    %v2318 = vld [vmem:[#allocation28] sm:$0xff]
    %v2319 = vld [vmem:[#allocation29] sm:$0xff]
    %v2320 = vld [vmem:[#allocation31] sm:$0x1]
    %v2321 = vld [vmem:[#allocation32] sm:$0x1]
    %v2322 = vld [vmem:[#allocation34] sm:$0x1]
    %v2323 = vpack.c.bf16 %v2317, %v2317
    %v2325 = vlaneseq
    %v2326 = vshrl.u32 %v2325, 7
    %v2327 = vsub.s32 0, %v2326
    %v2328 = vrot.slane %v2320, %v2327
    %2330 = vrot.lane.b32.xlu0 %v933, 91
    %v2331 = vpop.permute.xlu0 %2330
    %vm2332 = vcmask 64512
    %v2334 = vsel %vm2332, %v2331, 0
    %v2337 = vsel %vm747, %v2323, 0
    %2339 = vmatprep.subr.bf16.mxu0 0
    %2340 = vmatpush1.bf16.msra.mxu0 %v2337
    %2341 = vmatprep.subr.bf16.mxu0 0
    %2342 = vmatpush1.bf16.msra.mxu0 0
    %2343 = vmatprep.subr.bf16.mxu0 0
    %2344 = vmatpush1.bf16.msra.mxu0 0
    %2345 = vmatprep.subr.bf16.mxu0 0
    %2346 = vmatpush1.bf16.msra.mxu0 0
    %2347 = vmatprep.subr.bf16.mxu0 0
    %2348 = vmatpush1.bf16.msra.mxu0 0
    %2349 = vmatprep.subr.bf16.mxu0 0
    %2350 = vmatpush1.bf16.msra.mxu0 0
    %2351 = vmatprep.subr.bf16.mxu0 0
    %2352 = vmatpush1.bf16.msra.mxu0 0
    %2353 = vmatprep.subr.bf16.mxu0 0
    %2354 = vmatpush1.bf16.msra.mxu0 0
    %2355 = vmatprep.subr.bf16.mxu0 0
    %2356 = vmatpush1.bf16.msra.mxu0 0
    %2357 = vmatprep.subr.bf16.mxu0 0
    %2358 = vmatpush1.bf16.msra.mxu0 0
    %2359 = vmatprep.subr.bf16.mxu0 0
    %2360 = vmatpush1.bf16.msra.mxu0 0
    %2361 = vmatprep.subr.bf16.mxu0 0
    %2362 = vmatpush1.bf16.msra.mxu0 0
    %2363 = vmatprep.subr.bf16.mxu0 0
    %2364 = vmatpush1.bf16.msra.mxu0 0
    %2365 = vmatprep.subr.bf16.mxu0 0
    %2366 = vmatpush1.bf16.msra.mxu0 0
    %2367 = vmatprep.subr.bf16.mxu0 0
    %2368 = vmatpush1.bf16.msra.mxu0 0
    %2369 = vmatprep.subr.bf16.mxu0 0
    %2370 = vmatpush1.bf16.msra.mxu0 0
    %2371 = vmatprep.mubr.bf16.mxu0 0
    %2372 = vmatmul.mubr.bf16.gmra.mrb[0].mxu0 %v2334
    %v2373 = vpop.f32.mrb[0].mxu0
    %v2374 = vadd.f32 %v2328, %v2373
    %v2375 = vpop.f32.mrb[0].mxu0
    %v2376 = vpop.f32.mrb[0].mxu0
    %v2377 = vadd.f32 %v2328, %v2376
    %v2378 = vpop.f32.mrb[0].mxu0
    %2379 = vdwg.mxu0
    %v2380 = vsub.f32 0.0, %v2374
    %v2381 = vsub.f32 0.0, %v2377
    %v2382 = vmul.f32 %v2380, 1.442695
    %v2383 = vpow.pop %v2382
    %v2384 = vmul.f32 %v2381, 1.442695
    %v2385 = vpow.pop %v2384
    %v2386 = vadd.f32 %v2383, 1.0
    %v2387 = vadd.f32 %v2385, 1.0
    %v2388 = vrcp.pop %v2386
    %v2389 = vrcp.pop %v2387
    %v2390 = vpack.c.bf16 %v2318, %v2318
    %v2392 = vlaneseq
    %v2393 = vshrl.u32 %v2392, 7
    %v2394 = vsub.s32 0, %v2393
    %v2395 = vrot.slane %v2321, %v2394
    %v2398 = vsel %vm747, %v2390, 0
    %2400 = vmatprep.subr.bf16.mxu0 0
    %2401 = vmatpush1.bf16.msra.mxu0 %v2398
    %2402 = vmatprep.subr.bf16.mxu0 0
    %2403 = vmatpush1.bf16.msra.mxu0 0
    %2404 = vmatprep.subr.bf16.mxu0 0
    %2405 = vmatpush1.bf16.msra.mxu0 0
    %2406 = vmatprep.subr.bf16.mxu0 0
    %2407 = vmatpush1.bf16.msra.mxu0 0
    %2408 = vmatprep.subr.bf16.mxu0 0
    %2409 = vmatpush1.bf16.msra.mxu0 0
    %2410 = vmatprep.subr.bf16.mxu0 0
    %2411 = vmatpush1.bf16.msra.mxu0 0
    %2412 = vmatprep.subr.bf16.mxu0 0
    %2413 = vmatpush1.bf16.msra.mxu0 0
    %2414 = vmatprep.subr.bf16.mxu0 0
    %2415 = vmatpush1.bf16.msra.mxu0 0
    %2416 = vmatprep.subr.bf16.mxu0 0
    %2417 = vmatpush1.bf16.msra.mxu0 0
    %2418 = vmatprep.subr.bf16.mxu0 0
    %2419 = vmatpush1.bf16.msra.mxu0 0
    %2420 = vmatprep.subr.bf16.mxu0 0
    %2421 = vmatpush1.bf16.msra.mxu0 0
    %2422 = vmatprep.subr.bf16.mxu0 0
    %2423 = vmatpush1.bf16.msra.mxu0 0
    %2424 = vmatprep.subr.bf16.mxu0 0
    %2425 = vmatpush1.bf16.msra.mxu0 0
    %2426 = vmatprep.subr.bf16.mxu0 0
    %2427 = vmatpush1.bf16.msra.mxu0 0
    %2428 = vmatprep.subr.bf16.mxu0 0
    %2429 = vmatpush1.bf16.msra.mxu0 0
    %2430 = vmatprep.subr.bf16.mxu0 0
    %2431 = vmatpush1.bf16.msra.mxu0 0
    %2432 = vmatprep.mubr.bf16.mxu0 0
    %2433 = vmatmul.mubr.bf16.gmra.mrb[0].mxu0 %v2334
    %v2434 = vpop.f32.mrb[0].mxu0
    %v2435 = vadd.f32 %v2395, %v2434
    %v2436 = vpop.f32.mrb[0].mxu0
    %v2437 = vpop.f32.mrb[0].mxu0
    %v2438 = vadd.f32 %v2395, %v2437
    %v2439 = vpop.f32.mrb[0].mxu0
    %2440 = vdwg.mxu0
    %v2441 = vtanh.pop %v2435
    %v2442 = vtanh.pop %v2438
    %v2443 = vpack.c.bf16 %v2319, %v2319
    %v2445 = vlaneseq
    %v2446 = vshrl.u32 %v2445, 7
    %v2447 = vsub.s32 0, %v2446
    %v2448 = vrot.slane %v2322, %v2447
    %v2451 = vsel %vm747, %v2443, 0
    %2453 = vmatprep.subr.bf16.mxu0 0
    %2454 = vmatpush1.bf16.msra.mxu0 %v2451
    %2455 = vmatprep.subr.bf16.mxu0 0
    %2456 = vmatpush1.bf16.msra.mxu0 0
    %2457 = vmatprep.subr.bf16.mxu0 0
    %2458 = vmatpush1.bf16.msra.mxu0 0
    %2459 = vmatprep.subr.bf16.mxu0 0
    %2460 = vmatpush1.bf16.msra.mxu0 0
    %2461 = vmatprep.subr.bf16.mxu0 0
    %2462 = vmatpush1.bf16.msra.mxu0 0
    %2463 = vmatprep.subr.bf16.mxu0 0
    %2464 = vmatpush1.bf16.msra.mxu0 0
    %2465 = vmatprep.subr.bf16.mxu0 0
    %2466 = vmatpush1.bf16.msra.mxu0 0
    %2467 = vmatprep.subr.bf16.mxu0 0
    %2468 = vmatpush1.bf16.msra.mxu0 0
    %2469 = vmatprep.subr.bf16.mxu0 0
    %2470 = vmatpush1.bf16.msra.mxu0 0
    %2471 = vmatprep.subr.bf16.mxu0 0
    %2472 = vmatpush1.bf16.msra.mxu0 0
    %2473 = vmatprep.subr.bf16.mxu0 0
    %2474 = vmatpush1.bf16.msra.mxu0 0
    %2475 = vmatprep.subr.bf16.mxu0 0
    %2476 = vmatpush1.bf16.msra.mxu0 0
    %2477 = vmatprep.subr.bf16.mxu0 0
    %2478 = vmatpush1.bf16.msra.mxu0 0
    %2479 = vmatprep.subr.bf16.mxu0 0
    %2480 = vmatpush1.bf16.msra.mxu0 0
    %2481 = vmatprep.subr.bf16.mxu0 0
    %2482 = vmatpush1.bf16.msra.mxu0 0
    %2483 = vmatprep.subr.bf16.mxu0 0
    %2484 = vmatpush1.bf16.msra.mxu0 0
    %2485 = vmatprep.mubr.bf16.mxu0 0
    %2486 = vmatmul.mubr.bf16.gmra.mrb[0].mxu0 %v2334
    %v2487 = vpop.f32.mrb[0].mxu0
    %v2488 = vadd.f32 %v2448, %v2487
    %v2489 = vpop.f32.mrb[0].mxu0
    %v2490 = vpop.f32.mrb[0].mxu0
    %v2491 = vadd.f32 %v2448, %v2490
    %v2492 = vpop.f32.mrb[0].mxu0
    %2493 = vdwg.mxu0
    %v2494 = vsub.f32 0.0, %v2488
    %v2495 = vsub.f32 0.0, %v2491
    %v2496 = vmul.f32 %v2494, 1.442695
    %v2497 = vpow.pop %v2496
    %v2498 = vmul.f32 %v2495, 1.442695
    %v2499 = vpow.pop %v2498
    %v2500 = vadd.f32 %v2497, 1.0
    %v2501 = vadd.f32 %v2499, 1.0
    %v2502 = vrcp.pop %v2500
    %v2503 = vrcp.pop %v2501
    %v2504 = vmul.f32 %v2388, %v2441
    %v2505 = vmul.f32 %v2389, %v2442
    %v2506 = vtanh.pop %v2504
    %v2507 = vtanh.pop %v2505
    %v2508 = vmul.f32 %v2502, %v2506
    %v2509 = vmul.f32 %v2503, %v2507
    %v2510 = vld [vmem:[#allocation35] sm:$0xff]
    %v2511 = vld [vmem:[#allocation35 + $0x8] sm:$0xff]
    %v2512 = vld [vmem:[#allocation35 + $0x10] sm:$0xff]
    %v2513 = vld [vmem:[#allocation35 + $0x18] sm:$0xff]
    %v2514 = vld [vmem:[#allocation35 + $0x20] sm:$0xff]
    %v2515 = vld [vmem:[#allocation35 + $0x28] sm:$0xff]
    %v2516 = vld [vmem:[#allocation35 + $0x30] sm:$0xff]
    %v2517 = vld [vmem:[#allocation35 + $0x38] sm:$0xff]
    %v2518 = vld [vmem:[#allocation37] sm:$0xff]
    %v2519 = vld [vmem:[#allocation37 + $0x8] sm:$0xff]
    %v2520 = vld [vmem:[#allocation37 + $0x10] sm:$0xff]
    %v2521 = vld [vmem:[#allocation37 + $0x18] sm:$0xff]
    %v2522 = vld [vmem:[#allocation37 + $0x20] sm:$0xff]
    %v2523 = vld [vmem:[#allocation37 + $0x28] sm:$0xff]
    %v2524 = vld [vmem:[#allocation37 + $0x30] sm:$0xff]
    %v2525 = vld [vmem:[#allocation37 + $0x38] sm:$0xff]
    %v2526 = vld [vmem:[#allocation38] sm:$0xff]
    %v2527 = vld [vmem:[#allocation38 + $0x8] sm:$0xff]
    %v2528 = vld [vmem:[#allocation38 + $0x10] sm:$0xff]
    %v2529 = vld [vmem:[#allocation38 + $0x18] sm:$0xff]
    %v2530 = vld [vmem:[#allocation38 + $0x20] sm:$0xff]
    %v2531 = vld [vmem:[#allocation38 + $0x28] sm:$0xff]
    %v2532 = vld [vmem:[#allocation38 + $0x30] sm:$0xff]
    %v2533 = vld [vmem:[#allocation38 + $0x38] sm:$0xff]
    %v2534 = vld [vmem:[#allocation40] sm:$0x1]
    %v2535 = vld [vmem:[#allocation41] sm:$0x1]
    %v2536 = vld [vmem:[#allocation43] sm:$0x1]
    %v2537 = vpack.c.bf16 %v2509, %v2508
    %v2538 = vpack.c.bf16 %v2511, %v2510
    %v2539 = vpack.c.bf16 %v2513, %v2512
    %v2540 = vpack.c.bf16 %v2515, %v2514
    %v2541 = vpack.c.bf16 %v2517, %v2516
    %v2543 = vlaneseq
    %v2544 = vshrl.u32 %v2543, 7
    %v2545 = vsub.s32 0, %v2544
    %v2546 = vrot.slane %v2534, %v2545
    %v2549 = vsel %vm2095, %v2537, 0
    %2551 = vmatprep.subr.bf16.mxu0 0
    %2552 = vmatpush1.bf16.msra.mxu0 %v2538
    %2553 = vmatprep.subr.bf16.mxu0 0
    %2554 = vmatpush1.bf16.msra.mxu0 %v2539
    %2555 = vmatprep.subr.bf16.mxu0 0
    %2556 = vmatpush1.bf16.msra.mxu0 %v2540
    %2557 = vmatprep.subr.bf16.mxu0 0
    %2558 = vmatpush1.bf16.msra.mxu0 %v2541
    %2559 = vmatprep.subr.bf16.mxu0 0
    %2560 = vmatpush1.bf16.msra.mxu0 0
    %2561 = vmatprep.subr.bf16.mxu0 0
    %2562 = vmatpush1.bf16.msra.mxu0 0
    %2563 = vmatprep.subr.bf16.mxu0 0
    %2564 = vmatpush1.bf16.msra.mxu0 0
    %2565 = vmatprep.subr.bf16.mxu0 0
    %2566 = vmatpush1.bf16.msra.mxu0 0
    %2567 = vmatprep.subr.bf16.mxu0 0
    %2568 = vmatpush1.bf16.msra.mxu0 0
    %2569 = vmatprep.subr.bf16.mxu0 0
    %2570 = vmatpush1.bf16.msra.mxu0 0
    %2571 = vmatprep.subr.bf16.mxu0 0
    %2572 = vmatpush1.bf16.msra.mxu0 0
    %2573 = vmatprep.subr.bf16.mxu0 0
    %2574 = vmatpush1.bf16.msra.mxu0 0
    %2575 = vmatprep.subr.bf16.mxu0 0
    %2576 = vmatpush1.bf16.msra.mxu0 0
    %2577 = vmatprep.subr.bf16.mxu0 0
    %2578 = vmatpush1.bf16.msra.mxu0 0
    %2579 = vmatprep.subr.bf16.mxu0 0
    %2580 = vmatpush1.bf16.msra.mxu0 0
    %2581 = vmatprep.subr.bf16.mxu0 0
    %2582 = vmatpush1.bf16.msra.mxu0 0
    %2583 = vmatprep.mubr.bf16.mxu0 0
    %2584 = vmatmul.mubr.bf16.gmra.mrb[0].mxu0 %v2549
    %v2585 = vpop.f32.mrb[0].mxu0
    %v2586 = vadd.f32 %v2546, %v2585
    %v2587 = vpop.f32.mrb[0].mxu0
    %v2588 = vpop.f32.mrb[0].mxu0
    %v2589 = vadd.f32 %v2546, %v2588
    %v2590 = vpop.f32.mrb[0].mxu0
    %2591 = vdwg.mxu0
    %v2592 = vsub.f32 0.0, %v2586
    %v2593 = vsub.f32 0.0, %v2589
    %v2594 = vmul.f32 %v2592, 1.442695
    %v2595 = vpow.pop %v2594
    %v2596 = vmul.f32 %v2593, 1.442695
    %v2597 = vpow.pop %v2596
    %v2598 = vadd.f32 %v2595, 1.0
    %v2599 = vadd.f32 %v2597, 1.0
    %v2600 = vrcp.pop %v2598
    %v2601 = vrcp.pop %v2599
    %v2602 = vpack.c.bf16 %v2519, %v2518
    %v2603 = vpack.c.bf16 %v2521, %v2520
    %v2604 = vpack.c.bf16 %v2523, %v2522
    %v2605 = vpack.c.bf16 %v2525, %v2524
    %v2607 = vlaneseq
    %v2608 = vshrl.u32 %v2607, 7
    %v2609 = vsub.s32 0, %v2608
    %v2610 = vrot.slane %v2535, %v2609
    %2612 = vmatprep.subr.bf16.mxu0 0
    %2613 = vmatpush1.bf16.msra.mxu0 %v2602
    %2614 = vmatprep.subr.bf16.mxu0 0
    %2615 = vmatpush1.bf16.msra.mxu0 %v2603
    %2616 = vmatprep.subr.bf16.mxu0 0
    %2617 = vmatpush1.bf16.msra.mxu0 %v2604
    %2618 = vmatprep.subr.bf16.mxu0 0
    %2619 = vmatpush1.bf16.msra.mxu0 %v2605
    %2620 = vmatprep.subr.bf16.mxu0 0
    %2621 = vmatpush1.bf16.msra.mxu0 0
    %2622 = vmatprep.subr.bf16.mxu0 0
    %2623 = vmatpush1.bf16.msra.mxu0 0
    %2624 = vmatprep.subr.bf16.mxu0 0
    %2625 = vmatpush1.bf16.msra.mxu0 0
    %2626 = vmatprep.subr.bf16.mxu0 0
    %2627 = vmatpush1.bf16.msra.mxu0 0
    %2628 = vmatprep.subr.bf16.mxu0 0
    %2629 = vmatpush1.bf16.msra.mxu0 0
    %2630 = vmatprep.subr.bf16.mxu0 0
    %2631 = vmatpush1.bf16.msra.mxu0 0
    %2632 = vmatprep.subr.bf16.mxu0 0
    %2633 = vmatpush1.bf16.msra.mxu0 0
    %2634 = vmatprep.subr.bf16.mxu0 0
    %2635 = vmatpush1.bf16.msra.mxu0 0
    %2636 = vmatprep.subr.bf16.mxu0 0
    %2637 = vmatpush1.bf16.msra.mxu0 0
    %2638 = vmatprep.subr.bf16.mxu0 0
    %2639 = vmatpush1.bf16.msra.mxu0 0
    %2640 = vmatprep.subr.bf16.mxu0 0
    %2641 = vmatpush1.bf16.msra.mxu0 0
    %2642 = vmatprep.subr.bf16.mxu0 0
    %2643 = vmatpush1.bf16.msra.mxu0 0
    %2644 = vmatprep.mubr.bf16.mxu0 0
    %2645 = vmatmul.mubr.bf16.gmra.mrb[0].mxu0 %v2549
    %v2646 = vpop.f32.mrb[0].mxu0
    %v2647 = vadd.f32 %v2610, %v2646
    %v2648 = vpop.f32.mrb[0].mxu0
    %v2649 = vpop.f32.mrb[0].mxu0
    %v2650 = vadd.f32 %v2610, %v2649
    %v2651 = vpop.f32.mrb[0].mxu0
    %2652 = vdwg.mxu0
    %v2653 = vtanh.pop %v2647
    %v2654 = vtanh.pop %v2650
    %v2655 = vpack.c.bf16 %v2527, %v2526
    %v2656 = vpack.c.bf16 %v2529, %v2528
    %v2657 = vpack.c.bf16 %v2531, %v2530
    %v2658 = vpack.c.bf16 %v2533, %v2532
    %v2660 = vlaneseq
    %v2661 = vshrl.u32 %v2660, 7
    %v2662 = vsub.s32 0, %v2661
    %v2663 = vrot.slane %v2536, %v2662
    %2665 = vmatprep.subr.bf16.mxu0 0
    %2666 = vmatpush1.bf16.msra.mxu0 %v2655
    %2667 = vmatprep.subr.bf16.mxu0 0
    %2668 = vmatpush1.bf16.msra.mxu0 %v2656
    %2669 = vmatprep.subr.bf16.mxu0 0
    %2670 = vmatpush1.bf16.msra.mxu0 %v2657
    %2671 = vmatprep.subr.bf16.mxu0 0
    %2672 = vmatpush1.bf16.msra.mxu0 %v2658
    %2673 = vmatprep.subr.bf16.mxu0 0
    %2674 = vmatpush1.bf16.msra.mxu0 0
    %2675 = vmatprep.subr.bf16.mxu0 0
    %2676 = vmatpush1.bf16.msra.mxu0 0
    %2677 = vmatprep.subr.bf16.mxu0 0
    %2678 = vmatpush1.bf16.msra.mxu0 0
    %2679 = vmatprep.subr.bf16.mxu0 0
    %2680 = vmatpush1.bf16.msra.mxu0 0
    %2681 = vmatprep.subr.bf16.mxu0 0
    %2682 = vmatpush1.bf16.msra.mxu0 0
    %2683 = vmatprep.subr.bf16.mxu0 0
    %2684 = vmatpush1.bf16.msra.mxu0 0
    %2685 = vmatprep.subr.bf16.mxu0 0
    %2686 = vmatpush1.bf16.msra.mxu0 0
    %2687 = vmatprep.subr.bf16.mxu0 0
    %2688 = vmatpush1.bf16.msra.mxu0 0
    %2689 = vmatprep.subr.bf16.mxu0 0
    %2690 = vmatpush1.bf16.msra.mxu0 0
    %2691 = vmatprep.subr.bf16.mxu0 0
    %2692 = vmatpush1.bf16.msra.mxu0 0
    %2693 = vmatprep.subr.bf16.mxu0 0
    %2694 = vmatpush1.bf16.msra.mxu0 0
    %2695 = vmatprep.subr.bf16.mxu0 0
    %2696 = vmatpush1.bf16.msra.mxu0 0
    %2697 = vmatprep.mubr.bf16.mxu0 0
    %2698 = vmatmul.mubr.bf16.gmra.mrb[0].mxu0 %v2549
    %v2699 = vpop.f32.mrb[0].mxu0
    %v2700 = vadd.f32 %v2663, %v2699
    %v2701 = vpop.f32.mrb[0].mxu0
    %v2702 = vpop.f32.mrb[0].mxu0
    %v2703 = vadd.f32 %v2663, %v2702
    %v2704 = vpop.f32.mrb[0].mxu0
    %2705 = vdwg.mxu0
    %v2706 = vsub.f32 0.0, %v2700
    %v2707 = vsub.f32 0.0, %v2703
    %v2708 = vmul.f32 %v2706, 1.442695
    %v2709 = vpow.pop %v2708
    %v2710 = vmul.f32 %v2707, 1.442695
    %v2711 = vpow.pop %v2710
    %v2712 = vadd.f32 %v2709, 1.0
    %v2713 = vadd.f32 %v2711, 1.0
    %v2714 = vrcp.pop %v2712
    %v2715 = vrcp.pop %v2713
    %v2716 = vmul.f32 %v2600, %v2653
    %v2717 = vmul.f32 %v2601, %v2654
    %v2718 = vtanh.pop %v2716
    %v2719 = vtanh.pop %v2717
    %v2720 = vmul.f32 %v2714, %v2718
    %v2721 = vmul.f32 %v2715, %v2719
    %v2722 = vld [vmem:[#allocation44] sm:$0xff]
    %v2723 = vld [vmem:[#allocation44 + $0x8] sm:$0xff]
    %v2724 = vld [vmem:[#allocation44 + $0x10] sm:$0xff]
    %v2725 = vld [vmem:[#allocation44 + $0x18] sm:$0xff]
    %v2726 = vld [vmem:[#allocation44 + $0x20] sm:$0xff]
    %v2727 = vld [vmem:[#allocation44 + $0x28] sm:$0xff]
    %v2728 = vld [vmem:[#allocation44 + $0x30] sm:$0xff]
    %v2729 = vld [vmem:[#allocation44 + $0x38] sm:$0xff]
    %v2730 = vld [vmem:[#allocation46] sm:$0xff]
    %v2731 = vld [vmem:[#allocation46 + $0x8] sm:$0xff]
    %v2732 = vld [vmem:[#allocation46 + $0x10] sm:$0xff]
    %v2733 = vld [vmem:[#allocation46 + $0x18] sm:$0xff]
    %v2734 = vld [vmem:[#allocation46 + $0x20] sm:$0xff]
    %v2735 = vld [vmem:[#allocation46 + $0x28] sm:$0xff]
    %v2736 = vld [vmem:[#allocation46 + $0x30] sm:$0xff]
    %v2737 = vld [vmem:[#allocation46 + $0x38] sm:$0xff]
    %v2738 = vld [vmem:[#allocation47] sm:$0xff]
    %v2739 = vld [vmem:[#allocation47 + $0x8] sm:$0xff]
    %v2740 = vld [vmem:[#allocation47 + $0x10] sm:$0xff]
    %v2741 = vld [vmem:[#allocation47 + $0x18] sm:$0xff]
    %v2742 = vld [vmem:[#allocation47 + $0x20] sm:$0xff]
    %v2743 = vld [vmem:[#allocation47 + $0x28] sm:$0xff]
    %v2744 = vld [vmem:[#allocation47 + $0x30] sm:$0xff]
    %v2745 = vld [vmem:[#allocation47 + $0x38] sm:$0xff]
    %v2746 = vld [vmem:[#allocation49] sm:$0x1]
    %v2747 = vld [vmem:[#allocation50] sm:$0x1]
    %v2748 = vld [vmem:[#allocation52] sm:$0x1]
    %v2749 = vpack.c.bf16 %v2721, %v2720
    %v2750 = vpack.c.bf16 %v2723, %v2722
    %v2751 = vpack.c.bf16 %v2725, %v2724
    %v2752 = vpack.c.bf16 %v2727, %v2726
    %v2753 = vpack.c.bf16 %v2729, %v2728
    %v2755 = vlaneseq
    %v2756 = vshrl.u32 %v2755, 7
    %v2757 = vsub.s32 0, %v2756
    %v2758 = vrot.slane %v2746, %v2757
    %v2761 = vsel %vm2095, %v2749, 0
    %2763 = vmatprep.subr.bf16.mxu0 0
    %2764 = vmatpush1.bf16.msra.mxu0 %v2750
    %2765 = vmatprep.subr.bf16.mxu0 0
    %2766 = vmatpush1.bf16.msra.mxu0 %v2751
    %2767 = vmatprep.subr.bf16.mxu0 0
    %2768 = vmatpush1.bf16.msra.mxu0 %v2752
    %2769 = vmatprep.subr.bf16.mxu0 0
    %2770 = vmatpush1.bf16.msra.mxu0 %v2753
    %2771 = vmatprep.subr.bf16.mxu0 0
    %2772 = vmatpush1.bf16.msra.mxu0 0
    %2773 = vmatprep.subr.bf16.mxu0 0
    %2774 = vmatpush1.bf16.msra.mxu0 0
    %2775 = vmatprep.subr.bf16.mxu0 0
    %2776 = vmatpush1.bf16.msra.mxu0 0
    %2777 = vmatprep.subr.bf16.mxu0 0
    %2778 = vmatpush1.bf16.msra.mxu0 0
    %2779 = vmatprep.subr.bf16.mxu0 0
    %2780 = vmatpush1.bf16.msra.mxu0 0
    %2781 = vmatprep.subr.bf16.mxu0 0
    %2782 = vmatpush1.bf16.msra.mxu0 0
    %2783 = vmatprep.subr.bf16.mxu0 0
    %2784 = vmatpush1.bf16.msra.mxu0 0
    %2785 = vmatprep.subr.bf16.mxu0 0
    %2786 = vmatpush1.bf16.msra.mxu0 0
    %2787 = vmatprep.subr.bf16.mxu0 0
    %2788 = vmatpush1.bf16.msra.mxu0 0
    %2789 = vmatprep.subr.bf16.mxu0 0
    %2790 = vmatpush1.bf16.msra.mxu0 0
    %2791 = vmatprep.subr.bf16.mxu0 0
    %2792 = vmatpush1.bf16.msra.mxu0 0
    %2793 = vmatprep.subr.bf16.mxu0 0
    %2794 = vmatpush1.bf16.msra.mxu0 0
    %2795 = vmatprep.mubr.bf16.mxu0 0
    %2796 = vmatmul.mubr.bf16.gmra.mrb[0].mxu0 %v2761
    %v2797 = vpop.f32.mrb[0].mxu0
    %v2798 = vadd.f32 %v2758, %v2797
    %v2799 = vpop.f32.mrb[0].mxu0
    %v2800 = vpop.f32.mrb[0].mxu0
    %v2801 = vadd.f32 %v2758, %v2800
    %v2802 = vpop.f32.mrb[0].mxu0
    %2803 = vdwg.mxu0
    %v2804 = vsub.f32 0.0, %v2798
    %v2805 = vsub.f32 0.0, %v2801
    %v2806 = vmul.f32 %v2804, 1.442695
    %v2807 = vpow.pop %v2806
    %v2808 = vmul.f32 %v2805, 1.442695
    %v2809 = vpow.pop %v2808
    %v2810 = vadd.f32 %v2807, 1.0
    %v2811 = vadd.f32 %v2809, 1.0
    %v2812 = vrcp.pop %v2810
    %v2813 = vrcp.pop %v2811
    %v2814 = vpack.c.bf16 %v2731, %v2730
    %v2815 = vpack.c.bf16 %v2733, %v2732
    %v2816 = vpack.c.bf16 %v2735, %v2734
    %v2817 = vpack.c.bf16 %v2737, %v2736
    %v2819 = vlaneseq
    %v2820 = vshrl.u32 %v2819, 7
    %v2821 = vsub.s32 0, %v2820
    %v2822 = vrot.slane %v2747, %v2821
    %2824 = vmatprep.subr.bf16.mxu0 0
    %2825 = vmatpush1.bf16.msra.mxu0 %v2814
    %2826 = vmatprep.subr.bf16.mxu0 0
    %2827 = vmatpush1.bf16.msra.mxu0 %v2815
    %2828 = vmatprep.subr.bf16.mxu0 0
    %2829 = vmatpush1.bf16.msra.mxu0 %v2816
    %2830 = vmatprep.subr.bf16.mxu0 0
    %2831 = vmatpush1.bf16.msra.mxu0 %v2817
    %2832 = vmatprep.subr.bf16.mxu0 0
    %2833 = vmatpush1.bf16.msra.mxu0 0
    %2834 = vmatprep.subr.bf16.mxu0 0
    %2835 = vmatpush1.bf16.msra.mxu0 0
    %2836 = vmatprep.subr.bf16.mxu0 0
    %2837 = vmatpush1.bf16.msra.mxu0 0
    %2838 = vmatprep.subr.bf16.mxu0 0
    %2839 = vmatpush1.bf16.msra.mxu0 0
    %2840 = vmatprep.subr.bf16.mxu0 0
    %2841 = vmatpush1.bf16.msra.mxu0 0
    %2842 = vmatprep.subr.bf16.mxu0 0
    %2843 = vmatpush1.bf16.msra.mxu0 0
    %2844 = vmatprep.subr.bf16.mxu0 0
    %2845 = vmatpush1.bf16.msra.mxu0 0
    %2846 = vmatprep.subr.bf16.mxu0 0
    %2847 = vmatpush1.bf16.msra.mxu0 0
    %2848 = vmatprep.subr.bf16.mxu0 0
    %2849 = vmatpush1.bf16.msra.mxu0 0
    %2850 = vmatprep.subr.bf16.mxu0 0
    %2851 = vmatpush1.bf16.msra.mxu0 0
    %2852 = vmatprep.subr.bf16.mxu0 0
    %2853 = vmatpush1.bf16.msra.mxu0 0
    %2854 = vmatprep.subr.bf16.mxu0 0
    %2855 = vmatpush1.bf16.msra.mxu0 0
    %2856 = vmatprep.mubr.bf16.mxu0 0
    %2857 = vmatmul.mubr.bf16.gmra.mrb[0].mxu0 %v2761
    %v2858 = vpop.f32.mrb[0].mxu0
    %v2859 = vadd.f32 %v2822, %v2858
    %v2860 = vpop.f32.mrb[0].mxu0
    %v2861 = vpop.f32.mrb[0].mxu0
    %v2862 = vadd.f32 %v2822, %v2861
    %v2863 = vpop.f32.mrb[0].mxu0
    %2864 = vdwg.mxu0
    %v2865 = vtanh.pop %v2859
    %v2866 = vtanh.pop %v2862
    %v2867 = vpack.c.bf16 %v2739, %v2738
    %v2868 = vpack.c.bf16 %v2741, %v2740
    %v2869 = vpack.c.bf16 %v2743, %v2742
    %v2870 = vpack.c.bf16 %v2745, %v2744
    %v2872 = vlaneseq
    %v2873 = vshrl.u32 %v2872, 7
    %v2874 = vsub.s32 0, %v2873
    %v2875 = vrot.slane %v2748, %v2874
    %2877 = vmatprep.subr.bf16.mxu0 0
    %2878 = vmatpush1.bf16.msra.mxu0 %v2867
    %2879 = vmatprep.subr.bf16.mxu0 0
    %2880 = vmatpush1.bf16.msra.mxu0 %v2868
    %2881 = vmatprep.subr.bf16.mxu0 0
    %2882 = vmatpush1.bf16.msra.mxu0 %v2869
    %2883 = vmatprep.subr.bf16.mxu0 0
    %2884 = vmatpush1.bf16.msra.mxu0 %v2870
    %2885 = vmatprep.subr.bf16.mxu0 0
    %2886 = vmatpush1.bf16.msra.mxu0 0
    %2887 = vmatprep.subr.bf16.mxu0 0
    %2888 = vmatpush1.bf16.msra.mxu0 0
    %2889 = vmatprep.subr.bf16.mxu0 0
    %2890 = vmatpush1.bf16.msra.mxu0 0
    %2891 = vmatprep.subr.bf16.mxu0 0
    %2892 = vmatpush1.bf16.msra.mxu0 0
    %2893 = vmatprep.subr.bf16.mxu0 0
    %2894 = vmatpush1.bf16.msra.mxu0 0
    %2895 = vmatprep.subr.bf16.mxu0 0
    %2896 = vmatpush1.bf16.msra.mxu0 0
    %2897 = vmatprep.subr.bf16.mxu0 0
    %2898 = vmatpush1.bf16.msra.mxu0 0
    %2899 = vmatprep.subr.bf16.mxu0 0
    %2900 = vmatpush1.bf16.msra.mxu0 0
    %2901 = vmatprep.subr.bf16.mxu0 0
    %2902 = vmatpush1.bf16.msra.mxu0 0
    %2903 = vmatprep.subr.bf16.mxu0 0
    %2904 = vmatpush1.bf16.msra.mxu0 0
    %2905 = vmatprep.subr.bf16.mxu0 0
    %2906 = vmatpush1.bf16.msra.mxu0 0
    %2907 = vmatprep.subr.bf16.mxu0 0
    %2908 = vmatpush1.bf16.msra.mxu0 0
    %2909 = vmatprep.mubr.bf16.mxu0 0
    %2910 = vmatmul.mubr.bf16.gmra.mrb[0].mxu0 %v2761
    %v2911 = vpop.f32.mrb[0].mxu0
    %v2912 = vadd.f32 %v2875, %v2911
    %v2913 = vpop.f32.mrb[0].mxu0
    %v2914 = vpop.f32.mrb[0].mxu0
    %v2915 = vadd.f32 %v2875, %v2914
    %v2916 = vpop.f32.mrb[0].mxu0
    %2917 = vdwg.mxu0
    %v2918 = vsub.f32 0.0, %v2912
    %v2919 = vsub.f32 0.0, %v2915
    %v2920 = vmul.f32 %v2918, 1.442695
    %v2921 = vpow.pop %v2920
    %v2922 = vmul.f32 %v2919, 1.442695
    %v2923 = vpow.pop %v2922
    %v2924 = vadd.f32 %v2921, 1.0
    %v2925 = vadd.f32 %v2923, 1.0
    %v2926 = vrcp.pop %v2924
    %v2927 = vrcp.pop %v2925
    %v2928 = vmul.f32 %v2812, %v2865
    %v2929 = vmul.f32 %v2813, %v2866
    %v2930 = vtanh.pop %v2928
    %v2931 = vtanh.pop %v2929
    %v2932 = vmul.f32 %v2926, %v2930
    %v2933 = vmul.f32 %v2927, %v2931
    %v2934 = vld [vmem:[#allocation53] sm:$0xff]
    %v2935 = vld [vmem:[#allocation53 + $0x8] sm:$0xff]
    %v2936 = vld [vmem:[#allocation53 + $0x10] sm:$0xff]
    %v2937 = vld [vmem:[#allocation53 + $0x18] sm:$0xff]
    %v2938 = vld [vmem:[#allocation53 + $0x20] sm:$0xff]
    %v2939 = vld [vmem:[#allocation53 + $0x28] sm:$0xff]
    %v2940 = vld [vmem:[#allocation53 + $0x30] sm:$0xff]
    %v2941 = vld [vmem:[#allocation53 + $0x38] sm:$0xff]
    %v2942 = vpack.c.bf16 %v2933, %v2932
    %v2943 = vpack.c.bf16 %v2935, %v2934
    %v2944 = vpack.c.bf16 %v2937, %v2936
    %v2945 = vpack.c.bf16 %v2939, %v2938
    %v2946 = vpack.c.bf16 %v2941, %v2940
    %v2947 = vld [vmem:[#allocation55] sm:$0x1]
    %v2949 = vlaneseq
    %v2950 = vshrl.u32 %v2949, 7
    %v2951 = vsub.s32 0, %v2950
    %v2952 = vrot.slane %v2947, %v2951
    %v2955 = vsel %vm2095, %v2942, 0
    %2957 = vmatprep.subr.bf16.mxu0 0
    %2958 = vmatpush1.bf16.msra.mxu0 %v2943
    %2959 = vmatprep.subr.bf16.mxu0 0
    %2960 = vmatpush1.bf16.msra.mxu0 %v2944
    %2961 = vmatprep.subr.bf16.mxu0 0
    %2962 = vmatpush1.bf16.msra.mxu0 %v2945
    %2963 = vmatprep.subr.bf16.mxu0 0
    %2964 = vmatpush1.bf16.msra.mxu0 %v2946
    %2965 = vmatprep.subr.bf16.mxu0 0
    %2966 = vmatpush1.bf16.msra.mxu0 0
    %2967 = vmatprep.subr.bf16.mxu0 0
    %2968 = vmatpush1.bf16.msra.mxu0 0
    %2969 = vmatprep.subr.bf16.mxu0 0
    %2970 = vmatpush1.bf16.msra.mxu0 0
    %2971 = vmatprep.subr.bf16.mxu0 0
    %2972 = vmatpush1.bf16.msra.mxu0 0
    %2973 = vmatprep.subr.bf16.mxu0 0
    %2974 = vmatpush1.bf16.msra.mxu0 0
    %2975 = vmatprep.subr.bf16.mxu0 0
    %2976 = vmatpush1.bf16.msra.mxu0 0
    %2977 = vmatprep.subr.bf16.mxu0 0
    %2978 = vmatpush1.bf16.msra.mxu0 0
    %2979 = vmatprep.subr.bf16.mxu0 0
    %2980 = vmatpush1.bf16.msra.mxu0 0
    %2981 = vmatprep.subr.bf16.mxu0 0
    %2982 = vmatpush1.bf16.msra.mxu0 0
    %2983 = vmatprep.subr.bf16.mxu0 0
    %2984 = vmatpush1.bf16.msra.mxu0 0
    %2985 = vmatprep.subr.bf16.mxu0 0
    %2986 = vmatpush1.bf16.msra.mxu0 0
    %2987 = vmatprep.subr.bf16.mxu0 0
    %2988 = vmatpush1.bf16.msra.mxu0 0
    %2989 = vmatprep.mubr.bf16.mxu0 0
    %2990 = vmatmul.mubr.bf16.gmra.mrb[0].mxu0 %v2955
    %v2991 = vpop.f32.mrb[0].mxu0
    %v2992 = vadd.f32 %v2952, %v2991
    %v2993 = vpop.f32.mrb[0].mxu0
    %v2994 = vpop.f32.mrb[0].mxu0
    %v2995 = vadd.f32 %v2952, %v2994
    %v2996 = vpop.f32.mrb[0].mxu0
    %2997 = vdwg.mxu0
    %vm2998 = vcmp.gt.f32.partialorder %v2992, 0.0
    %vm2999 = vcmp.gt.f32.partialorder %v2995, 0.0
    %v3000 = vmul.f32 %v2992, 0.01
    %v3001 = vmul.f32 %v2995, 0.01
    %v3002 = vsel %vm2998, %v2992, %v3000
    %v3003 = vsel %vm2999, %v2995, %v3001
    %v3004 = vld [vmem:[#allocation56] sm:$0xff]
    %v3005 = vld [vmem:[#allocation56 + $0x8] sm:$0xff]
    %v3006 = vld [vmem:[#allocation56 + $0x10] sm:$0xff]
    %v3007 = vld [vmem:[#allocation56 + $0x18] sm:$0xff]
    %v3008 = vld [vmem:[#allocation56 + $0x20] sm:$0xff]
    %v3009 = vld [vmem:[#allocation56 + $0x28] sm:$0xff]
    %v3010 = vld [vmem:[#allocation56 + $0x30] sm:$0xff]
    %v3011 = vld [vmem:[#allocation56 + $0x38] sm:$0xff]
    %v3012 = vpack.c.bf16 %v3003, %v3002
    %v3013 = vpack.c.bf16 %v3005, %v3004
    %v3014 = vpack.c.bf16 %v3007, %v3006
    %v3015 = vpack.c.bf16 %v3009, %v3008
    %v3016 = vpack.c.bf16 %v3011, %v3010
    %v3017 = vld [vmem:[#allocation58] sm:$0x1]
    %v3019 = vlaneseq
    %v3020 = vshrl.u32 %v3019, 7
    %v3021 = vsub.s32 0, %v3020
    %v3022 = vrot.slane %v3017, %v3021
    %v3025 = vsel %vm2095, %v3012, 0
    %3027 = vmatprep.subr.bf16.mxu0 0
    %3028 = vmatpush1.bf16.msra.mxu0 %v3013
    %3029 = vmatprep.subr.bf16.mxu0 0
    %3030 = vmatpush1.bf16.msra.mxu0 %v3014
    %3031 = vmatprep.subr.bf16.mxu0 0
    %3032 = vmatpush1.bf16.msra.mxu0 %v3015
    %3033 = vmatprep.subr.bf16.mxu0 0
    %3034 = vmatpush1.bf16.msra.mxu0 %v3016
    %3035 = vmatprep.subr.bf16.mxu0 0
    %3036 = vmatpush1.bf16.msra.mxu0 0
    %3037 = vmatprep.subr.bf16.mxu0 0
    %3038 = vmatpush1.bf16.msra.mxu0 0
    %3039 = vmatprep.subr.bf16.mxu0 0
    %3040 = vmatpush1.bf16.msra.mxu0 0
    %3041 = vmatprep.subr.bf16.mxu0 0
    %3042 = vmatpush1.bf16.msra.mxu0 0
    %3043 = vmatprep.subr.bf16.mxu0 0
    %3044 = vmatpush1.bf16.msra.mxu0 0
    %3045 = vmatprep.subr.bf16.mxu0 0
    %3046 = vmatpush1.bf16.msra.mxu0 0
    %3047 = vmatprep.subr.bf16.mxu0 0
    %3048 = vmatpush1.bf16.msra.mxu0 0
    %3049 = vmatprep.subr.bf16.mxu0 0
    %3050 = vmatpush1.bf16.msra.mxu0 0
    %3051 = vmatprep.subr.bf16.mxu0 0
    %3052 = vmatpush1.bf16.msra.mxu0 0
    %3053 = vmatprep.subr.bf16.mxu0 0
    %3054 = vmatpush1.bf16.msra.mxu0 0
    %3055 = vmatprep.subr.bf16.mxu0 0
    %3056 = vmatpush1.bf16.msra.mxu0 0
    %3057 = vmatprep.subr.bf16.mxu0 0
    %3058 = vmatpush1.bf16.msra.mxu0 0
    %3059 = vmatprep.mubr.bf16.mxu0 0
    %3060 = vmatmul.mubr.bf16.gmra.mrb[0].mxu0 %v3025
    %v3061 = vpop.f32.mrb[0].mxu0
    %v3062 = vadd.f32 %v3022, %v3061
    %v3063 = vpop.f32.mrb[0].mxu0
    %v3064 = vpop.f32.mrb[0].mxu0
    %v3065 = vadd.f32 %v3022, %v3064
    %v3066 = vpop.f32.mrb[0].mxu0
    %3067 = vdwg.mxu0
    %vm3068 = vcmp.gt.f32.partialorder %v3062, 0.0
    %vm3069 = vcmp.gt.f32.partialorder %v3065, 0.0
    %v3070 = vmul.f32 %v3062, 0.01
    %v3071 = vmul.f32 %v3065, 0.01
    %v3072 = vsel %vm3068, %v3062, %v3070
    %v3073 = vsel %vm3069, %v3065, %v3071
    %v3074 = vld [vmem:[#allocation59] sm:$0xff]
    %v3075 = vld [vmem:[#allocation59 + $0x8] sm:$0xff]
    %v3076 = vld [vmem:[#allocation59 + $0x10] sm:$0xff]
    %v3077 = vld [vmem:[#allocation59 + $0x18] sm:$0xff]
    %v3078 = vld [vmem:[#allocation59 + $0x20] sm:$0xff]
    %v3079 = vld [vmem:[#allocation59 + $0x28] sm:$0xff]
    %v3080 = vld [vmem:[#allocation59 + $0x30] sm:$0xff]
    %v3081 = vld [vmem:[#allocation59 + $0x38] sm:$0xff]
    %v3082 = vpack.c.bf16 %v2316, %v2315
    %v3083 = vpack.c.bf16 %v3075, %v3074
    %v3084 = vpack.c.bf16 %v3077, %v3076
    %v3085 = vpack.c.bf16 %v3079, %v3078
    %v3086 = vpack.c.bf16 %v3081, %v3080
    %v3087 = vld [vmem:[%s95] sm:$0xff]
    %v3088 = vld [vmem:[%s95 + $0x8] sm:$0xff]
    %v3089 = vld [vmem:[%s95 + $0x10] sm:$0xff]
    %v3090 = vld [vmem:[%s95 + $0x18] sm:$0xff]
    %v3091 = vld [vmem:[%s95 + $0x20] sm:$0xff]
    %v3092 = vld [vmem:[%s95 + $0x28] sm:$0xff]
    %v3093 = vld [vmem:[%s95 + $0x30] sm:$0xff]
    %v3094 = vld [vmem:[%s95 + $0x38] sm:$0xff]
    %v3095 = vpack.c.bf16 %v3073, %v3072
    %v3096 = vpack.c.bf16 %v3088, %v3087
    %v3097 = vpack.c.bf16 %v3090, %v3089
    %v3098 = vpack.c.bf16 %v3092, %v3091
    %v3099 = vpack.c.bf16 %v3094, %v3093
    %v3101 = vsel %vm2095, %v3095, 0
    %3103 = vmatprep.subr.bf16.mxu0 0
    %3104 = vmatpush1.bf16.msra.mxu0 %v3096
    %3105 = vmatprep.subr.bf16.mxu0 0
    %3106 = vmatpush1.bf16.msra.mxu0 %v3097
    %3107 = vmatprep.subr.bf16.mxu0 0
    %3108 = vmatpush1.bf16.msra.mxu0 %v3098
    %3109 = vmatprep.subr.bf16.mxu0 0
    %3110 = vmatpush1.bf16.msra.mxu0 %v3099
    %3111 = vmatprep.subr.bf16.mxu0 0
    %3112 = vmatpush1.bf16.msra.mxu0 0
    %3113 = vmatprep.subr.bf16.mxu0 0
    %3114 = vmatpush1.bf16.msra.mxu0 0
    %3115 = vmatprep.subr.bf16.mxu0 0
    %3116 = vmatpush1.bf16.msra.mxu0 0
    %3117 = vmatprep.subr.bf16.mxu0 0
    %3118 = vmatpush1.bf16.msra.mxu0 0
    %3119 = vmatprep.subr.bf16.mxu0 0
    %3120 = vmatpush1.bf16.msra.mxu0 0
    %3121 = vmatprep.subr.bf16.mxu0 0
    %3122 = vmatpush1.bf16.msra.mxu0 0
    %3123 = vmatprep.subr.bf16.mxu0 0
    %3124 = vmatpush1.bf16.msra.mxu0 0
    %3125 = vmatprep.subr.bf16.mxu0 0
    %3126 = vmatpush1.bf16.msra.mxu0 0
    %3127 = vmatprep.subr.bf16.mxu0 0
    %3128 = vmatpush1.bf16.msra.mxu0 0
    %3129 = vmatprep.subr.bf16.mxu0 0
    %3130 = vmatpush1.bf16.msra.mxu0 0
    %3131 = vmatprep.subr.bf16.mxu0 0
    %3132 = vmatpush1.bf16.msra.mxu0 0
    %3133 = vmatprep.subr.bf16.mxu0 0
    %3134 = vmatpush1.bf16.msra.mxu0 0
    %3135 = vmatprep.mubr.bf16.mxu0 0
    %3136 = vmatmul.mubr.bf16.gmra.mrb[0].mxu0 %v3101
    %v3137 = vpop.f32.mrb[0].mxu0
    %v3138 = vadd.f32 0.0, %v3137
    %v3139 = vpop.f32.mrb[0].mxu0
    %v3140 = vpop.f32.mrb[0].mxu0
    %v3141 = vadd.f32 0.0, %v3140
    %v3142 = vpop.f32.mrb[0].mxu0
    %3143 = vdwg.mxu0
    %v3145 = vsel %vm2095, %v3082, 0
    %3147 = vmatprep.subr.bf16.mxu0 0
    %3148 = vmatpush1.bf16.msra.mxu0 %v3083
    %3149 = vmatprep.subr.bf16.mxu0 0
    %3150 = vmatpush1.bf16.msra.mxu0 %v3084
    %3151 = vmatprep.subr.bf16.mxu0 0
    %3152 = vmatpush1.bf16.msra.mxu0 %v3085
    %3153 = vmatprep.subr.bf16.mxu0 0
    %3154 = vmatpush1.bf16.msra.mxu0 %v3086
    %3155 = vmatprep.subr.bf16.mxu0 0
    %3156 = vmatpush1.bf16.msra.mxu0 0
    %3157 = vmatprep.subr.bf16.mxu0 0
    %3158 = vmatpush1.bf16.msra.mxu0 0
    %3159 = vmatprep.subr.bf16.mxu0 0
    %3160 = vmatpush1.bf16.msra.mxu0 0
    %3161 = vmatprep.subr.bf16.mxu0 0
    %3162 = vmatpush1.bf16.msra.mxu0 0
    %3163 = vmatprep.subr.bf16.mxu0 0
    %3164 = vmatpush1.bf16.msra.mxu0 0
    %3165 = vmatprep.subr.bf16.mxu0 0
    %3166 = vmatpush1.bf16.msra.mxu0 0
    %3167 = vmatprep.subr.bf16.mxu0 0
    %3168 = vmatpush1.bf16.msra.mxu0 0
    %3169 = vmatprep.subr.bf16.mxu0 0
    %3170 = vmatpush1.bf16.msra.mxu0 0
    %3171 = vmatprep.subr.bf16.mxu0 0
    %3172 = vmatpush1.bf16.msra.mxu0 0
    %3173 = vmatprep.subr.bf16.mxu0 0
    %3174 = vmatpush1.bf16.msra.mxu0 0
    %3175 = vmatprep.subr.bf16.mxu0 0
    %3176 = vmatpush1.bf16.msra.mxu0 0
    %3177 = vmatprep.subr.bf16.mxu0 0
    %3178 = vmatpush1.bf16.msra.mxu0 0
    %3179 = vmatprep.mubr.bf16.mxu0 0
    %3180 = vmatmul.mubr.bf16.gmra.mrb[0].mxu0 %v3145
    %v3181 = vpop.f32.mrb[0].mxu0
    %v3182 = vadd.f32 %v3138, %v3181
    %v3183 = vpop.f32.mrb[0].mxu0
    %v3184 = vpop.f32.mrb[0].mxu0
    %v3185 = vadd.f32 %v3141, %v3184
    %v3186 = vpop.f32.mrb[0].mxu0
    %3187 = vdwg.mxu0
    %v3188 = vld [vmem:[#allocation61] sm:$0x1]
    %v3190 = vlaneseq
    %v3191 = vshrl.u32 %v3190, 7
    %v3192 = vsub.s32 0, %v3191
    %v3193 = vrot.slane %v3188, %v3192
    %v3195 = vadd.f32 %v3182, %v3193
    %v3196 = vadd.f32 %v3185, %v3193
    %v3197 = vmax.f32 %v3195, 0.0
    %v3198 = vmax.f32 %v3196, 0.0
    %v3199 = vld [vmem:[#allocation62] sm:$0xff]
    %v3200 = vld [vmem:[#allocation62 + $0x8] sm:$0xff]
    %v3201 = vld [vmem:[#allocation62 + $0x10] sm:$0xff]
    %v3202 = vld [vmem:[#allocation62 + $0x18] sm:$0xff]
    %v3203 = vld [vmem:[#allocation62 + $0x20] sm:$0xff]
    %v3204 = vld [vmem:[#allocation62 + $0x28] sm:$0xff]
    %v3205 = vld [vmem:[#allocation62 + $0x30] sm:$0xff]
    %v3206 = vld [vmem:[#allocation62 + $0x38] sm:$0xff]
    %v3207 = vpack.c.bf16 %v3198, %v3197
    %v3208 = vpack.c.bf16 %v3200, %v3199
    %v3209 = vpack.c.bf16 %v3202, %v3201
    %v3210 = vpack.c.bf16 %v3204, %v3203
    %v3211 = vpack.c.bf16 %v3206, %v3205
    %v3212 = vld [vmem:[%s101] sm:$0x1]
    %v3214 = vlaneseq
    %v3215 = vshrl.u32 %v3214, 7
    %v3216 = vsub.s32 0, %v3215
    %v3217 = vrot.slane %v3212, %v3216
    %v3220 = vsel %vm2095, %v3207, 0
    %3222 = vmatprep.subr.bf16.mxu0 0
    %3223 = vmatpush1.bf16.msra.mxu0 %v3208
    %3224 = vmatprep.subr.bf16.mxu0 0
    %3225 = vmatpush1.bf16.msra.mxu0 %v3209
    %3226 = vmatprep.subr.bf16.mxu0 0
    %3227 = vmatpush1.bf16.msra.mxu0 %v3210
    %3228 = vmatprep.subr.bf16.mxu0 0
    %3229 = vmatpush1.bf16.msra.mxu0 %v3211
    %3230 = vmatprep.subr.bf16.mxu0 0
    %3231 = vmatpush1.bf16.msra.mxu0 0
    %3232 = vmatprep.subr.bf16.mxu0 0
    %3233 = vmatpush1.bf16.msra.mxu0 0
    %3234 = vmatprep.subr.bf16.mxu0 0
    %3235 = vmatpush1.bf16.msra.mxu0 0
    %3236 = vmatprep.subr.bf16.mxu0 0
    %3237 = vmatpush1.bf16.msra.mxu0 0
    %3238 = vmatprep.subr.bf16.mxu0 0
    %3239 = vmatpush1.bf16.msra.mxu0 0
    %3240 = vmatprep.subr.bf16.mxu0 0
    %3241 = vmatpush1.bf16.msra.mxu0 0
    %3242 = vmatprep.subr.bf16.mxu0 0
    %3243 = vmatpush1.bf16.msra.mxu0 0
    %3244 = vmatprep.subr.bf16.mxu0 0
    %3245 = vmatpush1.bf16.msra.mxu0 0
    %3246 = vmatprep.subr.bf16.mxu0 0
    %3247 = vmatpush1.bf16.msra.mxu0 0
    %3248 = vmatprep.subr.bf16.mxu0 0
    %3249 = vmatpush1.bf16.msra.mxu0 0
    %3250 = vmatprep.subr.bf16.mxu0 0
    %3251 = vmatpush1.bf16.msra.mxu0 0
    %3252 = vmatprep.subr.bf16.mxu0 0
    %3253 = vmatpush1.bf16.msra.mxu0 0
    %3254 = vmatprep.mubr.bf16.mxu0 0
    %3255 = vmatmul.mubr.bf16.gmra.mrb[0].mxu0 %v3220
    %v3256 = vpop.f32.mrb[0].mxu0
    %v3257 = vadd.f32 %v3217, %v3256
    %v3258 = vpop.f32.mrb[0].mxu0
    %v3259 = vpop.f32.mrb[0].mxu0
    %v3260 = vadd.f32 %v3217, %v3259
    %v3261 = vpop.f32.mrb[0].mxu0
    %3262 = vdwg.mxu0
    %v3263 = vmax.f32 %v3257, 0.0
    %v3264 = vmax.f32 %v3260, 0.0
    %v3265 = vld [vmem:[%s103] sm:$0xff]
    %v3266 = vld [vmem:[%s103 + $0x8] sm:$0xff]
    %v3267 = vld [vmem:[%s103 + $0x10] sm:$0xff]
    %v3268 = vld [vmem:[%s103 + $0x18] sm:$0xff]
    %v3269 = vld [vmem:[%s103 + $0x20] sm:$0xff]
    %v3270 = vld [vmem:[%s103 + $0x28] sm:$0xff]
    %v3271 = vld [vmem:[%s103 + $0x30] sm:$0xff]
    %v3272 = vld [vmem:[%s103 + $0x38] sm:$0xff]
    %v3273 = vpack.c.bf16 %v3264, %v3263
    %v3274 = vpack.c.bf16 %v3266, %v3265
    %v3275 = vpack.c.bf16 %v3268, %v3267
    %v3276 = vpack.c.bf16 %v3270, %v3269
    %v3277 = vpack.c.bf16 %v3272, %v3271
    %v3278 = vld [vmem:[#allocation2] sm:$0x1]
    %v3280 = vlaneseq
    %v3281 = vshrl.u32 %v3280, 7
    %v3282 = vsub.s32 0, %v3281
    %v3283 = vrot.slane %v3278, %v3282
    %v3286 = vsel %vm2095, %v3273, 0
    %3288 = vmatprep.subr.bf16.mxu0 0
    %3289 = vmatpush1.bf16.msra.mxu0 %v3274
    %3290 = vmatprep.subr.bf16.mxu0 0
    %3291 = vmatpush1.bf16.msra.mxu0 %v3275
    %3292 = vmatprep.subr.bf16.mxu0 0
    %3293 = vmatpush1.bf16.msra.mxu0 %v3276
    %3294 = vmatprep.subr.bf16.mxu0 0
    %3295 = vmatpush1.bf16.msra.mxu0 %v3277
    %3296 = vmatprep.subr.bf16.mxu0 0
    %3297 = vmatpush1.bf16.msra.mxu0 0
    %3298 = vmatprep.subr.bf16.mxu0 0
    %3299 = vmatpush1.bf16.msra.mxu0 0
    %3300 = vmatprep.subr.bf16.mxu0 0
    %3301 = vmatpush1.bf16.msra.mxu0 0
    %3302 = vmatprep.subr.bf16.mxu0 0
    %3303 = vmatpush1.bf16.msra.mxu0 0
    %3304 = vmatprep.subr.bf16.mxu0 0
    %3305 = vmatpush1.bf16.msra.mxu0 0
    %3306 = vmatprep.subr.bf16.mxu0 0
    %3307 = vmatpush1.bf16.msra.mxu0 0
    %3308 = vmatprep.subr.bf16.mxu0 0
    %3309 = vmatpush1.bf16.msra.mxu0 0
    %3310 = vmatprep.subr.bf16.mxu0 0
    %3311 = vmatpush1.bf16.msra.mxu0 0
    %3312 = vmatprep.subr.bf16.mxu0 0
    %3313 = vmatpush1.bf16.msra.mxu0 0
    %3314 = vmatprep.subr.bf16.mxu0 0
    %3315 = vmatpush1.bf16.msra.mxu0 0
    %3316 = vmatprep.subr.bf16.mxu0 0
    %3317 = vmatpush1.bf16.msra.mxu0 0
    %3318 = vmatprep.subr.bf16.mxu0 0
    %3319 = vmatpush1.bf16.msra.mxu0 0
    %3320 = vmatprep.mubr.bf16.mxu0 0
    %3321 = vmatmul.mubr.bf16.gmra.mrb[0].mxu0 %v3286
    %v3322 = vpop.f32.mrb[0].mxu0
    %v3323 = vadd.f32 %v3283, %v3322
    %v3324 = vpop.f32.mrb[0].mxu0
    %v3325 = vpop.f32.mrb[0].mxu0
    %v3326 = vadd.f32 %v3283, %v3325
    %v3327 = vpop.f32.mrb[0].mxu0
    %3328 = vdwg.mxu0
    %vm3329 = vcmask 7168
    %3330 = vst.msk [vmem:[%s107] sm:$0xff] %vm3329, %v3323
    %3331 = vst.msk [vmem:[%s107 + $0x8] sm:$0xff] %vm3329, %v3326
    // Predicated region
    $region374: #{forward.1} parent=1 // pred_check
      _
    $region375: #{forward.1} parent=1 // pred_check_branch
      %3333 = sbr.rel (0) target = $region377
    $region376: #{forward.1} parent=1 // pred_region
      _
    $region377: #{forward.1} parent=1 // pred_fallthru
      _
    // Predicated region
    $region378: #{forward.1} parent=1 // pred_check
      _
    $region379: #{forward.1} parent=1 // pred_check_branch
      %3335 = sbr.rel (0) target = $region381
    $region380: #{forward.1} parent=1 // pred_region
      _
    $region381: #{forward.1} parent=1 // pred_fallthru
      _
    %3336 = vsyncpa [#allocation4], 1
    %3337 = vsyncpa [#allocation6], 1
    %3338 = vsyncpa [#allocation9], 1
    %3339 = vsyncpa [#allocation12], 1
    %3340 = vsyncpa [#allocation15], 1
    %3341 = vsyncpa [#allocation18], 1
    %3342 = vsyncpa [#allocation21], 1
    %3343 = vsyncpa [#allocation24], 1
    %3344 = vsyncpa [#allocation27], 1
    %3345 = vsyncpa [#allocation30], 1
    %3346 = vsyncpa [#allocation33], 1
    %3347 = vsyncpa [#allocation36], 1
    %3348 = vsyncpa [#allocation39], 1
    %3349 = vsyncpa [#allocation42], 1
    %3350 = vsyncpa [#allocation45], 1
    %3351 = vsyncpa [#allocation48], 1
    %3352 = vsyncpa [#allocation51], 1
    %3353 = vsyncpa [#allocation54], 1
    %3354 = vsyncpa [#allocation57], 1
    %3355 = vsyncpa [#allocation60], 1
    %3356 = vsyncpa [#allocation63], 1

</llo_original>
